<compile_context>
chip_gen: v7x
topology: tpu7x:2x2x1
jax: 0.10.0
libtpu: 0.0.40
codegen_flags: <defaults>
</compile_context>

<pallas_src>
import math
import numpy as np
import jax
import jax.numpy as jnp
from jax.experimental import pallas as pl
from jax.experimental.pallas import tpu as pltpu

# ---------------- config (small, consistent with the module) ----------------
B = 2                 # batch
T = 8                 # sequence length
D = 32                # h_dim
NUM_HEADS = 4
HEAD_DIM = D // NUM_HEADS
D_FF = 64             # d_ff (shrunk from 2048 for the small test)
NUM_LAYERS = 2
MAX_TIME_STEPS = 16   # pos_emb table size
EPS = 1e-5
BT = B * T


# ------------------------------- Pallas kernel ------------------------------
def encoder_kernel(x_ref, pos_ref, wqkv_ref, wo_ref, bo_ref,
                   ln1w_ref, ln1b_ref, w1_ref, b1_ref, w2_ref, b2_ref,
                   ln2w_ref, ln2b_ref, o_ref):
    # x: [B, T, D]; pos: [T, D]; layer weights stacked on a leading L axis.
    x = x_ref[...].astype(jnp.float32) + pos_ref[...]          # [B, T, D]
    h = x.reshape(BT, D)                                       # flatten (B*T, D)

    inv_scale = 1.0 / math.sqrt(HEAD_DIM)

    for l in range(NUM_LAYERS):                                # static unrolled
        # ---- fused QKV projection on flattened rows ----
        qkv = jnp.dot(h, wqkv_ref[l],
                      preferred_element_type=jnp.float32)       # [BT, 3D]
        q = (qkv[:, 0 * D:1 * D] * inv_scale).reshape(B, T, D)  # scale hoisted
        k = qkv[:, 1 * D:2 * D].reshape(B, T, D)
        v = qkv[:, 2 * D:3 * D].reshape(B, T, D)

        # ---- multi-head self-attention (batched over B) ----
        heads = []
        for hh in range(NUM_HEADS):                            # static unrolled
            lo, hi = hh * HEAD_DIM, (hh + 1) * HEAD_DIM
            s = jnp.einsum('btd,bsd->bts', q[:, :, lo:hi], k[:, :, lo:hi],
                           preferred_element_type=jnp.float32)  # [B, T, T]
            s = s - jnp.max(s, axis=-1, keepdims=True)
            p = jnp.exp(s)
            p = p * pl.reciprocal(jnp.sum(p, axis=-1, keepdims=True),
                                  approx=True)
            heads.append(jnp.einsum('bts,bsd->btd', p, v[:, :, lo:hi],
                                    preferred_element_type=jnp.float32))
        cat = jnp.concatenate(heads, axis=-1).reshape(BT, D)    # [BT, D]

        # ---- output projection + residual + LayerNorm 1 ----
        x1 = jnp.dot(cat, wo_ref[l],
                     preferred_element_type=jnp.float32) + bo_ref[l] + h
        mu1 = jnp.mean(x1, axis=-1, keepdims=True)
        var1 = jnp.mean((x1 - mu1) ** 2, axis=-1, keepdims=True)
        xn1 = (x1 - mu1) * jax.lax.rsqrt(var1 + EPS) * ln1w_ref[l] + ln1b_ref[l]

        # ---- FFN (Linear -> ReLU -> Linear) + residual + LayerNorm 2 ----
        h1 = jnp.dot(xn1, w1_ref[l],
                     preferred_element_type=jnp.float32) + b1_ref[l]
        h1 = jnp.maximum(h1, 0.0)
        x2 = jnp.dot(h1, w2_ref[l],
                     preferred_element_type=jnp.float32) + b2_ref[l] + xn1
        mu2 = jnp.mean(x2, axis=-1, keepdims=True)
        var2 = jnp.mean((x2 - mu2) ** 2, axis=-1, keepdims=True)
        h = (x2 - mu2) * jax.lax.rsqrt(var2 + EPS) * ln2w_ref[l] + ln2b_ref[l]

    o_ref[...] = h.reshape(B, T, D).astype(o_ref.dtype)


# --------------------------------- wrapper -----------------------------------
def transformer_encoder(x, pos, stacked):
    (wqkv, wo, bo, ln1w, ln1b, w1, b1, w2, b2, ln2w, ln2b) = stacked

    def full(shape):
        n = len(shape)
        return pl.BlockSpec(shape, lambda i, _n=n: (0,) * _n)

    return pl.pallas_call(
        encoder_kernel,
        out_shape=jax.ShapeDtypeStruct((B, T, D), x.dtype),
        grid_spec=pltpu.PrefetchScalarGridSpec(
            num_scalar_prefetch=0,
            grid=(1,),                                   # single invocation
            in_specs=[
                full((B, T, D)),                         # x
                full((T, D)),                            # pos embeddings
                full((NUM_LAYERS, D, 3 * D)),            # fused wq|wk|wv
                full((NUM_LAYERS, D, D)),                # wo
                full((NUM_LAYERS, 1, D)),                # bo
                full((NUM_LAYERS, 1, D)),                # ln1 weight
                full((NUM_LAYERS, 1, D)),                # ln1 bias
                full((NUM_LAYERS, D, D_FF)),             # ffn W1
                full((NUM_LAYERS, 1, D_FF)),             # ffn b1
                full((NUM_LAYERS, D_FF, D)),             # ffn W2
                full((NUM_LAYERS, 1, D)),                # ffn b2
                full((NUM_LAYERS, 1, D)),                # ln2 weight
                full((NUM_LAYERS, 1, D)),                # ln2 bias
            ],
            out_specs=full((B, T, D)),
        ),
        compiler_params=pltpu.CompilerParams(
            dimension_semantics=("arbitrary",)),
    )(x, pos, wqkv, wo, bo, ln1w, ln1b, w1, b1, w2, b2, ln2w, ln2b)


# ------------------------- pure-JAX reference (check) ------------------------
def reference(x, pos, layers):
    h = x + pos[None]
    for (wq, wk, wv, wo, bo, ln1w, ln1b, w1, b1, w2, b2, ln2w, ln2b) in layers:
        q, k, v = h @ wq, h @ wk, h @ wv
        heads = []
        for hh in range(NUM_HEADS):
            lo, hi = hh * HEAD_DIM, (hh + 1) * HEAD_DIM
            att = jnp.einsum('btd,bsd->bts', q[..., lo:hi],
                             k[..., lo:hi]) / math.sqrt(HEAD_DIM)
            att = jax.nn.softmax(att, axis=-1)
            heads.append(jnp.einsum('bts,bsd->btd', att, v[..., lo:hi]))
        cat = jnp.concatenate(heads, axis=-1)
        x1 = cat @ wo + bo[0] + h
        mu = jnp.mean(x1, -1, keepdims=True)
        var = jnp.mean((x1 - mu) ** 2, -1, keepdims=True)
        xn1 = (x1 - mu) / jnp.sqrt(var + EPS) * ln1w[0] + ln1b[0]
        h1 = jnp.maximum(xn1 @ w1 + b1[0], 0.0)
        x2 = h1 @ w2 + b2[0] + xn1
        mu2 = jnp.mean(x2, -1, keepdims=True)
        var2 = jnp.mean((x2 - mu2) ** 2, -1, keepdims=True)
        h = (x2 - mu2) / jnp.sqrt(var2 + EPS) * ln2w[0] + ln2b[0]
    return h


# ----------------------------------- main ------------------------------------
if __name__ == "__main__":
    key = jax.random.PRNGKey(0)
    keys = iter(jax.random.split(key, 64))
    nk = lambda: next(keys)
    scl = 0.1

    x = jax.random.normal(nk(), (B, T, D), jnp.float32)
    pos_table = scl * jax.random.normal(nk(), (MAX_TIME_STEPS, D), jnp.float32)
    pos = pos_table[:T]                                    # pos_emb.weight[:T]

    layers = []
    for _ in range(NUM_LAYERS):
        wq = scl * jax.random.normal(nk(), (D, D), jnp.float32)
        wk = scl * jax.random.normal(nk(), (D, D), jnp.float32)
        wv = scl * jax.random.normal(nk(), (D, D), jnp.float32)
        wo = scl * jax.random.normal(nk(), (D, D), jnp.float32)
        bo = scl * jax.random.normal(nk(), (1, D), jnp.float32)
        ln1w = 1.0 + scl * jax.random.normal(nk(), (1, D), jnp.float32)
        ln1b = scl * jax.random.normal(nk(), (1, D), jnp.float32)
        w1 = scl * jax.random.normal(nk(), (D, D_FF), jnp.float32)
        b1 = scl * jax.random.normal(nk(), (1, D_FF), jnp.float32)
        w2 = scl * jax.random.normal(nk(), (D_FF, D), jnp.float32)
        b2 = scl * jax.random.normal(nk(), (1, D), jnp.float32)
        ln2w = 1.0 + scl * jax.random.normal(nk(), (1, D), jnp.float32)
        ln2b = scl * jax.random.normal(nk(), (1, D), jnp.float32)
        layers.append((wq, wk, wv, wo, bo, ln1w, ln1b,
                       w1, b1, w2, b2, ln2w, ln2b))

    # Pack for the kernel: fuse Q|K|V and stack per-layer weights on a lead axis.
    wqkv = jnp.stack([jnp.concatenate([L[0], L[1], L[2]], axis=1)
                      for L in layers])                    # [L, D, 3D]
    stack = lambda i: jnp.stack([L[i] for L in layers])
    stacked = (wqkv, stack(3), stack(4), stack(5), stack(6),
               stack(7), stack(8), stack(9), stack(10), stack(11), stack(12))

    out = jax.block_until_ready(transformer_encoder(x, pos, stacked))
    ref = jax.block_until_ready(reference(x, pos, layers))

    # Tolerance slightly relaxed (2e-3) for the approx EUP reciprocal in softmax.
    np.testing.assert_allclose(np.asarray(out), np.asarray(ref),
                               rtol=2e-3, atol=2e-3)
    print("KERNEL_OK")
</pallas_src>

<mosaic_0001>
module attributes {stable_mosaic.version = 11 : i64} {
  func.func @encoder_kernel(%arg0: i32, %arg1: memref<2x8x32xf32, #tpu.memory_space<vmem>>, %arg2: memref<8x32xf32, #tpu.memory_space<vmem>>, %arg3: memref<2x32x96xf32, #tpu.memory_space<vmem>>, %arg4: memref<2x32x32xf32, #tpu.memory_space<vmem>>, %arg5: memref<2x1x32xf32, #tpu.memory_space<vmem>>, %arg6: memref<2x1x32xf32, #tpu.memory_space<vmem>>, %arg7: memref<2x1x32xf32, #tpu.memory_space<vmem>>, %arg8: memref<2x32x64xf32, #tpu.memory_space<vmem>>, %arg9: memref<2x1x64xf32, #tpu.memory_space<vmem>>, %arg10: memref<2x64x32xf32, #tpu.memory_space<vmem>>, %arg11: memref<2x1x32xf32, #tpu.memory_space<vmem>>, %arg12: memref<2x1x32xf32, #tpu.memory_space<vmem>>, %arg13: memref<2x1x32xf32, #tpu.memory_space<vmem>>, %arg14: memref<2x8x32xf32, #tpu.memory_space<vmem>>) attributes {dimension_semantics = [#tpu.dimension_semantics<arbitrary>], iteration_bounds = array<i64: 1>, scalar_prefetch = 0 : i64, scratch_operands = 0 : i64, tpu.core_type = #tpu.core_type<tc>, window_params = [{pipeline_mode = #tpu.pipeline_mode<synchronous>, transform_indices = @transform_0, window_bounds = array<i64: 2, 8, 32>}, {pipeline_mode = #tpu.pipeline_mode<synchronous>, transform_indices = @transform_1, window_bounds = array<i64: 8, 32>}, {pipeline_mode = #tpu.pipeline_mode<synchronous>, transform_indices = @transform_2, window_bounds = array<i64: 2, 32, 96>}, {pipeline_mode = #tpu.pipeline_mode<synchronous>, transform_indices = @transform_3, window_bounds = array<i64: 2, 32, 32>}, {pipeline_mode = #tpu.pipeline_mode<synchronous>, transform_indices = @transform_4, window_bounds = array<i64: 2, 1, 32>}, {pipeline_mode = #tpu.pipeline_mode<synchronous>, transform_indices = @transform_5, window_bounds = array<i64: 2, 1, 32>}, {pipeline_mode = #tpu.pipeline_mode<synchronous>, transform_indices = @transform_6, window_bounds = array<i64: 2, 1, 32>}, {pipeline_mode = #tpu.pipeline_mode<synchronous>, transform_indices = @transform_7, window_bounds = array<i64: 2, 32, 64>}, {pipeline_mode = #tpu.pipeline_mode<synchronous>, transform_indices = @transform_8, window_bounds = array<i64: 2, 1, 64>}, {pipeline_mode = #tpu.pipeline_mode<synchronous>, transform_indices = @transform_9, window_bounds = array<i64: 2, 64, 32>}, {pipeline_mode = #tpu.pipeline_mode<synchronous>, transform_indices = @transform_10, window_bounds = array<i64: 2, 1, 32>}, {pipeline_mode = #tpu.pipeline_mode<synchronous>, transform_indices = @transform_11, window_bounds = array<i64: 2, 1, 32>}, {pipeline_mode = #tpu.pipeline_mode<synchronous>, transform_indices = @transform_12, window_bounds = array<i64: 2, 1, 32>}, {pipeline_mode = #tpu.pipeline_mode<synchronous>, transform_indices = @transform_13, window_bounds = array<i64: 2, 8, 32>}]} {
    %c0 = arith.constant 0 : index
    %c0_0 = arith.constant 0 : index
    %c0_1 = arith.constant 0 : index
    %0 = vector.load %arg1[%c0, %c0_0, %c0_1] : memref<2x8x32xf32, #tpu.memory_space<vmem>>, vector<2x8x32xf32>
    %c0_2 = arith.constant 0 : index
    %c0_3 = arith.constant 0 : index
    %1 = vector.load %arg2[%c0_2, %c0_3] : memref<8x32xf32, #tpu.memory_space<vmem>>, vector<8x32xf32>
    %2 = vector.shape_cast %1 : vector<8x32xf32> to vector<1x8x32xf32>
    %3 = vector.broadcast %2 : vector<1x8x32xf32> to vector<2x8x32xf32>
    %4 = arith.addf %0, %3 : vector<2x8x32xf32>
    %5 = vector.shape_cast %4 : vector<2x8x32xf32> to vector<16x32xf32>
    %c0_4 = arith.constant 0 : index
    %c0_5 = arith.constant 0 : index
    %c0_6 = arith.constant 0 : index
    %6 = vector.load %arg3[%c0_4, %c0_5, %c0_6] : memref<2x32x96xf32, #tpu.memory_space<vmem>>, vector<1x32x96xf32>
    %7 = vector.shape_cast %6 : vector<1x32x96xf32> to vector<32x96xf32>
    %cst = arith.constant dense<0.000000e+00> : vector<16x96xf32>
    %8 = tpu.matmul %5, %7, %cst {dimension_numbers = #tpu.dot_dimension_numbers<[1], [0], [0], [1], [0, 0, 1, 1], [], []>} : vector<16x32xf32>, vector<32x96xf32>, vector<16x96xf32> -> vector<16x96xf32>
    %9 = vector.extract_strided_slice %8 {offsets = [0, 0], sizes = [16, 32], strides = [1, 1]} : vector<16x96xf32> to vector<16x32xf32>
    %cst_7 = arith.constant 0.353553385 : f32
    %10 = vector.broadcast %cst_7 : f32 to vector<16x32xf32>
    %11 = arith.mulf %9, %10 : vector<16x32xf32>
    %12 = vector.shape_cast %11 : vector<16x32xf32> to vector<2x8x32xf32>
    %13 = vector.extract_strided_slice %8 {offsets = [0, 32], sizes = [16, 32], strides = [1, 1]} : vector<16x96xf32> to vector<16x32xf32>
    %14 = vector.shape_cast %13 : vector<16x32xf32> to vector<2x8x32xf32>
    %15 = vector.extract_strided_slice %8 {offsets = [0, 64], sizes = [16, 32], strides = [1, 1]} : vector<16x96xf32> to vector<16x32xf32>
    %16 = vector.shape_cast %15 : vector<16x32xf32> to vector<2x8x32xf32>
    %17 = vector.extract_strided_slice %12 {offsets = [0, 0, 0], sizes = [2, 8, 8], strides = [1, 1, 1]} : vector<2x8x32xf32> to vector<2x8x8xf32>
    %18 = vector.extract_strided_slice %14 {offsets = [0, 0, 0], sizes = [2, 8, 8], strides = [1, 1, 1]} : vector<2x8x32xf32> to vector<2x8x8xf32>
    "tpu.trace_start"() <{level = 10 : i32, message = "btd,bsd->bts"}> : () -> ()
    %cst_8 = arith.constant dense<0.000000e+00> : vector<2x8x8xf32>
    %19 = tpu.matmul %17, %18, %cst_8 {dimension_numbers = #tpu.dot_dimension_numbers<[2], [2], [1], [1], [0, 0, 0, 1, 1, 1], [0], [0]>} : vector<2x8x8xf32>, vector<2x8x8xf32>, vector<2x8x8xf32> -> vector<2x8x8xf32>
    "tpu.trace_stop"() : () -> ()
    %cst_9 = arith.constant dense<0xFF800000> : vector<2x8xf32>
    %20 = vector.multi_reduction <maximumf>, %19, %cst_9 [2] : vector<2x8x8xf32> to vector<2x8xf32>
    %21 = vector.shape_cast %20 : vector<2x8xf32> to vector<2x8x1xf32>
    %22 = vector.broadcast %21 : vector<2x8x1xf32> to vector<2x8x8xf32>
    %23 = arith.subf %19, %22 : vector<2x8x8xf32>
    %24 = math.exp %23 : vector<2x8x8xf32>
    %cst_10 = arith.constant dense<0.000000e+00> : vector<2x8xf32>
    %25 = vector.multi_reduction <add>, %24, %cst_10 [2] : vector<2x8x8xf32> to vector<2x8xf32>
    %26 = vector.shape_cast %25 : vector<2x8xf32> to vector<2x8x1xf32>
    %27 = tpu.reciprocal %26 {approx = true} : vector<2x8x1xf32> -> vector<2x8x1xf32>
    %28 = vector.broadcast %27 : vector<2x8x1xf32> to vector<2x8x8xf32>
    %29 = arith.mulf %24, %28 : vector<2x8x8xf32>
    %30 = vector.extract_strided_slice %16 {offsets = [0, 0, 0], sizes = [2, 8, 8], strides = [1, 1, 1]} : vector<2x8x32xf32> to vector<2x8x8xf32>
    "tpu.trace_start"() <{level = 10 : i32, message = "bts,bsd->btd"}> : () -> ()
    %cst_11 = arith.constant dense<0.000000e+00> : vector<2x8x8xf32>
    %31 = tpu.matmul %29, %30, %cst_11 {dimension_numbers = #tpu.dot_dimension_numbers<[2], [1], [1], [2], [0, 0, 0, 1, 1, 2], [0], [0]>} : vector<2x8x8xf32>, vector<2x8x8xf32>, vector<2x8x8xf32> -> vector<2x8x8xf32>
    "tpu.trace_stop"() : () -> ()
    %32 = vector.extract_strided_slice %12 {offsets = [0, 0, 8], sizes = [2, 8, 8], strides = [1, 1, 1]} : vector<2x8x32xf32> to vector<2x8x8xf32>
    %33 = vector.extract_strided_slice %14 {offsets = [0, 0, 8], sizes = [2, 8, 8], strides = [1, 1, 1]} : vector<2x8x32xf32> to vector<2x8x8xf32>
    "tpu.trace_start"() <{level = 10 : i32, message = "btd,bsd->bts"}> : () -> ()
    %cst_12 = arith.constant dense<0.000000e+00> : vector<2x8x8xf32>
    %34 = tpu.matmul %32, %33, %cst_12 {dimension_numbers = #tpu.dot_dimension_numbers<[2], [2], [1], [1], [0, 0, 0, 1, 1, 1], [0], [0]>} : vector<2x8x8xf32>, vector<2x8x8xf32>, vector<2x8x8xf32> -> vector<2x8x8xf32>
    "tpu.trace_stop"() : () -> ()
    %cst_13 = arith.constant dense<0xFF800000> : vector<2x8xf32>
    %35 = vector.multi_reduction <maximumf>, %34, %cst_13 [2] : vector<2x8x8xf32> to vector<2x8xf32>
    %36 = vector.shape_cast %35 : vector<2x8xf32> to vector<2x8x1xf32>
    %37 = vector.broadcast %36 : vector<2x8x1xf32> to vector<2x8x8xf32>
    %38 = arith.subf %34, %37 : vector<2x8x8xf32>
    %39 = math.exp %38 : vector<2x8x8xf32>
    %cst_14 = arith.constant dense<0.000000e+00> : vector<2x8xf32>
    %40 = vector.multi_reduction <add>, %39, %cst_14 [2] : vector<2x8x8xf32> to vector<2x8xf32>
    %41 = vector.shape_cast %40 : vector<2x8xf32> to vector<2x8x1xf32>
    %42 = tpu.reciprocal %41 {approx = true} : vector<2x8x1xf32> -> vector<2x8x1xf32>
    %43 = vector.broadcast %42 : vector<2x8x1xf32> to vector<2x8x8xf32>
    %44 = arith.mulf %39, %43 : vector<2x8x8xf32>
    %45 = vector.extract_strided_slice %16 {offsets = [0, 0, 8], sizes = [2, 8, 8], strides = [1, 1, 1]} : vector<2x8x32xf32> to vector<2x8x8xf32>
    "tpu.trace_start"() <{level = 10 : i32, message = "bts,bsd->btd"}> : () -> ()
    %cst_15 = arith.constant dense<0.000000e+00> : vector<2x8x8xf32>
    %46 = tpu.matmul %44, %45, %cst_15 {dimension_numbers = #tpu.dot_dimension_numbers<[2], [1], [1], [2], [0, 0, 0, 1, 1, 2], [0], [0]>} : vector<2x8x8xf32>, vector<2x8x8xf32>, vector<2x8x8xf32> -> vector<2x8x8xf32>
    "tpu.trace_stop"() : () -> ()
    %47 = vector.extract_strided_slice %12 {offsets = [0, 0, 16], sizes = [2, 8, 8], strides = [1, 1, 1]} : vector<2x8x32xf32> to vector<2x8x8xf32>
    %48 = vector.extract_strided_slice %14 {offsets = [0, 0, 16], sizes = [2, 8, 8], strides = [1, 1, 1]} : vector<2x8x32xf32> to vector<2x8x8xf32>
    "tpu.trace_start"() <{level = 10 : i32, message = "btd,bsd->bts"}> : () -> ()
    %cst_16 = arith.constant dense<0.000000e+00> : vector<2x8x8xf32>
    %49 = tpu.matmul %47, %48, %cst_16 {dimension_numbers = #tpu.dot_dimension_numbers<[2], [2], [1], [1], [0, 0, 0, 1, 1, 1], [0], [0]>} : vector<2x8x8xf32>, vector<2x8x8xf32>, vector<2x8x8xf32> -> vector<2x8x8xf32>
    "tpu.trace_stop"() : () -> ()
    %cst_17 = arith.constant dense<0xFF800000> : vector<2x8xf32>
    %50 = vector.multi_reduction <maximumf>, %49, %cst_17 [2] : vector<2x8x8xf32> to vector<2x8xf32>
    %51 = vector.shape_cast %50 : vector<2x8xf32> to vector<2x8x1xf32>
    %52 = vector.broadcast %51 : vector<2x8x1xf32> to vector<2x8x8xf32>
    %53 = arith.subf %49, %52 : vector<2x8x8xf32>
    %54 = math.exp %53 : vector<2x8x8xf32>
    %cst_18 = arith.constant dense<0.000000e+00> : vector<2x8xf32>
    %55 = vector.multi_reduction <add>, %54, %cst_18 [2] : vector<2x8x8xf32> to vector<2x8xf32>
    %56 = vector.shape_cast %55 : vector<2x8xf32> to vector<2x8x1xf32>
    %57 = tpu.reciprocal %56 {approx = true} : vector<2x8x1xf32> -> vector<2x8x1xf32>
    %58 = vector.broadcast %57 : vector<2x8x1xf32> to vector<2x8x8xf32>
    %59 = arith.mulf %54, %58 : vector<2x8x8xf32>
    %60 = vector.extract_strided_slice %16 {offsets = [0, 0, 16], sizes = [2, 8, 8], strides = [1, 1, 1]} : vector<2x8x32xf32> to vector<2x8x8xf32>
    "tpu.trace_start"() <{level = 10 : i32, message = "bts,bsd->btd"}> : () -> ()
    %cst_19 = arith.constant dense<0.000000e+00> : vector<2x8x8xf32>
    %61 = tpu.matmul %59, %60, %cst_19 {dimension_numbers = #tpu.dot_dimension_numbers<[2], [1], [1], [2], [0, 0, 0, 1, 1, 2], [0], [0]>} : vector<2x8x8xf32>, vector<2x8x8xf32>, vector<2x8x8xf32> -> vector<2x8x8xf32>
    "tpu.trace_stop"() : () -> ()
    %62 = vector.extract_strided_slice %12 {offsets = [0, 0, 24], sizes = [2, 8, 8], strides = [1, 1, 1]} : vector<2x8x32xf32> to vector<2x8x8xf32>
    %63 = vector.extract_strided_slice %14 {offsets = [0, 0, 24], sizes = [2, 8, 8], strides = [1, 1, 1]} : vector<2x8x32xf32> to vector<2x8x8xf32>
    "tpu.trace_start"() <{level = 10 : i32, message = "btd,bsd->bts"}> : () -> ()
    %cst_20 = arith.constant dense<0.000000e+00> : vector<2x8x8xf32>
    %64 = tpu.matmul %62, %63, %cst_20 {dimension_numbers = #tpu.dot_dimension_numbers<[2], [2], [1], [1], [0, 0, 0, 1, 1, 1], [0], [0]>} : vector<2x8x8xf32>, vector<2x8x8xf32>, vector<2x8x8xf32> -> vector<2x8x8xf32>
    "tpu.trace_stop"() : () -> ()
    %cst_21 = arith.constant dense<0xFF800000> : vector<2x8xf32>
    %65 = vector.multi_reduction <maximumf>, %64, %cst_21 [2] : vector<2x8x8xf32> to vector<2x8xf32>
    %66 = vector.shape_cast %65 : vector<2x8xf32> to vector<2x8x1xf32>
    %67 = vector.broadcast %66 : vector<2x8x1xf32> to vector<2x8x8xf32>
    %68 = arith.subf %64, %67 : vector<2x8x8xf32>
    %69 = math.exp %68 : vector<2x8x8xf32>
    %cst_22 = arith.constant dense<0.000000e+00> : vector<2x8xf32>
    %70 = vector.multi_reduction <add>, %69, %cst_22 [2] : vector<2x8x8xf32> to vector<2x8xf32>
    %71 = vector.shape_cast %70 : vector<2x8xf32> to vector<2x8x1xf32>
    %72 = tpu.reciprocal %71 {approx = true} : vector<2x8x1xf32> -> vector<2x8x1xf32>
    %73 = vector.broadcast %72 : vector<2x8x1xf32> to vector<2x8x8xf32>
    %74 = arith.mulf %69, %73 : vector<2x8x8xf32>
    %75 = vector.extract_strided_slice %16 {offsets = [0, 0, 24], sizes = [2, 8, 8], strides = [1, 1, 1]} : vector<2x8x32xf32> to vector<2x8x8xf32>
    "tpu.trace_start"() <{level = 10 : i32, message = "bts,bsd->btd"}> : () -> ()
    %cst_23 = arith.constant dense<0.000000e+00> : vector<2x8x8xf32>
    %76 = tpu.matmul %74, %75, %cst_23 {dimension_numbers = #tpu.dot_dimension_numbers<[2], [1], [1], [2], [0, 0, 0, 1, 1, 2], [0], [0]>} : vector<2x8x8xf32>, vector<2x8x8xf32>, vector<2x8x8xf32> -> vector<2x8x8xf32>
    "tpu.trace_stop"() : () -> ()
    %77 = tpu.concatenate %31, %46, %61, %76 in 2 : vector<2x8x8xf32>, vector<2x8x8xf32>, vector<2x8x8xf32>, vector<2x8x8xf32> -> vector<2x8x32xf32>
    %78 = vector.shape_cast %77 : vector<2x8x32xf32> to vector<16x32xf32>
    %c0_24 = arith.constant 0 : index
    %c0_25 = arith.constant 0 : index
    %c0_26 = arith.constant 0 : index
    %79 = vector.load %arg4[%c0_24, %c0_25, %c0_26] : memref<2x32x32xf32, #tpu.memory_space<vmem>>, vector<1x32x32xf32>
    %80 = vector.shape_cast %79 : vector<1x32x32xf32> to vector<32x32xf32>
    %cst_27 = arith.constant dense<0.000000e+00> : vector<16x32xf32>
    %81 = tpu.matmul %78, %80, %cst_27 {dimension_numbers = #tpu.dot_dimension_numbers<[1], [0], [0], [1], [0, 0, 1, 1], [], []>} : vector<16x32xf32>, vector<32x32xf32>, vector<16x32xf32> -> vector<16x32xf32>
    %c0_28 = arith.constant 0 : index
    %c0_29 = arith.constant 0 : index
    %c0_30 = arith.constant 0 : index
    %82 = vector.load %arg5[%c0_28, %c0_29, %c0_30] : memref<2x1x32xf32, #tpu.memory_space<vmem>>, vector<1x1x32xf32>
    %83 = vector.shape_cast %82 : vector<1x1x32xf32> to vector<1x32xf32>
    %84 = vector.broadcast %83 : vector<1x32xf32> to vector<16x32xf32>
    %85 = arith.addf %81, %84 : vector<16x32xf32>
    %86 = arith.addf %85, %5 : vector<16x32xf32>
    %cst_31 = arith.constant dense<0.000000e+00> : vector<16xf32>
    %87 = vector.multi_reduction <add>, %86, %cst_31 [1] : vector<16x32xf32> to vector<16xf32>
    %88 = vector.shape_cast %87 : vector<16xf32> to vector<16x1xf32>
    %cst_32 = arith.constant 3.200000e+01 : f32
    %89 = vector.broadcast %cst_32 : f32 to vector<16x1xf32>
    %90 = arith.divf %88, %89 : vector<16x1xf32>
    %91 = vector.broadcast %90 : vector<16x1xf32> to vector<16x32xf32>
    %92 = arith.subf %86, %91 : vector<16x32xf32>
    %93 = arith.mulf %92, %92 : vector<16x32xf32>
    %cst_33 = arith.constant dense<0.000000e+00> : vector<16xf32>
    %94 = vector.multi_reduction <add>, %93, %cst_33 [1] : vector<16x32xf32> to vector<16xf32>
    %95 = vector.shape_cast %94 : vector<16xf32> to vector<16x1xf32>
    %cst_34 = arith.constant 3.200000e+01 : f32
    %96 = vector.broadcast %cst_34 : f32 to vector<16x1xf32>
    %97 = arith.divf %95, %96 : vector<16x1xf32>
    %98 = vector.broadcast %90 : vector<16x1xf32> to vector<16x32xf32>
    %99 = arith.subf %86, %98 : vector<16x32xf32>
    %cst_35 = arith.constant 9.99999974E-6 : f32
    %100 = vector.broadcast %cst_35 : f32 to vector<16x1xf32>
    %101 = arith.addf %97, %100 : vector<16x1xf32>
    %102 = math.rsqrt %101 : vector<16x1xf32>
    %103 = vector.broadcast %102 : vector<16x1xf32> to vector<16x32xf32>
    %104 = arith.mulf %99, %103 : vector<16x32xf32>
    %c0_36 = arith.constant 0 : index
    %c0_37 = arith.constant 0 : index
    %c0_38 = arith.constant 0 : index
    %105 = vector.load %arg6[%c0_36, %c0_37, %c0_38] : memref<2x1x32xf32, #tpu.memory_space<vmem>>, vector<1x1x32xf32>
    %106 = vector.shape_cast %105 : vector<1x1x32xf32> to vector<1x32xf32>
    %107 = vector.broadcast %106 : vector<1x32xf32> to vector<16x32xf32>
    %108 = arith.mulf %104, %107 : vector<16x32xf32>
    %c0_39 = arith.constant 0 : index
    %c0_40 = arith.constant 0 : index
    %c0_41 = arith.constant 0 : index
    %109 = vector.load %arg7[%c0_39, %c0_40, %c0_41] : memref<2x1x32xf32, #tpu.memory_space<vmem>>, vector<1x1x32xf32>
    %110 = vector.shape_cast %109 : vector<1x1x32xf32> to vector<1x32xf32>
    %111 = vector.broadcast %110 : vector<1x32xf32> to vector<16x32xf32>
    %112 = arith.addf %108, %111 : vector<16x32xf32>
    %c0_42 = arith.constant 0 : index
    %c0_43 = arith.constant 0 : index
    %c0_44 = arith.constant 0 : index
    %113 = vector.load %arg8[%c0_42, %c0_43, %c0_44] : memref<2x32x64xf32, #tpu.memory_space<vmem>>, vector<1x32x64xf32>
    %114 = vector.shape_cast %113 : vector<1x32x64xf32> to vector<32x64xf32>
    %cst_45 = arith.constant dense<0.000000e+00> : vector<16x64xf32>
    %115 = tpu.matmul %112, %114, %cst_45 {dimension_numbers = #tpu.dot_dimension_numbers<[1], [0], [0], [1], [0, 0, 1, 1], [], []>} : vector<16x32xf32>, vector<32x64xf32>, vector<16x64xf32> -> vector<16x64xf32>
    %c0_46 = arith.constant 0 : index
    %c0_47 = arith.constant 0 : index
    %c0_48 = arith.constant 0 : index
    %116 = vector.load %arg9[%c0_46, %c0_47, %c0_48] : memref<2x1x64xf32, #tpu.memory_space<vmem>>, vector<1x1x64xf32>
    %117 = vector.shape_cast %116 : vector<1x1x64xf32> to vector<1x64xf32>
    %118 = vector.broadcast %117 : vector<1x64xf32> to vector<16x64xf32>
    %119 = arith.addf %115, %118 : vector<16x64xf32>
    %cst_49 = arith.constant 0.000000e+00 : f32
    %120 = vector.broadcast %cst_49 : f32 to vector<16x64xf32>
    %121 = arith.maximumf %119, %120 : vector<16x64xf32>
    %c0_50 = arith.constant 0 : index
    %c0_51 = arith.constant 0 : index
    %c0_52 = arith.constant 0 : index
    %122 = vector.load %arg10[%c0_50, %c0_51, %c0_52] : memref<2x64x32xf32, #tpu.memory_space<vmem>>, vector<1x64x32xf32>
    %123 = vector.shape_cast %122 : vector<1x64x32xf32> to vector<64x32xf32>
    %cst_53 = arith.constant dense<0.000000e+00> : vector<16x32xf32>
    %124 = tpu.matmul %121, %123, %cst_53 {dimension_numbers = #tpu.dot_dimension_numbers<[1], [0], [0], [1], [0, 0, 1, 1], [], []>} : vector<16x64xf32>, vector<64x32xf32>, vector<16x32xf32> -> vector<16x32xf32>
    %c0_54 = arith.constant 0 : index
    %c0_55 = arith.constant 0 : index
    %c0_56 = arith.constant 0 : index
    %125 = vector.load %arg11[%c0_54, %c0_55, %c0_56] : memref<2x1x32xf32, #tpu.memory_space<vmem>>, vector<1x1x32xf32>
    %126 = vector.shape_cast %125 : vector<1x1x32xf32> to vector<1x32xf32>
    %127 = vector.broadcast %126 : vector<1x32xf32> to vector<16x32xf32>
    %128 = arith.addf %124, %127 : vector<16x32xf32>
    %129 = arith.addf %128, %112 : vector<16x32xf32>
    %cst_57 = arith.constant dense<0.000000e+00> : vector<16xf32>
    %130 = vector.multi_reduction <add>, %129, %cst_57 [1] : vector<16x32xf32> to vector<16xf32>
    %131 = vector.shape_cast %130 : vector<16xf32> to vector<16x1xf32>
    %cst_58 = arith.constant 3.200000e+01 : f32
    %132 = vector.broadcast %cst_58 : f32 to vector<16x1xf32>
    %133 = arith.divf %131, %132 : vector<16x1xf32>
    %134 = vector.broadcast %133 : vector<16x1xf32> to vector<16x32xf32>
    %135 = arith.subf %129, %134 : vector<16x32xf32>
    %136 = arith.mulf %135, %135 : vector<16x32xf32>
    %cst_59 = arith.constant dense<0.000000e+00> : vector<16xf32>
    %137 = vector.multi_reduction <add>, %136, %cst_59 [1] : vector<16x32xf32> to vector<16xf32>
    %138 = vector.shape_cast %137 : vector<16xf32> to vector<16x1xf32>
    %cst_60 = arith.constant 3.200000e+01 : f32
    %139 = vector.broadcast %cst_60 : f32 to vector<16x1xf32>
    %140 = arith.divf %138, %139 : vector<16x1xf32>
    %141 = vector.broadcast %133 : vector<16x1xf32> to vector<16x32xf32>
    %142 = arith.subf %129, %141 : vector<16x32xf32>
    %cst_61 = arith.constant 9.99999974E-6 : f32
    %143 = vector.broadcast %cst_61 : f32 to vector<16x1xf32>
    %144 = arith.addf %140, %143 : vector<16x1xf32>
    %145 = math.rsqrt %144 : vector<16x1xf32>
    %146 = vector.broadcast %145 : vector<16x1xf32> to vector<16x32xf32>
    %147 = arith.mulf %142, %146 : vector<16x32xf32>
    %c0_62 = arith.constant 0 : index
    %c0_63 = arith.constant 0 : index
    %c0_64 = arith.constant 0 : index
    %148 = vector.load %arg12[%c0_62, %c0_63, %c0_64] : memref<2x1x32xf32, #tpu.memory_space<vmem>>, vector<1x1x32xf32>
    %149 = vector.shape_cast %148 : vector<1x1x32xf32> to vector<1x32xf32>
    %150 = vector.broadcast %149 : vector<1x32xf32> to vector<16x32xf32>
    %151 = arith.mulf %147, %150 : vector<16x32xf32>
    %c0_65 = arith.constant 0 : index
    %c0_66 = arith.constant 0 : index
    %c0_67 = arith.constant 0 : index
    %152 = vector.load %arg13[%c0_65, %c0_66, %c0_67] : memref<2x1x32xf32, #tpu.memory_space<vmem>>, vector<1x1x32xf32>
    %153 = vector.shape_cast %152 : vector<1x1x32xf32> to vector<1x32xf32>
    %154 = vector.broadcast %153 : vector<1x32xf32> to vector<16x32xf32>
    %155 = arith.addf %151, %154 : vector<16x32xf32>
    %c1 = arith.constant 1 : index
    %c0_68 = arith.constant 0 : index
    %c0_69 = arith.constant 0 : index
    %156 = vector.load %arg3[%c1, %c0_68, %c0_69] : memref<2x32x96xf32, #tpu.memory_space<vmem>>, vector<1x32x96xf32>
    %157 = vector.shape_cast %156 : vector<1x32x96xf32> to vector<32x96xf32>
    %cst_70 = arith.constant dense<0.000000e+00> : vector<16x96xf32>
    %158 = tpu.matmul %155, %157, %cst_70 {dimension_numbers = #tpu.dot_dimension_numbers<[1], [0], [0], [1], [0, 0, 1, 1], [], []>} : vector<16x32xf32>, vector<32x96xf32>, vector<16x96xf32> -> vector<16x96xf32>
    %159 = vector.extract_strided_slice %158 {offsets = [0, 0], sizes = [16, 32], strides = [1, 1]} : vector<16x96xf32> to vector<16x32xf32>
    %cst_71 = arith.constant 0.353553385 : f32
    %160 = vector.broadcast %cst_71 : f32 to vector<16x32xf32>
    %161 = arith.mulf %159, %160 : vector<16x32xf32>
    %162 = vector.shape_cast %161 : vector<16x32xf32> to vector<2x8x32xf32>
    %163 = vector.extract_strided_slice %158 {offsets = [0, 32], sizes = [16, 32], strides = [1, 1]} : vector<16x96xf32> to vector<16x32xf32>
    %164 = vector.shape_cast %163 : vector<16x32xf32> to vector<2x8x32xf32>
    %165 = vector.extract_strided_slice %158 {offsets = [0, 64], sizes = [16, 32], strides = [1, 1]} : vector<16x96xf32> to vector<16x32xf32>
    %166 = vector.shape_cast %165 : vector<16x32xf32> to vector<2x8x32xf32>
    %167 = vector.extract_strided_slice %162 {offsets = [0, 0, 0], sizes = [2, 8, 8], strides = [1, 1, 1]} : vector<2x8x32xf32> to vector<2x8x8xf32>
    %168 = vector.extract_strided_slice %164 {offsets = [0, 0, 0], sizes = [2, 8, 8], strides = [1, 1, 1]} : vector<2x8x32xf32> to vector<2x8x8xf32>
    "tpu.trace_start"() <{level = 10 : i32, message = "btd,bsd->bts"}> : () -> ()
    %cst_72 = arith.constant dense<0.000000e+00> : vector<2x8x8xf32>
    %169 = tpu.matmul %167, %168, %cst_72 {dimension_numbers = #tpu.dot_dimension_numbers<[2], [2], [1], [1], [0, 0, 0, 1, 1, 1], [0], [0]>} : vector<2x8x8xf32>, vector<2x8x8xf32>, vector<2x8x8xf32> -> vector<2x8x8xf32>
    "tpu.trace_stop"() : () -> ()
    %cst_73 = arith.constant dense<0xFF800000> : vector<2x8xf32>
    %170 = vector.multi_reduction <maximumf>, %169, %cst_73 [2] : vector<2x8x8xf32> to vector<2x8xf32>
    %171 = vector.shape_cast %170 : vector<2x8xf32> to vector<2x8x1xf32>
    %172 = vector.broadcast %171 : vector<2x8x1xf32> to vector<2x8x8xf32>
    %173 = arith.subf %169, %172 : vector<2x8x8xf32>
    %174 = math.exp %173 : vector<2x8x8xf32>
    %cst_74 = arith.constant dense<0.000000e+00> : vector<2x8xf32>
    %175 = vector.multi_reduction <add>, %174, %cst_74 [2] : vector<2x8x8xf32> to vector<2x8xf32>
    %176 = vector.shape_cast %175 : vector<2x8xf32> to vector<2x8x1xf32>
    %177 = tpu.reciprocal %176 {approx = true} : vector<2x8x1xf32> -> vector<2x8x1xf32>
    %178 = vector.broadcast %177 : vector<2x8x1xf32> to vector<2x8x8xf32>
    %179 = arith.mulf %174, %178 : vector<2x8x8xf32>
    %180 = vector.extract_strided_slice %166 {offsets = [0, 0, 0], sizes = [2, 8, 8], strides = [1, 1, 1]} : vector<2x8x32xf32> to vector<2x8x8xf32>
    "tpu.trace_start"() <{level = 10 : i32, message = "bts,bsd->btd"}> : () -> ()
    %cst_75 = arith.constant dense<0.000000e+00> : vector<2x8x8xf32>
    %181 = tpu.matmul %179, %180, %cst_75 {dimension_numbers = #tpu.dot_dimension_numbers<[2], [1], [1], [2], [0, 0, 0, 1, 1, 2], [0], [0]>} : vector<2x8x8xf32>, vector<2x8x8xf32>, vector<2x8x8xf32> -> vector<2x8x8xf32>
    "tpu.trace_stop"() : () -> ()
    %182 = vector.extract_strided_slice %162 {offsets = [0, 0, 8], sizes = [2, 8, 8], strides = [1, 1, 1]} : vector<2x8x32xf32> to vector<2x8x8xf32>
    %183 = vector.extract_strided_slice %164 {offsets = [0, 0, 8], sizes = [2, 8, 8], strides = [1, 1, 1]} : vector<2x8x32xf32> to vector<2x8x8xf32>
    "tpu.trace_start"() <{level = 10 : i32, message = "btd,bsd->bts"}> : () -> ()
    %cst_76 = arith.constant dense<0.000000e+00> : vector<2x8x8xf32>
    %184 = tpu.matmul %182, %183, %cst_76 {dimension_numbers = #tpu.dot_dimension_numbers<[2], [2], [1], [1], [0, 0, 0, 1, 1, 1], [0], [0]>} : vector<2x8x8xf32>, vector<2x8x8xf32>, vector<2x8x8xf32> -> vector<2x8x8xf32>
    "tpu.trace_stop"() : () -> ()
    %cst_77 = arith.constant dense<0xFF800000> : vector<2x8xf32>
    %185 = vector.multi_reduction <maximumf>, %184, %cst_77 [2] : vector<2x8x8xf32> to vector<2x8xf32>
    %186 = vector.shape_cast %185 : vector<2x8xf32> to vector<2x8x1xf32>
    %187 = vector.broadcast %186 : vector<2x8x1xf32> to vector<2x8x8xf32>
    %188 = arith.subf %184, %187 : vector<2x8x8xf32>
    %189 = math.exp %188 : vector<2x8x8xf32>
    %cst_78 = arith.constant dense<0.000000e+00> : vector<2x8xf32>
    %190 = vector.multi_reduction <add>, %189, %cst_78 [2] : vector<2x8x8xf32> to vector<2x8xf32>
    %191 = vector.shape_cast %190 : vector<2x8xf32> to vector<2x8x1xf32>
    %192 = tpu.reciprocal %191 {approx = true} : vector<2x8x1xf32> -> vector<2x8x1xf32>
    %193 = vector.broadcast %192 : vector<2x8x1xf32> to vector<2x8x8xf32>
    %194 = arith.mulf %189, %193 : vector<2x8x8xf32>
    %195 = vector.extract_strided_slice %166 {offsets = [0, 0, 8], sizes = [2, 8, 8], strides = [1, 1, 1]} : vector<2x8x32xf32> to vector<2x8x8xf32>
    "tpu.trace_start"() <{level = 10 : i32, message = "bts,bsd->btd"}> : () -> ()
    %cst_79 = arith.constant dense<0.000000e+00> : vector<2x8x8xf32>
    %196 = tpu.matmul %194, %195, %cst_79 {dimension_numbers = #tpu.dot_dimension_numbers<[2], [1], [1], [2], [0, 0, 0, 1, 1, 2], [0], [0]>} : vector<2x8x8xf32>, vector<2x8x8xf32>, vector<2x8x8xf32> -> vector<2x8x8xf32>
    "tpu.trace_stop"() : () -> ()
    %197 = vector.extract_strided_slice %162 {offsets = [0, 0, 16], sizes = [2, 8, 8], strides = [1, 1, 1]} : vector<2x8x32xf32> to vector<2x8x8xf32>
    %198 = vector.extract_strided_slice %164 {offsets = [0, 0, 16], sizes = [2, 8, 8], strides = [1, 1, 1]} : vector<2x8x32xf32> to vector<2x8x8xf32>
    "tpu.trace_start"() <{level = 10 : i32, message = "btd,bsd->bts"}> : () -> ()
    %cst_80 = arith.constant dense<0.000000e+00> : vector<2x8x8xf32>
    %199 = tpu.matmul %197, %198, %cst_80 {dimension_numbers = #tpu.dot_dimension_numbers<[2], [2], [1], [1], [0, 0, 0, 1, 1, 1], [0], [0]>} : vector<2x8x8xf32>, vector<2x8x8xf32>, vector<2x8x8xf32> -> vector<2x8x8xf32>
    "tpu.trace_stop"() : () -> ()
    %cst_81 = arith.constant dense<0xFF800000> : vector<2x8xf32>
    %200 = vector.multi_reduction <maximumf>, %199, %cst_81 [2] : vector<2x8x8xf32> to vector<2x8xf32>
    %201 = vector.shape_cast %200 : vector<2x8xf32> to vector<2x8x1xf32>
    %202 = vector.broadcast %201 : vector<2x8x1xf32> to vector<2x8x8xf32>
    %203 = arith.subf %199, %202 : vector<2x8x8xf32>
    %204 = math.exp %203 : vector<2x8x8xf32>
    %cst_82 = arith.constant dense<0.000000e+00> : vector<2x8xf32>
    %205 = vector.multi_reduction <add>, %204, %cst_82 [2] : vector<2x8x8xf32> to vector<2x8xf32>
    %206 = vector.shape_cast %205 : vector<2x8xf32> to vector<2x8x1xf32>
    %207 = tpu.reciprocal %206 {approx = true} : vector<2x8x1xf32> -> vector<2x8x1xf32>
    %208 = vector.broadcast %207 : vector<2x8x1xf32> to vector<2x8x8xf32>
    %209 = arith.mulf %204, %208 : vector<2x8x8xf32>
    %210 = vector.extract_strided_slice %166 {offsets = [0, 0, 16], sizes = [2, 8, 8], strides = [1, 1, 1]} : vector<2x8x32xf32> to vector<2x8x8xf32>
    "tpu.trace_start"() <{level = 10 : i32, message = "bts,bsd->btd"}> : () -> ()
    %cst_83 = arith.constant dense<0.000000e+00> : vector<2x8x8xf32>
    %211 = tpu.matmul %209, %210, %cst_83 {dimension_numbers = #tpu.dot_dimension_numbers<[2], [1], [1], [2], [0, 0, 0, 1, 1, 2], [0], [0]>} : vector<2x8x8xf32>, vector<2x8x8xf32>, vector<2x8x8xf32> -> vector<2x8x8xf32>
    "tpu.trace_stop"() : () -> ()
    %212 = vector.extract_strided_slice %162 {offsets = [0, 0, 24], sizes = [2, 8, 8], strides = [1, 1, 1]} : vector<2x8x32xf32> to vector<2x8x8xf32>
    %213 = vector.extract_strided_slice %164 {offsets = [0, 0, 24], sizes = [2, 8, 8], strides = [1, 1, 1]} : vector<2x8x32xf32> to vector<2x8x8xf32>
    "tpu.trace_start"() <{level = 10 : i32, message = "btd,bsd->bts"}> : () -> ()
    %cst_84 = arith.constant dense<0.000000e+00> : vector<2x8x8xf32>
    %214 = tpu.matmul %212, %213, %cst_84 {dimension_numbers = #tpu.dot_dimension_numbers<[2], [2], [1], [1], [0, 0, 0, 1, 1, 1], [0], [0]>} : vector<2x8x8xf32>, vector<2x8x8xf32>, vector<2x8x8xf32> -> vector<2x8x8xf32>
    "tpu.trace_stop"() : () -> ()
    %cst_85 = arith.constant dense<0xFF800000> : vector<2x8xf32>
    %215 = vector.multi_reduction <maximumf>, %214, %cst_85 [2] : vector<2x8x8xf32> to vector<2x8xf32>
    %216 = vector.shape_cast %215 : vector<2x8xf32> to vector<2x8x1xf32>
    %217 = vector.broadcast %216 : vector<2x8x1xf32> to vector<2x8x8xf32>
    %218 = arith.subf %214, %217 : vector<2x8x8xf32>
    %219 = math.exp %218 : vector<2x8x8xf32>
    %cst_86 = arith.constant dense<0.000000e+00> : vector<2x8xf32>
    %220 = vector.multi_reduction <add>, %219, %cst_86 [2] : vector<2x8x8xf32> to vector<2x8xf32>
    %221 = vector.shape_cast %220 : vector<2x8xf32> to vector<2x8x1xf32>
    %222 = tpu.reciprocal %221 {approx = true} : vector<2x8x1xf32> -> vector<2x8x1xf32>
    %223 = vector.broadcast %222 : vector<2x8x1xf32> to vector<2x8x8xf32>
    %224 = arith.mulf %219, %223 : vector<2x8x8xf32>
    %225 = vector.extract_strided_slice %166 {offsets = [0, 0, 24], sizes = [2, 8, 8], strides = [1, 1, 1]} : vector<2x8x32xf32> to vector<2x8x8xf32>
    "tpu.trace_start"() <{level = 10 : i32, message = "bts,bsd->btd"}> : () -> ()
    %cst_87 = arith.constant dense<0.000000e+00> : vector<2x8x8xf32>
    %226 = tpu.matmul %224, %225, %cst_87 {dimension_numbers = #tpu.dot_dimension_numbers<[2], [1], [1], [2], [0, 0, 0, 1, 1, 2], [0], [0]>} : vector<2x8x8xf32>, vector<2x8x8xf32>, vector<2x8x8xf32> -> vector<2x8x8xf32>
    "tpu.trace_stop"() : () -> ()
    %227 = tpu.concatenate %181, %196, %211, %226 in 2 : vector<2x8x8xf32>, vector<2x8x8xf32>, vector<2x8x8xf32>, vector<2x8x8xf32> -> vector<2x8x32xf32>
    %228 = vector.shape_cast %227 : vector<2x8x32xf32> to vector<16x32xf32>
    %c1_88 = arith.constant 1 : index
    %c0_89 = arith.constant 0 : index
    %c0_90 = arith.constant 0 : index
    %229 = vector.load %arg4[%c1_88, %c0_89, %c0_90] : memref<2x32x32xf32, #tpu.memory_space<vmem>>, vector<1x32x32xf32>
    %230 = vector.shape_cast %229 : vector<1x32x32xf32> to vector<32x32xf32>
    %cst_91 = arith.constant dense<0.000000e+00> : vector<16x32xf32>
    %231 = tpu.matmul %228, %230, %cst_91 {dimension_numbers = #tpu.dot_dimension_numbers<[1], [0], [0], [1], [0, 0, 1, 1], [], []>} : vector<16x32xf32>, vector<32x32xf32>, vector<16x32xf32> -> vector<16x32xf32>
    %c1_92 = arith.constant 1 : index
    %c0_93 = arith.constant 0 : index
    %c0_94 = arith.constant 0 : index
    %232 = vector.load %arg5[%c1_92, %c0_93, %c0_94] : memref<2x1x32xf32, #tpu.memory_space<vmem>>, vector<1x1x32xf32>
    %233 = vector.shape_cast %232 : vector<1x1x32xf32> to vector<1x32xf32>
    %234 = vector.broadcast %233 : vector<1x32xf32> to vector<16x32xf32>
    %235 = arith.addf %231, %234 : vector<16x32xf32>
    %236 = arith.addf %235, %155 : vector<16x32xf32>
    %cst_95 = arith.constant dense<0.000000e+00> : vector<16xf32>
    %237 = vector.multi_reduction <add>, %236, %cst_95 [1] : vector<16x32xf32> to vector<16xf32>
    %238 = vector.shape_cast %237 : vector<16xf32> to vector<16x1xf32>
    %cst_96 = arith.constant 3.200000e+01 : f32
    %239 = vector.broadcast %cst_96 : f32 to vector<16x1xf32>
    %240 = arith.divf %238, %239 : vector<16x1xf32>
    %241 = vector.broadcast %240 : vector<16x1xf32> to vector<16x32xf32>
    %242 = arith.subf %236, %241 : vector<16x32xf32>
    %243 = arith.mulf %242, %242 : vector<16x32xf32>
    %cst_97 = arith.constant dense<0.000000e+00> : vector<16xf32>
    %244 = vector.multi_reduction <add>, %243, %cst_97 [1] : vector<16x32xf32> to vector<16xf32>
    %245 = vector.shape_cast %244 : vector<16xf32> to vector<16x1xf32>
    %cst_98 = arith.constant 3.200000e+01 : f32
    %246 = vector.broadcast %cst_98 : f32 to vector<16x1xf32>
    %247 = arith.divf %245, %246 : vector<16x1xf32>
    %248 = vector.broadcast %240 : vector<16x1xf32> to vector<16x32xf32>
    %249 = arith.subf %236, %248 : vector<16x32xf32>
    %cst_99 = arith.constant 9.99999974E-6 : f32
    %250 = vector.broadcast %cst_99 : f32 to vector<16x1xf32>
    %251 = arith.addf %247, %250 : vector<16x1xf32>
    %252 = math.rsqrt %251 : vector<16x1xf32>
    %253 = vector.broadcast %252 : vector<16x1xf32> to vector<16x32xf32>
    %254 = arith.mulf %249, %253 : vector<16x32xf32>
    %c1_100 = arith.constant 1 : index
    %c0_101 = arith.constant 0 : index
    %c0_102 = arith.constant 0 : index
    %255 = vector.load %arg6[%c1_100, %c0_101, %c0_102] : memref<2x1x32xf32, #tpu.memory_space<vmem>>, vector<1x1x32xf32>
    %256 = vector.shape_cast %255 : vector<1x1x32xf32> to vector<1x32xf32>
    %257 = vector.broadcast %256 : vector<1x32xf32> to vector<16x32xf32>
    %258 = arith.mulf %254, %257 : vector<16x32xf32>
    %c1_103 = arith.constant 1 : index
    %c0_104 = arith.constant 0 : index
    %c0_105 = arith.constant 0 : index
    %259 = vector.load %arg7[%c1_103, %c0_104, %c0_105] : memref<2x1x32xf32, #tpu.memory_space<vmem>>, vector<1x1x32xf32>
    %260 = vector.shape_cast %259 : vector<1x1x32xf32> to vector<1x32xf32>
    %261 = vector.broadcast %260 : vector<1x32xf32> to vector<16x32xf32>
    %262 = arith.addf %258, %261 : vector<16x32xf32>
    %c1_106 = arith.constant 1 : index
    %c0_107 = arith.constant 0 : index
    %c0_108 = arith.constant 0 : index
    %263 = vector.load %arg8[%c1_106, %c0_107, %c0_108] : memref<2x32x64xf32, #tpu.memory_space<vmem>>, vector<1x32x64xf32>
    %264 = vector.shape_cast %263 : vector<1x32x64xf32> to vector<32x64xf32>
    %cst_109 = arith.constant dense<0.000000e+00> : vector<16x64xf32>
    %265 = tpu.matmul %262, %264, %cst_109 {dimension_numbers = #tpu.dot_dimension_numbers<[1], [0], [0], [1], [0, 0, 1, 1], [], []>} : vector<16x32xf32>, vector<32x64xf32>, vector<16x64xf32> -> vector<16x64xf32>
    %c1_110 = arith.constant 1 : index
    %c0_111 = arith.constant 0 : index
    %c0_112 = arith.constant 0 : index
    %266 = vector.load %arg9[%c1_110, %c0_111, %c0_112] : memref<2x1x64xf32, #tpu.memory_space<vmem>>, vector<1x1x64xf32>
    %267 = vector.shape_cast %266 : vector<1x1x64xf32> to vector<1x64xf32>
    %268 = vector.broadcast %267 : vector<1x64xf32> to vector<16x64xf32>
    %269 = arith.addf %265, %268 : vector<16x64xf32>
    %cst_113 = arith.constant 0.000000e+00 : f32
    %270 = vector.broadcast %cst_113 : f32 to vector<16x64xf32>
    %271 = arith.maximumf %269, %270 : vector<16x64xf32>
    %c1_114 = arith.constant 1 : index
    %c0_115 = arith.constant 0 : index
    %c0_116 = arith.constant 0 : index
    %272 = vector.load %arg10[%c1_114, %c0_115, %c0_116] : memref<2x64x32xf32, #tpu.memory_space<vmem>>, vector<1x64x32xf32>
    %273 = vector.shape_cast %272 : vector<1x64x32xf32> to vector<64x32xf32>
    %cst_117 = arith.constant dense<0.000000e+00> : vector<16x32xf32>
    %274 = tpu.matmul %271, %273, %cst_117 {dimension_numbers = #tpu.dot_dimension_numbers<[1], [0], [0], [1], [0, 0, 1, 1], [], []>} : vector<16x64xf32>, vector<64x32xf32>, vector<16x32xf32> -> vector<16x32xf32>
    %c1_118 = arith.constant 1 : index
    %c0_119 = arith.constant 0 : index
    %c0_120 = arith.constant 0 : index
    %275 = vector.load %arg11[%c1_118, %c0_119, %c0_120] : memref<2x1x32xf32, #tpu.memory_space<vmem>>, vector<1x1x32xf32>
    %276 = vector.shape_cast %275 : vector<1x1x32xf32> to vector<1x32xf32>
    %277 = vector.broadcast %276 : vector<1x32xf32> to vector<16x32xf32>
    %278 = arith.addf %274, %277 : vector<16x32xf32>
    %279 = arith.addf %278, %262 : vector<16x32xf32>
    %cst_121 = arith.constant dense<0.000000e+00> : vector<16xf32>
    %280 = vector.multi_reduction <add>, %279, %cst_121 [1] : vector<16x32xf32> to vector<16xf32>
    %281 = vector.shape_cast %280 : vector<16xf32> to vector<16x1xf32>
    %cst_122 = arith.constant 3.200000e+01 : f32
    %282 = vector.broadcast %cst_122 : f32 to vector<16x1xf32>
    %283 = arith.divf %281, %282 : vector<16x1xf32>
    %284 = vector.broadcast %283 : vector<16x1xf32> to vector<16x32xf32>
    %285 = arith.subf %279, %284 : vector<16x32xf32>
    %286 = arith.mulf %285, %285 : vector<16x32xf32>
    %cst_123 = arith.constant dense<0.000000e+00> : vector<16xf32>
    %287 = vector.multi_reduction <add>, %286, %cst_123 [1] : vector<16x32xf32> to vector<16xf32>
    %288 = vector.shape_cast %287 : vector<16xf32> to vector<16x1xf32>
    %cst_124 = arith.constant 3.200000e+01 : f32
    %289 = vector.broadcast %cst_124 : f32 to vector<16x1xf32>
    %290 = arith.divf %288, %289 : vector<16x1xf32>
    %291 = vector.broadcast %283 : vector<16x1xf32> to vector<16x32xf32>
    %292 = arith.subf %279, %291 : vector<16x32xf32>
    %cst_125 = arith.constant 9.99999974E-6 : f32
    %293 = vector.broadcast %cst_125 : f32 to vector<16x1xf32>
    %294 = arith.addf %290, %293 : vector<16x1xf32>
    %295 = math.rsqrt %294 : vector<16x1xf32>
    %296 = vector.broadcast %295 : vector<16x1xf32> to vector<16x32xf32>
    %297 = arith.mulf %292, %296 : vector<16x32xf32>
    %c1_126 = arith.constant 1 : index
    %c0_127 = arith.constant 0 : index
    %c0_128 = arith.constant 0 : index
    %298 = vector.load %arg12[%c1_126, %c0_127, %c0_128] : memref<2x1x32xf32, #tpu.memory_space<vmem>>, vector<1x1x32xf32>
    %299 = vector.shape_cast %298 : vector<1x1x32xf32> to vector<1x32xf32>
    %300 = vector.broadcast %299 : vector<1x32xf32> to vector<16x32xf32>
    %301 = arith.mulf %297, %300 : vector<16x32xf32>
    %c1_129 = arith.constant 1 : index
    %c0_130 = arith.constant 0 : index
    %c0_131 = arith.constant 0 : index
    %302 = vector.load %arg13[%c1_129, %c0_130, %c0_131] : memref<2x1x32xf32, #tpu.memory_space<vmem>>, vector<1x1x32xf32>
    %303 = vector.shape_cast %302 : vector<1x1x32xf32> to vector<1x32xf32>
    %304 = vector.broadcast %303 : vector<1x32xf32> to vector<16x32xf32>
    %305 = arith.addf %301, %304 : vector<16x32xf32>
    %306 = vector.shape_cast %305 : vector<16x32xf32> to vector<2x8x32xf32>
    %c0_132 = arith.constant 0 : index
    %c0_133 = arith.constant 0 : index
    %c0_134 = arith.constant 0 : index
    %307 = vector.load %arg14[%c0_132, %c0_133, %c0_134] : memref<2x8x32xf32, #tpu.memory_space<vmem>>, vector<2x8x32xf32>
    tpu.vector_store %arg14[%c0_132, %c0_133, %c0_134], %306 {strides = array<i32>} : memref<2x8x32xf32, #tpu.memory_space<vmem>>, vector<2x8x32xf32>,
    return
  }
  func.func @transform_0(%arg0: i32) -> (i32, i32, i32) {
    %c0_i32 = arith.constant 0 : i32
    %c0_i32_0 = arith.constant 0 : i32
    %c0_i32_1 = arith.constant 0 : i32
    %c0_i32_2 = arith.constant 0 : i32
    return %c0_i32, %c0_i32_0, %c0_i32_1 : i32, i32, i32
  }
  func.func @transform_1(%arg0: i32) -> (i32, i32) {
    %c0_i32 = arith.constant 0 : i32
    %c0_i32_0 = arith.constant 0 : i32
    %c0_i32_1 = arith.constant 0 : i32
    return %c0_i32, %c0_i32_0 : i32, i32
  }
  func.func @transform_2(%arg0: i32) -> (i32, i32, i32) {
    %c0_i32 = arith.constant 0 : i32
    %c0_i32_0 = arith.constant 0 : i32
    %c0_i32_1 = arith.constant 0 : i32
    %c0_i32_2 = arith.constant 0 : i32
    return %c0_i32, %c0_i32_0, %c0_i32_1 : i32, i32, i32
  }
  func.func @transform_3(%arg0: i32) -> (i32, i32, i32) {
    %c0_i32 = arith.constant 0 : i32
    %c0_i32_0 = arith.constant 0 : i32
    %c0_i32_1 = arith.constant 0 : i32
    %c0_i32_2 = arith.constant 0 : i32
    return %c0_i32, %c0_i32_0, %c0_i32_1 : i32, i32, i32
  }
  func.func @transform_4(%arg0: i32) -> (i32, i32, i32) {
    %c0_i32 = arith.constant 0 : i32
    %c0_i32_0 = arith.constant 0 : i32
    %c0_i32_1 = arith.constant 0 : i32
    %c0_i32_2 = arith.constant 0 : i32
    return %c0_i32, %c0_i32_0, %c0_i32_1 : i32, i32, i32
  }
  func.func @transform_5(%arg0: i32) -> (i32, i32, i32) {
    %c0_i32 = arith.constant 0 : i32
    %c0_i32_0 = arith.constant 0 : i32
    %c0_i32_1 = arith.constant 0 : i32
    %c0_i32_2 = arith.constant 0 : i32
    return %c0_i32, %c0_i32_0, %c0_i32_1 : i32, i32, i32
  }
  func.func @transform_6(%arg0: i32) -> (i32, i32, i32) {
    %c0_i32 = arith.constant 0 : i32
    %c0_i32_0 = arith.constant 0 : i32
    %c0_i32_1 = arith.constant 0 : i32
    %c0_i32_2 = arith.constant 0 : i32
    return %c0_i32, %c0_i32_0, %c0_i32_1 : i32, i32, i32
  }
  func.func @transform_7(%arg0: i32) -> (i32, i32, i32) {
    %c0_i32 = arith.constant 0 : i32
    %c0_i32_0 = arith.constant 0 : i32
    %c0_i32_1 = arith.constant 0 : i32
    %c0_i32_2 = arith.constant 0 : i32
    return %c0_i32, %c0_i32_0, %c0_i32_1 : i32, i32, i32
  }
  func.func @transform_8(%arg0: i32) -> (i32, i32, i32) {
    %c0_i32 = arith.constant 0 : i32
    %c0_i32_0 = arith.constant 0 : i32
    %c0_i32_1 = arith.constant 0 : i32
    %c0_i32_2 = arith.constant 0 : i32
    return %c0_i32, %c0_i32_0, %c0_i32_1 : i32, i32, i32
  }
  func.func @transform_9(%arg0: i32) -> (i32, i32, i32) {
    %c0_i32 = arith.constant 0 : i32
    %c0_i32_0 = arith.constant 0 : i32
    %c0_i32_1 = arith.constant 0 : i32
    %c0_i32_2 = arith.constant 0 : i32
    return %c0_i32, %c0_i32_0, %c0_i32_1 : i32, i32, i32
  }
  func.func @transform_10(%arg0: i32) -> (i32, i32, i32) {
    %c0_i32 = arith.constant 0 : i32
    %c0_i32_0 = arith.constant 0 : i32
    %c0_i32_1 = arith.constant 0 : i32
    %c0_i32_2 = arith.constant 0 : i32
    return %c0_i32, %c0_i32_0, %c0_i32_1 : i32, i32, i32
  }
  func.func @transform_11(%arg0: i32) -> (i32, i32, i32) {
    %c0_i32 = arith.constant 0 : i32
    %c0_i32_0 = arith.constant 0 : i32
    %c0_i32_1 = arith.constant 0 : i32
    %c0_i32_2 = arith.constant 0 : i32
    return %c0_i32, %c0_i32_0, %c0_i32_1 : i32, i32, i32
  }
  func.func @transform_12(%arg0: i32) -> (i32, i32, i32) {
    %c0_i32 = arith.constant 0 : i32
    %c0_i32_0 = arith.constant 0 : i32
    %c0_i32_1 = arith.constant 0 : i32
    %c0_i32_2 = arith.constant 0 : i32
    return %c0_i32, %c0_i32_0, %c0_i32_1 : i32, i32, i32
  }
  func.func @transform_13(%arg0: i32) -> (i32, i32, i32) {
    %c0_i32 = arith.constant 0 : i32
    %c0_i32_0 = arith.constant 0 : i32
    %c0_i32_1 = arith.constant 0 : i32
    %c0_i32_2 = arith.constant 0 : i32
    return %c0_i32, %c0_i32_0, %c0_i32_1 : i32, i32, i32
  }
}

</mosaic_0001>

<llo_original>
// kernel: tpu_custom_call.1
$region0: #{tpu_custom_call.1}
  #allocation0 [shape = 'u32[]', space=smem, size = 0x4, offset = 0x4, fixed_abs, tag = 'smem constant byte address 0x4 - core index']
  #allocation1 [shape = 'u32[144,128]{1,0:T(1,128)}', space=vmem, size = 0x12000, scoped, tag = 'internal scratch']
  %s0 = inlined_call_operand.hbm [shape: f32[2,8,32], index: 0, kind: input, shape index: {}]
  %s1 = inlined_call_operand.hbm [shape: f32[8,32], index: 1, kind: input, shape index: {}]
  %s2 = inlined_call_operand.vmem [shape: f32[2,32,96], index: 2, kind: input, shape index: {}]
  %s3 = inlined_call_operand.vmem [shape: f32[2,32,32], index: 3, kind: input, shape index: {}]
  %s4 = inlined_call_operand.vmem [shape: f32[2,1,32], index: 4, kind: input, shape index: {}]
  %s5 = inlined_call_operand.vmem [shape: f32[2,1,32], index: 5, kind: input, shape index: {}]
  %s6 = inlined_call_operand.vmem [shape: f32[2,1,32], index: 6, kind: input, shape index: {}]
  %s7 = inlined_call_operand.vmem [shape: f32[2,32,64], index: 7, kind: input, shape index: {}]
  %s8 = inlined_call_operand.vmem [shape: f32[2,1,64], index: 8, kind: input, shape index: {}]
  %s9 = inlined_call_operand.vmem [shape: f32[2,64,32], index: 9, kind: input, shape index: {}]
  %s10 = inlined_call_operand.vmem [shape: f32[2,1,32], index: 10, kind: input, shape index: {}]
  %s11 = inlined_call_operand.vmem [shape: f32[2,1,32], index: 11, kind: input, shape index: {}]
  %s12 = inlined_call_operand.vmem [shape: f32[2,1,32], index: 12, kind: input, shape index: {}]
  %s13 = inlined_call_operand.hbm [shape: f32[2,8,32], index: 13, kind: output, shape index: {}]
  %s14 = sld [smem:[#allocation0]]
  $region70: #{tpu_custom_call.1} parent=0
    _
  %s16 = ssub.s32 1, %s14
  %s17 = scalar_select 0, %s16, %s14
  $region1: #{tpu_custom_call.1} parent=0
    #allocation2 [shape = 'u8[8192]{0}', space=vmem, size = 0x2000, scoped, tag = 'input window, operand 0, single buffered']
    #allocation3 [shape = 's32[1]{0}', space=sflag, size = 0x4, scoped, tag = 'scoped memory for tpu_custom_call.1']
    #allocation4 [shape = 's32[1]{0}', space=sflag, size = 0x4, scoped, tag = 'scoped memory for tpu_custom_call.1']
    #allocation5 [shape = 'u8[4096]{0}', space=vmem, size = 0x1000, scoped, tag = 'input window, operand 1, single buffered']
    #allocation6 [shape = 's32[1]{0}', space=sflag, size = 0x4, scoped, tag = 'scoped memory for tpu_custom_call.1']
    #allocation7 [shape = 'u8[8192]{0}', space=vmem, size = 0x2000, scoped, tag = 'output window, operand 0, single buffered']
    %18 = vsyncpa [#allocation3], 0
    %19 = vsyncpa [#allocation6], 0
    %20 = vsyncpa [#allocation4], 0
    // Predicated region
    $region2: #{tpu_custom_call.1} parent=1 // pred_check
      _
    $region3: #{tpu_custom_call.1} parent=1 // pred_check_branch
      %22 = sbr.rel (0) target = $region5
    $region4: #{tpu_custom_call.1} parent=1 // pred_region
      %s24 = ssub.s32 256, 256
      %25 = vsyncadd [#allocation3], %s24
      %s26 = sshll.u32 [#allocation2], 4
      %s27 = int_to_ptr.vmem [resolvable:$true] %s26
      %32 = dma.hbm_to_vmem [thread:$0]  %s0, 256, %s27, [#allocation3], 128, 128, 8
    $region5: #{tpu_custom_call.1} parent=1 // pred_fallthru
      _
    // Predicated region
    $region6: #{tpu_custom_call.1} parent=1 // pred_check
      _
    $region7: #{tpu_custom_call.1} parent=1 // pred_check_branch
      %34 = sbr.rel (0) target = $region9
    $region8: #{tpu_custom_call.1} parent=1 // pred_region
      %s36 = ssub.s32 128, 128
      %37 = vsyncadd [#allocation6], %s36
      %s39 = sshll.u32 [#allocation5], 4
      %s40 = int_to_ptr.vmem [resolvable:$true] %s39
      %42 = dma.hbm_to_vmem [thread:$0]  %s1, 128, %s40, [#allocation6]
    $region9: #{tpu_custom_call.1} parent=1 // pred_fallthru
      _
    // Predicated region
    $region10: #{tpu_custom_call.1} parent=1 // pred_check
      _
    $region11: #{tpu_custom_call.1} parent=1 // pred_check_branch
      %44 = sbr.rel (0) target = $region13
    $region12: #{tpu_custom_call.1} parent=1 // pred_region
      _
    $region13: #{tpu_custom_call.1} parent=1 // pred_fallthru
      _
    // Predicated region
    $region14: #{tpu_custom_call.1} parent=1 // pred_check
      _
    $region15: #{tpu_custom_call.1} parent=1 // pred_check_branch
      %46 = sbr.rel (0) target = $region17
    $region16: #{tpu_custom_call.1} parent=1 // pred_region
      _
    $region17: #{tpu_custom_call.1} parent=1 // pred_fallthru
      _
    // Predicated region
    $region18: #{tpu_custom_call.1} parent=1 // pred_check
      _
    $region19: #{tpu_custom_call.1} parent=1 // pred_check_branch
      %48 = sbr.rel (0) target = $region21
    $region20: #{tpu_custom_call.1} parent=1 // pred_region
      _
    $region21: #{tpu_custom_call.1} parent=1 // pred_fallthru
      _
    // Predicated region
    $region22: #{tpu_custom_call.1} parent=1 // pred_check
      _
    $region23: #{tpu_custom_call.1} parent=1 // pred_check_branch
      %50 = sbr.rel (0) target = $region25
    $region24: #{tpu_custom_call.1} parent=1 // pred_region
      _
    $region25: #{tpu_custom_call.1} parent=1 // pred_fallthru
      _
    // Predicated region
    $region26: #{tpu_custom_call.1} parent=1 // pred_check
      _
    $region27: #{tpu_custom_call.1} parent=1 // pred_check_branch
      %52 = sbr.rel (0) target = $region29
    $region28: #{tpu_custom_call.1} parent=1 // pred_region
      _
    $region29: #{tpu_custom_call.1} parent=1 // pred_fallthru
      _
    // Predicated region
    $region30: #{tpu_custom_call.1} parent=1 // pred_check
      _
    $region31: #{tpu_custom_call.1} parent=1 // pred_check_branch
      %54 = sbr.rel (0) target = $region33
    $region32: #{tpu_custom_call.1} parent=1 // pred_region
      _
    $region33: #{tpu_custom_call.1} parent=1 // pred_fallthru
      _
    // Predicated region
    $region34: #{tpu_custom_call.1} parent=1 // pred_check
      _
    $region35: #{tpu_custom_call.1} parent=1 // pred_check_branch
      %56 = sbr.rel (0) target = $region37
    $region36: #{tpu_custom_call.1} parent=1 // pred_region
      _
    $region37: #{tpu_custom_call.1} parent=1 // pred_fallthru
      _
    // Predicated region
    $region38: #{tpu_custom_call.1} parent=1 // pred_check
      _
    $region39: #{tpu_custom_call.1} parent=1 // pred_check_branch
      %58 = sbr.rel (0) target = $region41
    $region40: #{tpu_custom_call.1} parent=1 // pred_region
      _
    $region41: #{tpu_custom_call.1} parent=1 // pred_fallthru
      _
    // Predicated region
    $region42: #{tpu_custom_call.1} parent=1 // pred_check
      _
    $region43: #{tpu_custom_call.1} parent=1 // pred_check_branch
      %60 = sbr.rel (0) target = $region45
    $region44: #{tpu_custom_call.1} parent=1 // pred_region
      _
    $region45: #{tpu_custom_call.1} parent=1 // pred_fallthru
      _
    // Predicated region
    $region46: #{tpu_custom_call.1} parent=1 // pred_check
      _
    $region47: #{tpu_custom_call.1} parent=1 // pred_check_branch
      %62 = sbr.rel (0) target = $region49
    $region48: #{tpu_custom_call.1} parent=1 // pred_region
      _
    $region49: #{tpu_custom_call.1} parent=1 // pred_fallthru
      _
    // Predicated region
    $region50: #{tpu_custom_call.1} parent=1 // pred_check
      _
    $region51: #{tpu_custom_call.1} parent=1 // pred_check_branch
      %64 = sbr.rel (0) target = $region53
    $region52: #{tpu_custom_call.1} parent=1 // pred_region
      _
    $region53: #{tpu_custom_call.1} parent=1 // pred_fallthru
      _
    // Predicated region
    $region54: #{tpu_custom_call.1} parent=1 // pred_check
      _
    $region55: #{tpu_custom_call.1} parent=1 // pred_check_branch
      %66 = sbr.rel (0) target = $region57
    $region56: #{tpu_custom_call.1} parent=1 // pred_region
      %67 = dma.done [#allocation3], 256
    $region57: #{tpu_custom_call.1} parent=1 // pred_fallthru
      _
    // Predicated region
    $region58: #{tpu_custom_call.1} parent=1 // pred_check
      _
    $region59: #{tpu_custom_call.1} parent=1 // pred_check_branch
      %69 = sbr.rel (0) target = $region61
    $region60: #{tpu_custom_call.1} parent=1 // pred_region
      %70 = dma.done [#allocation6], 128
    $region61: #{tpu_custom_call.1} parent=1 // pred_fallthru
      _
    %v71 = vld [vmem:[#allocation2] sm:$0xff]
    %v72 = vld [vmem:[#allocation2 + $0x8] sm:$0xff]
    %v73 = vld [vmem:[#allocation5] sm:$0xff]
    %v74 = vadd.f32 %v71, %v73
    %v75 = vadd.f32 %v72, %v73
    %v76 = vld [vmem:[%s2] sm:$0xff]
    %v77 = vld [vmem:[%s2 + $0x8] sm:$0xff]
    %v78 = vld [vmem:[%s2 + $0x10] sm:$0xff]
    %v79 = vld [vmem:[%s2 + $0x18] sm:$0xff]
    %vm80 = vcmask 261120
    %v82 = vsel %vm80, %v74, 0
    %v85 = vsel %vm80, %v75, 0
    %87 = vmatprep.subr.mxu0 0.0
    %88 = vmatpush1.msra.mxu0 %v76
    %89 = vmatprep.subr.mxu0 0.0
    %90 = vmatpush1.msra.mxu0 %v77
    %91 = vmatprep.subr.mxu0 0.0
    %92 = vmatpush1.msra.mxu0 %v78
    %93 = vmatprep.subr.mxu0 0.0
    %94 = vmatpush1.msra.mxu0 %v79
    %95 = vmatprep.subr.mxu0 0.0
    %96 = vmatpush1.msra.mxu0 0.0
    %97 = vmatprep.subr.mxu0 0.0
    %98 = vmatpush1.msra.mxu0 0.0
    %99 = vmatprep.subr.mxu0 0.0
    %100 = vmatpush1.msra.mxu0 0.0
    %101 = vmatprep.subr.mxu0 0.0
    %102 = vmatpush1.msra.mxu0 0.0
    %103 = vmatprep.subr.mxu0 0.0
    %104 = vmatpush1.msra.mxu0 0.0
    %105 = vmatprep.subr.mxu0 0.0
    %106 = vmatpush1.msra.mxu0 0.0
    %107 = vmatprep.subr.mxu0 0.0
    %108 = vmatpush1.msra.mxu0 0.0
    %109 = vmatprep.subr.mxu0 0.0
    %110 = vmatpush1.msra.mxu0 0.0
    %111 = vmatprep.subr.mxu0 0.0
    %112 = vmatpush1.msra.mxu0 0.0
    %113 = vmatprep.subr.mxu0 0.0
    %114 = vmatpush1.msra.mxu0 0.0
    %115 = vmatprep.subr.mxu0 0.0
    %116 = vmatpush1.msra.mxu0 0.0
    %117 = vmatprep.subr.mxu0 0.0
    %118 = vmatpush1.msra.mxu0 0.0
    %119 = vmatprep.subr.mxu0 0.0
    %120 = vmatpush1.msra.mxu0 0.0
    %121 = vmatprep.subr.mxu0 0.0
    %122 = vmatpush1.msra.mxu0 0.0
    %123 = vmatprep.subr.mxu0 0.0
    %124 = vmatpush1.msra.mxu0 0.0
    %125 = vmatprep.subr.mxu0 0.0
    %126 = vmatpush1.msra.mxu0 0.0
    %127 = vmatprep.subr.mxu0 0.0
    %128 = vmatpush1.msra.mxu0 0.0
    %129 = vmatprep.subr.mxu0 0.0
    %130 = vmatpush1.msra.mxu0 0.0
    %131 = vmatprep.subr.mxu0 0.0
    %132 = vmatpush1.msra.mxu0 0.0
    %133 = vmatprep.subr.mxu0 0.0
    %134 = vmatpush1.msra.mxu0 0.0
    %135 = vmatprep.subr.mxu0 0.0
    %136 = vmatpush1.msra.mxu0 0.0
    %137 = vmatprep.subr.mxu0 0.0
    %138 = vmatpush1.msra.mxu0 0.0
    %139 = vmatprep.subr.mxu0 0.0
    %140 = vmatpush1.msra.mxu0 0.0
    %141 = vmatprep.subr.mxu0 0.0
    %142 = vmatpush1.msra.mxu0 0.0
    %143 = vmatprep.subr.mxu0 0.0
    %144 = vmatpush1.msra.mxu0 0.0
    %145 = vmatprep.subr.mxu0 0.0
    %146 = vmatpush1.msra.mxu0 0.0
    %147 = vmatprep.subr.mxu0 0.0
    %148 = vmatpush1.msra.mxu0 0.0
    %149 = vmatprep.subr.mxu0 0.0
    %150 = vmatpush1.msra.mxu0 0.0
    %151 = vmatprep.mubr.f32.mxu0 0.0
    %152 = vmatmul.mubr.f32.gmra.mrb[0].mxu0 %v82
    %v153 = vpop.f32.mrb[0].mxu0
    %v154 = vadd.f32 0.0, %v153
    %v155 = vpop.f32.mrb[0].mxu0
    %156 = vmatprep.mubr.f32.mxu0 0.0
    %157 = vmatmul.mubr.f32.gmra.mrb[0].mxu0 %v85
    %v158 = vpop.f32.mrb[0].mxu0
    %v159 = vadd.f32 0.0, %v158
    %v160 = vpop.f32.mrb[0].mxu0
    %161 = vdwg.mxu0
    %v162 = vmul.f32 %v154, 0.35355338
    %v163 = vmul.f32 %v159, 0.35355338
    %165 = vrot.lane.b32.xlu0 %v154, 96
    %v166 = vpop.permute.xlu0 %165
    %vm167 = vcmask 64512
    %v169 = vsel %vm167, %v162, 0
    %v171 = vsel %vm167, %v166, 0
    %173 = vmatprep.subr.mxu0 0.0
    %174 = vmatpush1.xpose.msra.mxu0 %v171
    %175 = vmatprep.subr.mxu0 0.0
    %176 = vmatpush1.xpose.msra.mxu0 0.0
    %177 = vmatprep.subr.mxu0 0.0
    %178 = vmatpush1.xpose.msra.mxu0 0.0
    %179 = vmatprep.subr.mxu0 0.0
    %180 = vmatpush1.xpose.msra.mxu0 0.0
    %181 = vmatprep.subr.mxu0 0.0
    %182 = vmatpush1.xpose.msra.mxu0 0.0
    %183 = vmatprep.subr.mxu0 0.0
    %184 = vmatpush1.xpose.msra.mxu0 0.0
    %185 = vmatprep.subr.mxu0 0.0
    %186 = vmatpush1.xpose.msra.mxu0 0.0
    %187 = vmatprep.subr.mxu0 0.0
    %188 = vmatpush1.xpose.msra.mxu0 0.0
    %189 = vmatprep.subr.mxu0 0.0
    %190 = vmatpush1.xpose.msra.mxu0 0.0
    %191 = vmatprep.subr.mxu0 0.0
    %192 = vmatpush1.xpose.msra.mxu0 0.0
    %193 = vmatprep.subr.mxu0 0.0
    %194 = vmatpush1.xpose.msra.mxu0 0.0
    %195 = vmatprep.subr.mxu0 0.0
    %196 = vmatpush1.xpose.msra.mxu0 0.0
    %197 = vmatprep.subr.mxu0 0.0
    %198 = vmatpush1.xpose.msra.mxu0 0.0
    %199 = vmatprep.subr.mxu0 0.0
    %200 = vmatpush1.xpose.msra.mxu0 0.0
    %201 = vmatprep.subr.mxu0 0.0
    %202 = vmatpush1.xpose.msra.mxu0 0.0
    %203 = vmatprep.subr.mxu0 0.0
    %204 = vmatpush1.xpose.msra.mxu0 0.0
    %205 = vmatprep.subr.mxu0 0.0
    %206 = vmatpush1.xpose.msra.mxu0 0.0
    %207 = vmatprep.subr.mxu0 0.0
    %208 = vmatpush1.xpose.msra.mxu0 0.0
    %209 = vmatprep.subr.mxu0 0.0
    %210 = vmatpush1.xpose.msra.mxu0 0.0
    %211 = vmatprep.subr.mxu0 0.0
    %212 = vmatpush1.xpose.msra.mxu0 0.0
    %213 = vmatprep.subr.mxu0 0.0
    %214 = vmatpush1.xpose.msra.mxu0 0.0
    %215 = vmatprep.subr.mxu0 0.0
    %216 = vmatpush1.xpose.msra.mxu0 0.0
    %217 = vmatprep.subr.mxu0 0.0
    %218 = vmatpush1.xpose.msra.mxu0 0.0
    %219 = vmatprep.subr.mxu0 0.0
    %220 = vmatpush1.xpose.msra.mxu0 0.0
    %221 = vmatprep.subr.mxu0 0.0
    %222 = vmatpush1.xpose.msra.mxu0 0.0
    %223 = vmatprep.subr.mxu0 0.0
    %224 = vmatpush1.xpose.msra.mxu0 0.0
    %225 = vmatprep.subr.mxu0 0.0
    %226 = vmatpush1.xpose.msra.mxu0 0.0
    %227 = vmatprep.subr.mxu0 0.0
    %228 = vmatpush1.xpose.msra.mxu0 0.0
    %229 = vmatprep.subr.mxu0 0.0
    %230 = vmatpush1.xpose.msra.mxu0 0.0
    %231 = vmatprep.subr.mxu0 0.0
    %232 = vmatpush1.xpose.msra.mxu0 0.0
    %233 = vmatprep.subr.mxu0 0.0
    %234 = vmatpush1.xpose.msra.mxu0 0.0
    %235 = vmatprep.subr.mxu0 0.0
    %236 = vmatpush1.xpose.msra.mxu0 0.0
    %237 = vmatprep.mubr.f32.mxu0 0.0
    %238 = vmatmul.mubr.f32.gmra.mrb[0].mxu0 %v169
    %v239 = vpop.f32.mrb[0].mxu0
    %v240 = vadd.f32 0.0, %v239
    %v241 = vpop.f32.mrb[0].mxu0
    %242 = vdwg.mxu0
    %244 = vrot.lane.b32.xlu0 %v159, 96
    %v245 = vpop.permute.xlu0 %244
    %v247 = vsel %vm167, %v163, 0
    %v249 = vsel %vm167, %v245, 0
    %251 = vmatprep.subr.mxu0 0.0
    %252 = vmatpush1.xpose.msra.mxu0 %v249
    %253 = vmatprep.subr.mxu0 0.0
    %254 = vmatpush1.xpose.msra.mxu0 0.0
    %255 = vmatprep.subr.mxu0 0.0
    %256 = vmatpush1.xpose.msra.mxu0 0.0
    %257 = vmatprep.subr.mxu0 0.0
    %258 = vmatpush1.xpose.msra.mxu0 0.0
    %259 = vmatprep.subr.mxu0 0.0
    %260 = vmatpush1.xpose.msra.mxu0 0.0
    %261 = vmatprep.subr.mxu0 0.0
    %262 = vmatpush1.xpose.msra.mxu0 0.0
    %263 = vmatprep.subr.mxu0 0.0
    %264 = vmatpush1.xpose.msra.mxu0 0.0
    %265 = vmatprep.subr.mxu0 0.0
    %266 = vmatpush1.xpose.msra.mxu0 0.0
    %267 = vmatprep.subr.mxu0 0.0
    %268 = vmatpush1.xpose.msra.mxu0 0.0
    %269 = vmatprep.subr.mxu0 0.0
    %270 = vmatpush1.xpose.msra.mxu0 0.0
    %271 = vmatprep.subr.mxu0 0.0
    %272 = vmatpush1.xpose.msra.mxu0 0.0
    %273 = vmatprep.subr.mxu0 0.0
    %274 = vmatpush1.xpose.msra.mxu0 0.0
    %275 = vmatprep.subr.mxu0 0.0
    %276 = vmatpush1.xpose.msra.mxu0 0.0
    %277 = vmatprep.subr.mxu0 0.0
    %278 = vmatpush1.xpose.msra.mxu0 0.0
    %279 = vmatprep.subr.mxu0 0.0
    %280 = vmatpush1.xpose.msra.mxu0 0.0
    %281 = vmatprep.subr.mxu0 0.0
    %282 = vmatpush1.xpose.msra.mxu0 0.0
    %283 = vmatprep.subr.mxu0 0.0
    %284 = vmatpush1.xpose.msra.mxu0 0.0
    %285 = vmatprep.subr.mxu0 0.0
    %286 = vmatpush1.xpose.msra.mxu0 0.0
    %287 = vmatprep.subr.mxu0 0.0
    %288 = vmatpush1.xpose.msra.mxu0 0.0
    %289 = vmatprep.subr.mxu0 0.0
    %290 = vmatpush1.xpose.msra.mxu0 0.0
    %291 = vmatprep.subr.mxu0 0.0
    %292 = vmatpush1.xpose.msra.mxu0 0.0
    %293 = vmatprep.subr.mxu0 0.0
    %294 = vmatpush1.xpose.msra.mxu0 0.0
    %295 = vmatprep.subr.mxu0 0.0
    %296 = vmatpush1.xpose.msra.mxu0 0.0
    %297 = vmatprep.subr.mxu0 0.0
    %298 = vmatpush1.xpose.msra.mxu0 0.0
    %299 = vmatprep.subr.mxu0 0.0
    %300 = vmatpush1.xpose.msra.mxu0 0.0
    %301 = vmatprep.subr.mxu0 0.0
    %302 = vmatpush1.xpose.msra.mxu0 0.0
    %303 = vmatprep.subr.mxu0 0.0
    %304 = vmatpush1.xpose.msra.mxu0 0.0
    %305 = vmatprep.subr.mxu0 0.0
    %306 = vmatpush1.xpose.msra.mxu0 0.0
    %307 = vmatprep.subr.mxu0 0.0
    %308 = vmatpush1.xpose.msra.mxu0 0.0
    %309 = vmatprep.subr.mxu0 0.0
    %310 = vmatpush1.xpose.msra.mxu0 0.0
    %311 = vmatprep.subr.mxu0 0.0
    %312 = vmatpush1.xpose.msra.mxu0 0.0
    %313 = vmatprep.subr.mxu0 0.0
    %314 = vmatpush1.xpose.msra.mxu0 0.0
    %315 = vmatprep.mubr.f32.mxu0 0.0
    %316 = vmatmul.mubr.f32.gmra.mrb[0].mxu0 %v247
    %v317 = vpop.f32.mrb[0].mxu0
    %v318 = vadd.f32 0.0, %v317
    %v319 = vpop.f32.mrb[0].mxu0
    %320 = vdwg.mxu0
    %v321 = vsel %vm167, %v240, -inf
    %322 = vmax.xlane.f32.xlu0 %v321
    %v323 = vpop.xlane.xlu0 %322
    %v324 = vsel %vm167, %v318, -inf
    %325 = vmax.xlane.f32.xlu0 %v324
    %v326 = vpop.xlane.xlu0 %325
    %v327 = vsub.f32 %v240, %v323
    %v328 = vsub.f32 %v318, %v326
    %v329 = vmul.f32 %v327, 1.442695
    %v330 = vpow.pop %v329
    %v331 = vmul.f32 %v328, 1.442695
    %v332 = vpow.pop %v331
    %v333 = vsel %vm167, %v330, 0.0
    %334 = vadd.xlane.f32.xlu0 %v333
    %v335 = vpop.xlane.xlu0 %334
    %v336 = vsel %vm167, %v332, 0.0
    %337 = vadd.xlane.f32.xlu0 %v336
    %v338 = vpop.xlane.xlu0 %337
    %v339 = vrcp.pop %v335
    %v340 = vrcp.pop %v338
    %v341 = vmul.f32 %v330, %v339
    %v342 = vmul.f32 %v332, %v340
    %343 = vrot.lane.b32.xlu0 %v154, 64
    %v344 = vpop.permute.xlu0 %343
    %v347 = vsel %vm167, %v341, 0
    %349 = vmatprep.subr.mxu0 0.0
    %350 = vmatpush1.msra.mxu0 %v344
    %351 = vmatprep.subr.mxu0 0.0
    %352 = vmatpush1.msra.mxu0 0.0
    %353 = vmatprep.subr.mxu0 0.0
    %354 = vmatpush1.msra.mxu0 0.0
    %355 = vmatprep.subr.mxu0 0.0
    %356 = vmatpush1.msra.mxu0 0.0
    %357 = vmatprep.subr.mxu0 0.0
    %358 = vmatpush1.msra.mxu0 0.0
    %359 = vmatprep.subr.mxu0 0.0
    %360 = vmatpush1.msra.mxu0 0.0
    %361 = vmatprep.subr.mxu0 0.0
    %362 = vmatpush1.msra.mxu0 0.0
    %363 = vmatprep.subr.mxu0 0.0
    %364 = vmatpush1.msra.mxu0 0.0
    %365 = vmatprep.subr.mxu0 0.0
    %366 = vmatpush1.msra.mxu0 0.0
    %367 = vmatprep.subr.mxu0 0.0
    %368 = vmatpush1.msra.mxu0 0.0
    %369 = vmatprep.subr.mxu0 0.0
    %370 = vmatpush1.msra.mxu0 0.0
    %371 = vmatprep.subr.mxu0 0.0
    %372 = vmatpush1.msra.mxu0 0.0
    %373 = vmatprep.subr.mxu0 0.0
    %374 = vmatpush1.msra.mxu0 0.0
    %375 = vmatprep.subr.mxu0 0.0
    %376 = vmatpush1.msra.mxu0 0.0
    %377 = vmatprep.subr.mxu0 0.0
    %378 = vmatpush1.msra.mxu0 0.0
    %379 = vmatprep.subr.mxu0 0.0
    %380 = vmatpush1.msra.mxu0 0.0
    %381 = vmatprep.subr.mxu0 0.0
    %382 = vmatpush1.msra.mxu0 0.0
    %383 = vmatprep.subr.mxu0 0.0
    %384 = vmatpush1.msra.mxu0 0.0
    %385 = vmatprep.subr.mxu0 0.0
    %386 = vmatpush1.msra.mxu0 0.0
    %387 = vmatprep.subr.mxu0 0.0
    %388 = vmatpush1.msra.mxu0 0.0
    %389 = vmatprep.subr.mxu0 0.0
    %390 = vmatpush1.msra.mxu0 0.0
    %391 = vmatprep.subr.mxu0 0.0
    %392 = vmatpush1.msra.mxu0 0.0
    %393 = vmatprep.subr.mxu0 0.0
    %394 = vmatpush1.msra.mxu0 0.0
    %395 = vmatprep.subr.mxu0 0.0
    %396 = vmatpush1.msra.mxu0 0.0
    %397 = vmatprep.subr.mxu0 0.0
    %398 = vmatpush1.msra.mxu0 0.0
    %399 = vmatprep.subr.mxu0 0.0
    %400 = vmatpush1.msra.mxu0 0.0
    %401 = vmatprep.subr.mxu0 0.0
    %402 = vmatpush1.msra.mxu0 0.0
    %403 = vmatprep.subr.mxu0 0.0
    %404 = vmatpush1.msra.mxu0 0.0
    %405 = vmatprep.subr.mxu0 0.0
    %406 = vmatpush1.msra.mxu0 0.0
    %407 = vmatprep.subr.mxu0 0.0
    %408 = vmatpush1.msra.mxu0 0.0
    %409 = vmatprep.subr.mxu0 0.0
    %410 = vmatpush1.msra.mxu0 0.0
    %411 = vmatprep.subr.mxu0 0.0
    %412 = vmatpush1.msra.mxu0 0.0
    %413 = vmatprep.mubr.f32.mxu0 0.0
    %414 = vmatmul.mubr.f32.gmra.mrb[0].mxu0 %v347
    %v415 = vpop.f32.mrb[0].mxu0
    %v416 = vadd.f32 0.0, %v415
    %v417 = vpop.f32.mrb[0].mxu0
    %418 = vdwg.mxu0
    %419 = vrot.lane.b32.xlu0 %v159, 64
    %v420 = vpop.permute.xlu0 %419
    %v423 = vsel %vm167, %v342, 0
    %425 = vmatprep.subr.mxu0 0.0
    %426 = vmatpush1.msra.mxu0 %v420
    %427 = vmatprep.subr.mxu0 0.0
    %428 = vmatpush1.msra.mxu0 0.0
    %429 = vmatprep.subr.mxu0 0.0
    %430 = vmatpush1.msra.mxu0 0.0
    %431 = vmatprep.subr.mxu0 0.0
    %432 = vmatpush1.msra.mxu0 0.0
    %433 = vmatprep.subr.mxu0 0.0
    %434 = vmatpush1.msra.mxu0 0.0
    %435 = vmatprep.subr.mxu0 0.0
    %436 = vmatpush1.msra.mxu0 0.0
    %437 = vmatprep.subr.mxu0 0.0
    %438 = vmatpush1.msra.mxu0 0.0
    %439 = vmatprep.subr.mxu0 0.0
    %440 = vmatpush1.msra.mxu0 0.0
    %441 = vmatprep.subr.mxu0 0.0
    %442 = vmatpush1.msra.mxu0 0.0
    %443 = vmatprep.subr.mxu0 0.0
    %444 = vmatpush1.msra.mxu0 0.0
    %445 = vmatprep.subr.mxu0 0.0
    %446 = vmatpush1.msra.mxu0 0.0
    %447 = vmatprep.subr.mxu0 0.0
    %448 = vmatpush1.msra.mxu0 0.0
    %449 = vmatprep.subr.mxu0 0.0
    %450 = vmatpush1.msra.mxu0 0.0
    %451 = vmatprep.subr.mxu0 0.0
    %452 = vmatpush1.msra.mxu0 0.0
    %453 = vmatprep.subr.mxu0 0.0
    %454 = vmatpush1.msra.mxu0 0.0
    %455 = vmatprep.subr.mxu0 0.0
    %456 = vmatpush1.msra.mxu0 0.0
    %457 = vmatprep.subr.mxu0 0.0
    %458 = vmatpush1.msra.mxu0 0.0
    %459 = vmatprep.subr.mxu0 0.0
    %460 = vmatpush1.msra.mxu0 0.0
    %461 = vmatprep.subr.mxu0 0.0
    %462 = vmatpush1.msra.mxu0 0.0
    %463 = vmatprep.subr.mxu0 0.0
    %464 = vmatpush1.msra.mxu0 0.0
    %465 = vmatprep.subr.mxu0 0.0
    %466 = vmatpush1.msra.mxu0 0.0
    %467 = vmatprep.subr.mxu0 0.0
    %468 = vmatpush1.msra.mxu0 0.0
    %469 = vmatprep.subr.mxu0 0.0
    %470 = vmatpush1.msra.mxu0 0.0
    %471 = vmatprep.subr.mxu0 0.0
    %472 = vmatpush1.msra.mxu0 0.0
    %473 = vmatprep.subr.mxu0 0.0
    %474 = vmatpush1.msra.mxu0 0.0
    %475 = vmatprep.subr.mxu0 0.0
    %476 = vmatpush1.msra.mxu0 0.0
    %477 = vmatprep.subr.mxu0 0.0
    %478 = vmatpush1.msra.mxu0 0.0
    %479 = vmatprep.subr.mxu0 0.0
    %480 = vmatpush1.msra.mxu0 0.0
    %481 = vmatprep.subr.mxu0 0.0
    %482 = vmatpush1.msra.mxu0 0.0
    %483 = vmatprep.subr.mxu0 0.0
    %484 = vmatpush1.msra.mxu0 0.0
    %485 = vmatprep.subr.mxu0 0.0
    %486 = vmatpush1.msra.mxu0 0.0
    %487 = vmatprep.subr.mxu0 0.0
    %488 = vmatpush1.msra.mxu0 0.0
    %489 = vmatprep.mubr.f32.mxu0 0.0
    %490 = vmatmul.mubr.f32.gmra.mrb[0].mxu0 %v423
    %v491 = vpop.f32.mrb[0].mxu0
    %v492 = vadd.f32 0.0, %v491
    %v493 = vpop.f32.mrb[0].mxu0
    %494 = vdwg.mxu0
    %495 = vrot.lane.b32.xlu0 %v162, 120
    %v496 = vpop.permute.xlu0 %495
    %497 = vrot.lane.b32.xlu0 %v154, 88
    %v498 = vpop.permute.xlu0 %497
    %v499 = vsel %vm167, %v496, 0
    %v501 = vsel %vm167, %v498, 0
    %503 = vmatprep.subr.mxu0 0.0
    %504 = vmatpush1.xpose.msra.mxu0 %v501
    %505 = vmatprep.subr.mxu0 0.0
    %506 = vmatpush1.xpose.msra.mxu0 0.0
    %507 = vmatprep.subr.mxu0 0.0
    %508 = vmatpush1.xpose.msra.mxu0 0.0
    %509 = vmatprep.subr.mxu0 0.0
    %510 = vmatpush1.xpose.msra.mxu0 0.0
    %511 = vmatprep.subr.mxu0 0.0
    %512 = vmatpush1.xpose.msra.mxu0 0.0
    %513 = vmatprep.subr.mxu0 0.0
    %514 = vmatpush1.xpose.msra.mxu0 0.0
    %515 = vmatprep.subr.mxu0 0.0
    %516 = vmatpush1.xpose.msra.mxu0 0.0
    %517 = vmatprep.subr.mxu0 0.0
    %518 = vmatpush1.xpose.msra.mxu0 0.0
    %519 = vmatprep.subr.mxu0 0.0
    %520 = vmatpush1.xpose.msra.mxu0 0.0
    %521 = vmatprep.subr.mxu0 0.0
    %522 = vmatpush1.xpose.msra.mxu0 0.0
    %523 = vmatprep.subr.mxu0 0.0
    %524 = vmatpush1.xpose.msra.mxu0 0.0
    %525 = vmatprep.subr.mxu0 0.0
    %526 = vmatpush1.xpose.msra.mxu0 0.0
    %527 = vmatprep.subr.mxu0 0.0
    %528 = vmatpush1.xpose.msra.mxu0 0.0
    %529 = vmatprep.subr.mxu0 0.0
    %530 = vmatpush1.xpose.msra.mxu0 0.0
    %531 = vmatprep.subr.mxu0 0.0
    %532 = vmatpush1.xpose.msra.mxu0 0.0
    %533 = vmatprep.subr.mxu0 0.0
    %534 = vmatpush1.xpose.msra.mxu0 0.0
    %535 = vmatprep.subr.mxu0 0.0
    %536 = vmatpush1.xpose.msra.mxu0 0.0
    %537 = vmatprep.subr.mxu0 0.0
    %538 = vmatpush1.xpose.msra.mxu0 0.0
    %539 = vmatprep.subr.mxu0 0.0
    %540 = vmatpush1.xpose.msra.mxu0 0.0
    %541 = vmatprep.subr.mxu0 0.0
    %542 = vmatpush1.xpose.msra.mxu0 0.0
    %543 = vmatprep.subr.mxu0 0.0
    %544 = vmatpush1.xpose.msra.mxu0 0.0
    %545 = vmatprep.subr.mxu0 0.0
    %546 = vmatpush1.xpose.msra.mxu0 0.0
    %547 = vmatprep.subr.mxu0 0.0
    %548 = vmatpush1.xpose.msra.mxu0 0.0
    %549 = vmatprep.subr.mxu0 0.0
    %550 = vmatpush1.xpose.msra.mxu0 0.0
    %551 = vmatprep.subr.mxu0 0.0
    %552 = vmatpush1.xpose.msra.mxu0 0.0
    %553 = vmatprep.subr.mxu0 0.0
    %554 = vmatpush1.xpose.msra.mxu0 0.0
    %555 = vmatprep.subr.mxu0 0.0
    %556 = vmatpush1.xpose.msra.mxu0 0.0
    %557 = vmatprep.subr.mxu0 0.0
    %558 = vmatpush1.xpose.msra.mxu0 0.0
    %559 = vmatprep.subr.mxu0 0.0
    %560 = vmatpush1.xpose.msra.mxu0 0.0
    %561 = vmatprep.subr.mxu0 0.0
    %562 = vmatpush1.xpose.msra.mxu0 0.0
    %563 = vmatprep.subr.mxu0 0.0
    %564 = vmatpush1.xpose.msra.mxu0 0.0
    %565 = vmatprep.subr.mxu0 0.0
    %566 = vmatpush1.xpose.msra.mxu0 0.0
    %567 = vmatprep.mubr.f32.mxu0 0.0
    %568 = vmatmul.mubr.f32.gmra.mrb[0].mxu0 %v499
    %v569 = vpop.f32.mrb[0].mxu0
    %v570 = vadd.f32 0.0, %v569
    %v571 = vpop.f32.mrb[0].mxu0
    %572 = vdwg.mxu0
    %573 = vrot.lane.b32.xlu0 %v163, 120
    %v574 = vpop.permute.xlu0 %573
    %575 = vrot.lane.b32.xlu0 %v159, 88
    %v576 = vpop.permute.xlu0 %575
    %v577 = vsel %vm167, %v574, 0
    %v579 = vsel %vm167, %v576, 0
    %581 = vmatprep.subr.mxu0 0.0
    %582 = vmatpush1.xpose.msra.mxu0 %v579
    %583 = vmatprep.subr.mxu0 0.0
    %584 = vmatpush1.xpose.msra.mxu0 0.0
    %585 = vmatprep.subr.mxu0 0.0
    %586 = vmatpush1.xpose.msra.mxu0 0.0
    %587 = vmatprep.subr.mxu0 0.0
    %588 = vmatpush1.xpose.msra.mxu0 0.0
    %589 = vmatprep.subr.mxu0 0.0
    %590 = vmatpush1.xpose.msra.mxu0 0.0
    %591 = vmatprep.subr.mxu0 0.0
    %592 = vmatpush1.xpose.msra.mxu0 0.0
    %593 = vmatprep.subr.mxu0 0.0
    %594 = vmatpush1.xpose.msra.mxu0 0.0
    %595 = vmatprep.subr.mxu0 0.0
    %596 = vmatpush1.xpose.msra.mxu0 0.0
    %597 = vmatprep.subr.mxu0 0.0
    %598 = vmatpush1.xpose.msra.mxu0 0.0
    %599 = vmatprep.subr.mxu0 0.0
    %600 = vmatpush1.xpose.msra.mxu0 0.0
    %601 = vmatprep.subr.mxu0 0.0
    %602 = vmatpush1.xpose.msra.mxu0 0.0
    %603 = vmatprep.subr.mxu0 0.0
    %604 = vmatpush1.xpose.msra.mxu0 0.0
    %605 = vmatprep.subr.mxu0 0.0
    %606 = vmatpush1.xpose.msra.mxu0 0.0
    %607 = vmatprep.subr.mxu0 0.0
    %608 = vmatpush1.xpose.msra.mxu0 0.0
    %609 = vmatprep.subr.mxu0 0.0
    %610 = vmatpush1.xpose.msra.mxu0 0.0
    %611 = vmatprep.subr.mxu0 0.0
    %612 = vmatpush1.xpose.msra.mxu0 0.0
    %613 = vmatprep.subr.mxu0 0.0
    %614 = vmatpush1.xpose.msra.mxu0 0.0
    %615 = vmatprep.subr.mxu0 0.0
    %616 = vmatpush1.xpose.msra.mxu0 0.0
    %617 = vmatprep.subr.mxu0 0.0
    %618 = vmatpush1.xpose.msra.mxu0 0.0
    %619 = vmatprep.subr.mxu0 0.0
    %620 = vmatpush1.xpose.msra.mxu0 0.0
    %621 = vmatprep.subr.mxu0 0.0
    %622 = vmatpush1.xpose.msra.mxu0 0.0
    %623 = vmatprep.subr.mxu0 0.0
    %624 = vmatpush1.xpose.msra.mxu0 0.0
    %625 = vmatprep.subr.mxu0 0.0
    %626 = vmatpush1.xpose.msra.mxu0 0.0
    %627 = vmatprep.subr.mxu0 0.0
    %628 = vmatpush1.xpose.msra.mxu0 0.0
    %629 = vmatprep.subr.mxu0 0.0
    %630 = vmatpush1.xpose.msra.mxu0 0.0
    %631 = vmatprep.subr.mxu0 0.0
    %632 = vmatpush1.xpose.msra.mxu0 0.0
    %633 = vmatprep.subr.mxu0 0.0
    %634 = vmatpush1.xpose.msra.mxu0 0.0
    %635 = vmatprep.subr.mxu0 0.0
    %636 = vmatpush1.xpose.msra.mxu0 0.0
    %637 = vmatprep.subr.mxu0 0.0
    %638 = vmatpush1.xpose.msra.mxu0 0.0
    %639 = vmatprep.subr.mxu0 0.0
    %640 = vmatpush1.xpose.msra.mxu0 0.0
    %641 = vmatprep.subr.mxu0 0.0
    %642 = vmatpush1.xpose.msra.mxu0 0.0
    %643 = vmatprep.subr.mxu0 0.0
    %644 = vmatpush1.xpose.msra.mxu0 0.0
    %645 = vmatprep.mubr.f32.mxu0 0.0
    %646 = vmatmul.mubr.f32.gmra.mrb[0].mxu0 %v577
    %v647 = vpop.f32.mrb[0].mxu0
    %v648 = vadd.f32 0.0, %v647
    %v649 = vpop.f32.mrb[0].mxu0
    %650 = vdwg.mxu0
    %v651 = vsel %vm167, %v570, -inf
    %652 = vmax.xlane.f32.xlu0 %v651
    %v653 = vpop.xlane.xlu0 %652
    %v654 = vsel %vm167, %v648, -inf
    %655 = vmax.xlane.f32.xlu0 %v654
    %v656 = vpop.xlane.xlu0 %655
    %v657 = vsub.f32 %v570, %v653
    %v658 = vsub.f32 %v648, %v656
    %v659 = vmul.f32 %v657, 1.442695
    %v660 = vpow.pop %v659
    %v661 = vmul.f32 %v658, 1.442695
    %v662 = vpow.pop %v661
    %v663 = vsel %vm167, %v660, 0.0
    %664 = vadd.xlane.f32.xlu0 %v663
    %v665 = vpop.xlane.xlu0 %664
    %v666 = vsel %vm167, %v662, 0.0
    %667 = vadd.xlane.f32.xlu0 %v666
    %v668 = vpop.xlane.xlu0 %667
    %v669 = vrcp.pop %v665
    %v670 = vrcp.pop %v668
    %v671 = vmul.f32 %v660, %v669
    %v672 = vmul.f32 %v662, %v670
    %673 = vrot.lane.b32.xlu0 %v154, 56
    %v674 = vpop.permute.xlu0 %673
    %v677 = vsel %vm167, %v671, 0
    %679 = vmatprep.subr.mxu0 0.0
    %680 = vmatpush1.msra.mxu0 %v674
    %681 = vmatprep.subr.mxu0 0.0
    %682 = vmatpush1.msra.mxu0 0.0
    %683 = vmatprep.subr.mxu0 0.0
    %684 = vmatpush1.msra.mxu0 0.0
    %685 = vmatprep.subr.mxu0 0.0
    %686 = vmatpush1.msra.mxu0 0.0
    %687 = vmatprep.subr.mxu0 0.0
    %688 = vmatpush1.msra.mxu0 0.0
    %689 = vmatprep.subr.mxu0 0.0
    %690 = vmatpush1.msra.mxu0 0.0
    %691 = vmatprep.subr.mxu0 0.0
    %692 = vmatpush1.msra.mxu0 0.0
    %693 = vmatprep.subr.mxu0 0.0
    %694 = vmatpush1.msra.mxu0 0.0
    %695 = vmatprep.subr.mxu0 0.0
    %696 = vmatpush1.msra.mxu0 0.0
    %697 = vmatprep.subr.mxu0 0.0
    %698 = vmatpush1.msra.mxu0 0.0
    %699 = vmatprep.subr.mxu0 0.0
    %700 = vmatpush1.msra.mxu0 0.0
    %701 = vmatprep.subr.mxu0 0.0
    %702 = vmatpush1.msra.mxu0 0.0
    %703 = vmatprep.subr.mxu0 0.0
    %704 = vmatpush1.msra.mxu0 0.0
    %705 = vmatprep.subr.mxu0 0.0
    %706 = vmatpush1.msra.mxu0 0.0
    %707 = vmatprep.subr.mxu0 0.0
    %708 = vmatpush1.msra.mxu0 0.0
    %709 = vmatprep.subr.mxu0 0.0
    %710 = vmatpush1.msra.mxu0 0.0
    %711 = vmatprep.subr.mxu0 0.0
    %712 = vmatpush1.msra.mxu0 0.0
    %713 = vmatprep.subr.mxu0 0.0
    %714 = vmatpush1.msra.mxu0 0.0
    %715 = vmatprep.subr.mxu0 0.0
    %716 = vmatpush1.msra.mxu0 0.0
    %717 = vmatprep.subr.mxu0 0.0
    %718 = vmatpush1.msra.mxu0 0.0
    %719 = vmatprep.subr.mxu0 0.0
    %720 = vmatpush1.msra.mxu0 0.0
    %721 = vmatprep.subr.mxu0 0.0
    %722 = vmatpush1.msra.mxu0 0.0
    %723 = vmatprep.subr.mxu0 0.0
    %724 = vmatpush1.msra.mxu0 0.0
    %725 = vmatprep.subr.mxu0 0.0
    %726 = vmatpush1.msra.mxu0 0.0
    %727 = vmatprep.subr.mxu0 0.0
    %728 = vmatpush1.msra.mxu0 0.0
    %729 = vmatprep.subr.mxu0 0.0
    %730 = vmatpush1.msra.mxu0 0.0
    %731 = vmatprep.subr.mxu0 0.0
    %732 = vmatpush1.msra.mxu0 0.0
    %733 = vmatprep.subr.mxu0 0.0
    %734 = vmatpush1.msra.mxu0 0.0
    %735 = vmatprep.subr.mxu0 0.0
    %736 = vmatpush1.msra.mxu0 0.0
    %737 = vmatprep.subr.mxu0 0.0
    %738 = vmatpush1.msra.mxu0 0.0
    %739 = vmatprep.subr.mxu0 0.0
    %740 = vmatpush1.msra.mxu0 0.0
    %741 = vmatprep.subr.mxu0 0.0
    %742 = vmatpush1.msra.mxu0 0.0
    %743 = vmatprep.mubr.f32.mxu0 0.0
    %744 = vmatmul.mubr.f32.gmra.mrb[0].mxu0 %v677
    %v745 = vpop.f32.mrb[0].mxu0
    %v746 = vadd.f32 0.0, %v745
    %v747 = vpop.f32.mrb[0].mxu0
    %748 = vdwg.mxu0
    %749 = vrot.lane.b32.xlu0 %v159, 56
    %v750 = vpop.permute.xlu0 %749
    %v753 = vsel %vm167, %v672, 0
    %755 = vmatprep.subr.mxu0 0.0
    %756 = vmatpush1.msra.mxu0 %v750
    %757 = vmatprep.subr.mxu0 0.0
    %758 = vmatpush1.msra.mxu0 0.0
    %759 = vmatprep.subr.mxu0 0.0
    %760 = vmatpush1.msra.mxu0 0.0
    %761 = vmatprep.subr.mxu0 0.0
    %762 = vmatpush1.msra.mxu0 0.0
    %763 = vmatprep.subr.mxu0 0.0
    %764 = vmatpush1.msra.mxu0 0.0
    %765 = vmatprep.subr.mxu0 0.0
    %766 = vmatpush1.msra.mxu0 0.0
    %767 = vmatprep.subr.mxu0 0.0
    %768 = vmatpush1.msra.mxu0 0.0
    %769 = vmatprep.subr.mxu0 0.0
    %770 = vmatpush1.msra.mxu0 0.0
    %771 = vmatprep.subr.mxu0 0.0
    %772 = vmatpush1.msra.mxu0 0.0
    %773 = vmatprep.subr.mxu0 0.0
    %774 = vmatpush1.msra.mxu0 0.0
    %775 = vmatprep.subr.mxu0 0.0
    %776 = vmatpush1.msra.mxu0 0.0
    %777 = vmatprep.subr.mxu0 0.0
    %778 = vmatpush1.msra.mxu0 0.0
    %779 = vmatprep.subr.mxu0 0.0
    %780 = vmatpush1.msra.mxu0 0.0
    %781 = vmatprep.subr.mxu0 0.0
    %782 = vmatpush1.msra.mxu0 0.0
    %783 = vmatprep.subr.mxu0 0.0
    %784 = vmatpush1.msra.mxu0 0.0
    %785 = vmatprep.subr.mxu0 0.0
    %786 = vmatpush1.msra.mxu0 0.0
    %787 = vmatprep.subr.mxu0 0.0
    %788 = vmatpush1.msra.mxu0 0.0
    %789 = vmatprep.subr.mxu0 0.0
    %790 = vmatpush1.msra.mxu0 0.0
    %791 = vmatprep.subr.mxu0 0.0
    %792 = vmatpush1.msra.mxu0 0.0
    %793 = vmatprep.subr.mxu0 0.0
    %794 = vmatpush1.msra.mxu0 0.0
    %795 = vmatprep.subr.mxu0 0.0
    %796 = vmatpush1.msra.mxu0 0.0
    %797 = vmatprep.subr.mxu0 0.0
    %798 = vmatpush1.msra.mxu0 0.0
    %799 = vmatprep.subr.mxu0 0.0
    %800 = vmatpush1.msra.mxu0 0.0
    %801 = vmatprep.subr.mxu0 0.0
    %802 = vmatpush1.msra.mxu0 0.0
    %803 = vmatprep.subr.mxu0 0.0
    %804 = vmatpush1.msra.mxu0 0.0
    %805 = vmatprep.subr.mxu0 0.0
    %806 = vmatpush1.msra.mxu0 0.0
    %807 = vmatprep.subr.mxu0 0.0
    %808 = vmatpush1.msra.mxu0 0.0
    %809 = vmatprep.subr.mxu0 0.0
    %810 = vmatpush1.msra.mxu0 0.0
    %811 = vmatprep.subr.mxu0 0.0
    %812 = vmatpush1.msra.mxu0 0.0
    %813 = vmatprep.subr.mxu0 0.0
    %814 = vmatpush1.msra.mxu0 0.0
    %815 = vmatprep.subr.mxu0 0.0
    %816 = vmatpush1.msra.mxu0 0.0
    %817 = vmatprep.subr.mxu0 0.0
    %818 = vmatpush1.msra.mxu0 0.0
    %819 = vmatprep.mubr.f32.mxu0 0.0
    %820 = vmatmul.mubr.f32.gmra.mrb[0].mxu0 %v753
    %v821 = vpop.f32.mrb[0].mxu0
    %v822 = vadd.f32 0.0, %v821
    %v823 = vpop.f32.mrb[0].mxu0
    %824 = vdwg.mxu0
    %825 = vrot.lane.b32.xlu0 %v162, 112
    %v826 = vpop.permute.xlu0 %825
    %827 = vrot.lane.b32.xlu0 %v154, 80
    %v828 = vpop.permute.xlu0 %827
    %v829 = vsel %vm167, %v826, 0
    %v831 = vsel %vm167, %v828, 0
    %833 = vmatprep.subr.mxu0 0.0
    %834 = vmatpush1.xpose.msra.mxu0 %v831
    %835 = vmatprep.subr.mxu0 0.0
    %836 = vmatpush1.xpose.msra.mxu0 0.0
    %837 = vmatprep.subr.mxu0 0.0
    %838 = vmatpush1.xpose.msra.mxu0 0.0
    %839 = vmatprep.subr.mxu0 0.0
    %840 = vmatpush1.xpose.msra.mxu0 0.0
    %841 = vmatprep.subr.mxu0 0.0
    %842 = vmatpush1.xpose.msra.mxu0 0.0
    %843 = vmatprep.subr.mxu0 0.0
    %844 = vmatpush1.xpose.msra.mxu0 0.0
    %845 = vmatprep.subr.mxu0 0.0
    %846 = vmatpush1.xpose.msra.mxu0 0.0
    %847 = vmatprep.subr.mxu0 0.0
    %848 = vmatpush1.xpose.msra.mxu0 0.0
    %849 = vmatprep.subr.mxu0 0.0
    %850 = vmatpush1.xpose.msra.mxu0 0.0
    %851 = vmatprep.subr.mxu0 0.0
    %852 = vmatpush1.xpose.msra.mxu0 0.0
    %853 = vmatprep.subr.mxu0 0.0
    %854 = vmatpush1.xpose.msra.mxu0 0.0
    %855 = vmatprep.subr.mxu0 0.0
    %856 = vmatpush1.xpose.msra.mxu0 0.0
    %857 = vmatprep.subr.mxu0 0.0
    %858 = vmatpush1.xpose.msra.mxu0 0.0
    %859 = vmatprep.subr.mxu0 0.0
    %860 = vmatpush1.xpose.msra.mxu0 0.0
    %861 = vmatprep.subr.mxu0 0.0
    %862 = vmatpush1.xpose.msra.mxu0 0.0
    %863 = vmatprep.subr.mxu0 0.0
    %864 = vmatpush1.xpose.msra.mxu0 0.0
    %865 = vmatprep.subr.mxu0 0.0
    %866 = vmatpush1.xpose.msra.mxu0 0.0
    %867 = vmatprep.subr.mxu0 0.0
    %868 = vmatpush1.xpose.msra.mxu0 0.0
    %869 = vmatprep.subr.mxu0 0.0
    %870 = vmatpush1.xpose.msra.mxu0 0.0
    %871 = vmatprep.subr.mxu0 0.0
    %872 = vmatpush1.xpose.msra.mxu0 0.0
    %873 = vmatprep.subr.mxu0 0.0
    %874 = vmatpush1.xpose.msra.mxu0 0.0
    %875 = vmatprep.subr.mxu0 0.0
    %876 = vmatpush1.xpose.msra.mxu0 0.0
    %877 = vmatprep.subr.mxu0 0.0
    %878 = vmatpush1.xpose.msra.mxu0 0.0
    %879 = vmatprep.subr.mxu0 0.0
    %880 = vmatpush1.xpose.msra.mxu0 0.0
    %881 = vmatprep.subr.mxu0 0.0
    %882 = vmatpush1.xpose.msra.mxu0 0.0
    %883 = vmatprep.subr.mxu0 0.0
    %884 = vmatpush1.xpose.msra.mxu0 0.0
    %885 = vmatprep.subr.mxu0 0.0
    %886 = vmatpush1.xpose.msra.mxu0 0.0
    %887 = vmatprep.subr.mxu0 0.0
    %888 = vmatpush1.xpose.msra.mxu0 0.0
    %889 = vmatprep.subr.mxu0 0.0
    %890 = vmatpush1.xpose.msra.mxu0 0.0
    %891 = vmatprep.subr.mxu0 0.0
    %892 = vmatpush1.xpose.msra.mxu0 0.0
    %893 = vmatprep.subr.mxu0 0.0
    %894 = vmatpush1.xpose.msra.mxu0 0.0
    %895 = vmatprep.subr.mxu0 0.0
    %896 = vmatpush1.xpose.msra.mxu0 0.0
    %897 = vmatprep.mubr.f32.mxu0 0.0
    %898 = vmatmul.mubr.f32.gmra.mrb[0].mxu0 %v829
    %v899 = vpop.f32.mrb[0].mxu0
    %v900 = vadd.f32 0.0, %v899
    %v901 = vpop.f32.mrb[0].mxu0
    %902 = vdwg.mxu0
    %903 = vrot.lane.b32.xlu0 %v163, 112
    %v904 = vpop.permute.xlu0 %903
    %905 = vrot.lane.b32.xlu0 %v159, 80
    %v906 = vpop.permute.xlu0 %905
    %v907 = vsel %vm167, %v904, 0
    %v909 = vsel %vm167, %v906, 0
    %911 = vmatprep.subr.mxu0 0.0
    %912 = vmatpush1.xpose.msra.mxu0 %v909
    %913 = vmatprep.subr.mxu0 0.0
    %914 = vmatpush1.xpose.msra.mxu0 0.0
    %915 = vmatprep.subr.mxu0 0.0
    %916 = vmatpush1.xpose.msra.mxu0 0.0
    %917 = vmatprep.subr.mxu0 0.0
    %918 = vmatpush1.xpose.msra.mxu0 0.0
    %919 = vmatprep.subr.mxu0 0.0
    %920 = vmatpush1.xpose.msra.mxu0 0.0
    %921 = vmatprep.subr.mxu0 0.0
    %922 = vmatpush1.xpose.msra.mxu0 0.0
    %923 = vmatprep.subr.mxu0 0.0
    %924 = vmatpush1.xpose.msra.mxu0 0.0
    %925 = vmatprep.subr.mxu0 0.0
    %926 = vmatpush1.xpose.msra.mxu0 0.0
    %927 = vmatprep.subr.mxu0 0.0
    %928 = vmatpush1.xpose.msra.mxu0 0.0
    %929 = vmatprep.subr.mxu0 0.0
    %930 = vmatpush1.xpose.msra.mxu0 0.0
    %931 = vmatprep.subr.mxu0 0.0
    %932 = vmatpush1.xpose.msra.mxu0 0.0
    %933 = vmatprep.subr.mxu0 0.0
    %934 = vmatpush1.xpose.msra.mxu0 0.0
    %935 = vmatprep.subr.mxu0 0.0
    %936 = vmatpush1.xpose.msra.mxu0 0.0
    %937 = vmatprep.subr.mxu0 0.0
    %938 = vmatpush1.xpose.msra.mxu0 0.0
    %939 = vmatprep.subr.mxu0 0.0
    %940 = vmatpush1.xpose.msra.mxu0 0.0
    %941 = vmatprep.subr.mxu0 0.0
    %942 = vmatpush1.xpose.msra.mxu0 0.0
    %943 = vmatprep.subr.mxu0 0.0
    %944 = vmatpush1.xpose.msra.mxu0 0.0
    %945 = vmatprep.subr.mxu0 0.0
    %946 = vmatpush1.xpose.msra.mxu0 0.0
    %947 = vmatprep.subr.mxu0 0.0
    %948 = vmatpush1.xpose.msra.mxu0 0.0
    %949 = vmatprep.subr.mxu0 0.0
    %950 = vmatpush1.xpose.msra.mxu0 0.0
    %951 = vmatprep.subr.mxu0 0.0
    %952 = vmatpush1.xpose.msra.mxu0 0.0
    %953 = vmatprep.subr.mxu0 0.0
    %954 = vmatpush1.xpose.msra.mxu0 0.0
    %955 = vmatprep.subr.mxu0 0.0
    %956 = vmatpush1.xpose.msra.mxu0 0.0
    %957 = vmatprep.subr.mxu0 0.0
    %958 = vmatpush1.xpose.msra.mxu0 0.0
    %959 = vmatprep.subr.mxu0 0.0
    %960 = vmatpush1.xpose.msra.mxu0 0.0
    %961 = vmatprep.subr.mxu0 0.0
    %962 = vmatpush1.xpose.msra.mxu0 0.0
    %963 = vmatprep.subr.mxu0 0.0
    %964 = vmatpush1.xpose.msra.mxu0 0.0
    %965 = vmatprep.subr.mxu0 0.0
    %966 = vmatpush1.xpose.msra.mxu0 0.0
    %967 = vmatprep.subr.mxu0 0.0
    %968 = vmatpush1.xpose.msra.mxu0 0.0
    %969 = vmatprep.subr.mxu0 0.0
    %970 = vmatpush1.xpose.msra.mxu0 0.0
    %971 = vmatprep.subr.mxu0 0.0
    %972 = vmatpush1.xpose.msra.mxu0 0.0
    %973 = vmatprep.subr.mxu0 0.0
    %974 = vmatpush1.xpose.msra.mxu0 0.0
    %975 = vmatprep.mubr.f32.mxu0 0.0
    %976 = vmatmul.mubr.f32.gmra.mrb[0].mxu0 %v907
    %v977 = vpop.f32.mrb[0].mxu0
    %v978 = vadd.f32 0.0, %v977
    %v979 = vpop.f32.mrb[0].mxu0
    %980 = vdwg.mxu0
    %v981 = vsel %vm167, %v900, -inf
    %982 = vmax.xlane.f32.xlu0 %v981
    %v983 = vpop.xlane.xlu0 %982
    %v984 = vsel %vm167, %v978, -inf
    %985 = vmax.xlane.f32.xlu0 %v984
    %v986 = vpop.xlane.xlu0 %985
    %v987 = vsub.f32 %v900, %v983
    %v988 = vsub.f32 %v978, %v986
    %v989 = vmul.f32 %v987, 1.442695
    %v990 = vpow.pop %v989
    %v991 = vmul.f32 %v988, 1.442695
    %v992 = vpow.pop %v991
    %v993 = vsel %vm167, %v990, 0.0
    %994 = vadd.xlane.f32.xlu0 %v993
    %v995 = vpop.xlane.xlu0 %994
    %v996 = vsel %vm167, %v992, 0.0
    %997 = vadd.xlane.f32.xlu0 %v996
    %v998 = vpop.xlane.xlu0 %997
    %v999 = vrcp.pop %v995
    %v1000 = vrcp.pop %v998
    %v1001 = vmul.f32 %v990, %v999
    %v1002 = vmul.f32 %v992, %v1000
    %1003 = vrot.lane.b32.xlu0 %v154, 48
    %v1004 = vpop.permute.xlu0 %1003
    %v1007 = vsel %vm167, %v1001, 0
    %1009 = vmatprep.subr.mxu0 0.0
    %1010 = vmatpush1.msra.mxu0 %v1004
    %1011 = vmatprep.subr.mxu0 0.0
    %1012 = vmatpush1.msra.mxu0 0.0
    %1013 = vmatprep.subr.mxu0 0.0
    %1014 = vmatpush1.msra.mxu0 0.0
    %1015 = vmatprep.subr.mxu0 0.0
    %1016 = vmatpush1.msra.mxu0 0.0
    %1017 = vmatprep.subr.mxu0 0.0
    %1018 = vmatpush1.msra.mxu0 0.0
    %1019 = vmatprep.subr.mxu0 0.0
    %1020 = vmatpush1.msra.mxu0 0.0
    %1021 = vmatprep.subr.mxu0 0.0
    %1022 = vmatpush1.msra.mxu0 0.0
    %1023 = vmatprep.subr.mxu0 0.0
    %1024 = vmatpush1.msra.mxu0 0.0
    %1025 = vmatprep.subr.mxu0 0.0
    %1026 = vmatpush1.msra.mxu0 0.0
    %1027 = vmatprep.subr.mxu0 0.0
    %1028 = vmatpush1.msra.mxu0 0.0
    %1029 = vmatprep.subr.mxu0 0.0
    %1030 = vmatpush1.msra.mxu0 0.0
    %1031 = vmatprep.subr.mxu0 0.0
    %1032 = vmatpush1.msra.mxu0 0.0
    %1033 = vmatprep.subr.mxu0 0.0
    %1034 = vmatpush1.msra.mxu0 0.0
    %1035 = vmatprep.subr.mxu0 0.0
    %1036 = vmatpush1.msra.mxu0 0.0
    %1037 = vmatprep.subr.mxu0 0.0
    %1038 = vmatpush1.msra.mxu0 0.0
    %1039 = vmatprep.subr.mxu0 0.0
    %1040 = vmatpush1.msra.mxu0 0.0
    %1041 = vmatprep.subr.mxu0 0.0
    %1042 = vmatpush1.msra.mxu0 0.0
    %1043 = vmatprep.subr.mxu0 0.0
    %1044 = vmatpush1.msra.mxu0 0.0
    %1045 = vmatprep.subr.mxu0 0.0
    %1046 = vmatpush1.msra.mxu0 0.0
    %1047 = vmatprep.subr.mxu0 0.0
    %1048 = vmatpush1.msra.mxu0 0.0
    %1049 = vmatprep.subr.mxu0 0.0
    %1050 = vmatpush1.msra.mxu0 0.0
    %1051 = vmatprep.subr.mxu0 0.0
    %1052 = vmatpush1.msra.mxu0 0.0
    %1053 = vmatprep.subr.mxu0 0.0
    %1054 = vmatpush1.msra.mxu0 0.0
    %1055 = vmatprep.subr.mxu0 0.0
    %1056 = vmatpush1.msra.mxu0 0.0
    %1057 = vmatprep.subr.mxu0 0.0
    %1058 = vmatpush1.msra.mxu0 0.0
    %1059 = vmatprep.subr.mxu0 0.0
    %1060 = vmatpush1.msra.mxu0 0.0
    %1061 = vmatprep.subr.mxu0 0.0
    %1062 = vmatpush1.msra.mxu0 0.0
    %1063 = vmatprep.subr.mxu0 0.0
    %1064 = vmatpush1.msra.mxu0 0.0
    %1065 = vmatprep.subr.mxu0 0.0
    %1066 = vmatpush1.msra.mxu0 0.0
    %1067 = vmatprep.subr.mxu0 0.0
    %1068 = vmatpush1.msra.mxu0 0.0
    %1069 = vmatprep.subr.mxu0 0.0
    %1070 = vmatpush1.msra.mxu0 0.0
    %1071 = vmatprep.subr.mxu0 0.0
    %1072 = vmatpush1.msra.mxu0 0.0
    %1073 = vmatprep.mubr.f32.mxu0 0.0
    %1074 = vmatmul.mubr.f32.gmra.mrb[0].mxu0 %v1007
    %v1075 = vpop.f32.mrb[0].mxu0
    %v1076 = vadd.f32 0.0, %v1075
    %v1077 = vpop.f32.mrb[0].mxu0
    %1078 = vdwg.mxu0
    %1079 = vrot.lane.b32.xlu0 %v159, 48
    %v1080 = vpop.permute.xlu0 %1079
    %v1083 = vsel %vm167, %v1002, 0
    %1085 = vmatprep.subr.mxu0 0.0
    %1086 = vmatpush1.msra.mxu0 %v1080
    %1087 = vmatprep.subr.mxu0 0.0
    %1088 = vmatpush1.msra.mxu0 0.0
    %1089 = vmatprep.subr.mxu0 0.0
    %1090 = vmatpush1.msra.mxu0 0.0
    %1091 = vmatprep.subr.mxu0 0.0
    %1092 = vmatpush1.msra.mxu0 0.0
    %1093 = vmatprep.subr.mxu0 0.0
    %1094 = vmatpush1.msra.mxu0 0.0
    %1095 = vmatprep.subr.mxu0 0.0
    %1096 = vmatpush1.msra.mxu0 0.0
    %1097 = vmatprep.subr.mxu0 0.0
    %1098 = vmatpush1.msra.mxu0 0.0
    %1099 = vmatprep.subr.mxu0 0.0
    %1100 = vmatpush1.msra.mxu0 0.0
    %1101 = vmatprep.subr.mxu0 0.0
    %1102 = vmatpush1.msra.mxu0 0.0
    %1103 = vmatprep.subr.mxu0 0.0
    %1104 = vmatpush1.msra.mxu0 0.0
    %1105 = vmatprep.subr.mxu0 0.0
    %1106 = vmatpush1.msra.mxu0 0.0
    %1107 = vmatprep.subr.mxu0 0.0
    %1108 = vmatpush1.msra.mxu0 0.0
    %1109 = vmatprep.subr.mxu0 0.0
    %1110 = vmatpush1.msra.mxu0 0.0
    %1111 = vmatprep.subr.mxu0 0.0
    %1112 = vmatpush1.msra.mxu0 0.0
    %1113 = vmatprep.subr.mxu0 0.0
    %1114 = vmatpush1.msra.mxu0 0.0
    %1115 = vmatprep.subr.mxu0 0.0
    %1116 = vmatpush1.msra.mxu0 0.0
    %1117 = vmatprep.subr.mxu0 0.0
    %1118 = vmatpush1.msra.mxu0 0.0
    %1119 = vmatprep.subr.mxu0 0.0
    %1120 = vmatpush1.msra.mxu0 0.0
    %1121 = vmatprep.subr.mxu0 0.0
    %1122 = vmatpush1.msra.mxu0 0.0
    %1123 = vmatprep.subr.mxu0 0.0
    %1124 = vmatpush1.msra.mxu0 0.0
    %1125 = vmatprep.subr.mxu0 0.0
    %1126 = vmatpush1.msra.mxu0 0.0
    %1127 = vmatprep.subr.mxu0 0.0
    %1128 = vmatpush1.msra.mxu0 0.0
    %1129 = vmatprep.subr.mxu0 0.0
    %1130 = vmatpush1.msra.mxu0 0.0
    %1131 = vmatprep.subr.mxu0 0.0
    %1132 = vmatpush1.msra.mxu0 0.0
    %1133 = vmatprep.subr.mxu0 0.0
    %1134 = vmatpush1.msra.mxu0 0.0
    %1135 = vmatprep.subr.mxu0 0.0
    %1136 = vmatpush1.msra.mxu0 0.0
    %1137 = vmatprep.subr.mxu0 0.0
    %1138 = vmatpush1.msra.mxu0 0.0
    %1139 = vmatprep.subr.mxu0 0.0
    %1140 = vmatpush1.msra.mxu0 0.0
    %1141 = vmatprep.subr.mxu0 0.0
    %1142 = vmatpush1.msra.mxu0 0.0
    %1143 = vmatprep.subr.mxu0 0.0
    %1144 = vmatpush1.msra.mxu0 0.0
    %1145 = vmatprep.subr.mxu0 0.0
    %1146 = vmatpush1.msra.mxu0 0.0
    %1147 = vmatprep.subr.mxu0 0.0
    %1148 = vmatpush1.msra.mxu0 0.0
    %1149 = vmatprep.mubr.f32.mxu0 0.0
    %1150 = vmatmul.mubr.f32.gmra.mrb[0].mxu0 %v1083
    %v1151 = vpop.f32.mrb[0].mxu0
    %v1152 = vadd.f32 0.0, %v1151
    %v1153 = vpop.f32.mrb[0].mxu0
    %1154 = vdwg.mxu0
    %1155 = vrot.lane.b32.xlu0 %v162, 104
    %v1156 = vpop.permute.xlu0 %1155
    %1157 = vrot.lane.b32.xlu0 %v154, 72
    %v1158 = vpop.permute.xlu0 %1157
    %v1159 = vsel %vm167, %v1156, 0
    %v1161 = vsel %vm167, %v1158, 0
    %1163 = vmatprep.subr.mxu0 0.0
    %1164 = vmatpush1.xpose.msra.mxu0 %v1161
    %1165 = vmatprep.subr.mxu0 0.0
    %1166 = vmatpush1.xpose.msra.mxu0 0.0
    %1167 = vmatprep.subr.mxu0 0.0
    %1168 = vmatpush1.xpose.msra.mxu0 0.0
    %1169 = vmatprep.subr.mxu0 0.0
    %1170 = vmatpush1.xpose.msra.mxu0 0.0
    %1171 = vmatprep.subr.mxu0 0.0
    %1172 = vmatpush1.xpose.msra.mxu0 0.0
    %1173 = vmatprep.subr.mxu0 0.0
    %1174 = vmatpush1.xpose.msra.mxu0 0.0
    %1175 = vmatprep.subr.mxu0 0.0
    %1176 = vmatpush1.xpose.msra.mxu0 0.0
    %1177 = vmatprep.subr.mxu0 0.0
    %1178 = vmatpush1.xpose.msra.mxu0 0.0
    %1179 = vmatprep.subr.mxu0 0.0
    %1180 = vmatpush1.xpose.msra.mxu0 0.0
    %1181 = vmatprep.subr.mxu0 0.0
    %1182 = vmatpush1.xpose.msra.mxu0 0.0
    %1183 = vmatprep.subr.mxu0 0.0
    %1184 = vmatpush1.xpose.msra.mxu0 0.0
    %1185 = vmatprep.subr.mxu0 0.0
    %1186 = vmatpush1.xpose.msra.mxu0 0.0
    %1187 = vmatprep.subr.mxu0 0.0
    %1188 = vmatpush1.xpose.msra.mxu0 0.0
    %1189 = vmatprep.subr.mxu0 0.0
    %1190 = vmatpush1.xpose.msra.mxu0 0.0
    %1191 = vmatprep.subr.mxu0 0.0
    %1192 = vmatpush1.xpose.msra.mxu0 0.0
    %1193 = vmatprep.subr.mxu0 0.0
    %1194 = vmatpush1.xpose.msra.mxu0 0.0
    %1195 = vmatprep.subr.mxu0 0.0
    %1196 = vmatpush1.xpose.msra.mxu0 0.0
    %1197 = vmatprep.subr.mxu0 0.0
    %1198 = vmatpush1.xpose.msra.mxu0 0.0
    %1199 = vmatprep.subr.mxu0 0.0
    %1200 = vmatpush1.xpose.msra.mxu0 0.0
    %1201 = vmatprep.subr.mxu0 0.0
    %1202 = vmatpush1.xpose.msra.mxu0 0.0
    %1203 = vmatprep.subr.mxu0 0.0
    %1204 = vmatpush1.xpose.msra.mxu0 0.0
    %1205 = vmatprep.subr.mxu0 0.0
    %1206 = vmatpush1.xpose.msra.mxu0 0.0
    %1207 = vmatprep.subr.mxu0 0.0
    %1208 = vmatpush1.xpose.msra.mxu0 0.0
    %1209 = vmatprep.subr.mxu0 0.0
    %1210 = vmatpush1.xpose.msra.mxu0 0.0
    %1211 = vmatprep.subr.mxu0 0.0
    %1212 = vmatpush1.xpose.msra.mxu0 0.0
    %1213 = vmatprep.subr.mxu0 0.0
    %1214 = vmatpush1.xpose.msra.mxu0 0.0
    %1215 = vmatprep.subr.mxu0 0.0
    %1216 = vmatpush1.xpose.msra.mxu0 0.0
    %1217 = vmatprep.subr.mxu0 0.0
    %1218 = vmatpush1.xpose.msra.mxu0 0.0
    %1219 = vmatprep.subr.mxu0 0.0
    %1220 = vmatpush1.xpose.msra.mxu0 0.0
    %1221 = vmatprep.subr.mxu0 0.0
    %1222 = vmatpush1.xpose.msra.mxu0 0.0
    %1223 = vmatprep.subr.mxu0 0.0
    %1224 = vmatpush1.xpose.msra.mxu0 0.0
    %1225 = vmatprep.subr.mxu0 0.0
    %1226 = vmatpush1.xpose.msra.mxu0 0.0
    %1227 = vmatprep.mubr.f32.mxu0 0.0
    %1228 = vmatmul.mubr.f32.gmra.mrb[0].mxu0 %v1159
    %v1229 = vpop.f32.mrb[0].mxu0
    %v1230 = vadd.f32 0.0, %v1229
    %v1231 = vpop.f32.mrb[0].mxu0
    %1232 = vdwg.mxu0
    %1233 = vrot.lane.b32.xlu0 %v163, 104
    %v1234 = vpop.permute.xlu0 %1233
    %1235 = vrot.lane.b32.xlu0 %v159, 72
    %v1236 = vpop.permute.xlu0 %1235
    %v1237 = vsel %vm167, %v1234, 0
    %v1239 = vsel %vm167, %v1236, 0
    %1241 = vmatprep.subr.mxu0 0.0
    %1242 = vmatpush1.xpose.msra.mxu0 %v1239
    %1243 = vmatprep.subr.mxu0 0.0
    %1244 = vmatpush1.xpose.msra.mxu0 0.0
    %1245 = vmatprep.subr.mxu0 0.0
    %1246 = vmatpush1.xpose.msra.mxu0 0.0
    %1247 = vmatprep.subr.mxu0 0.0
    %1248 = vmatpush1.xpose.msra.mxu0 0.0
    %1249 = vmatprep.subr.mxu0 0.0
    %1250 = vmatpush1.xpose.msra.mxu0 0.0
    %1251 = vmatprep.subr.mxu0 0.0
    %1252 = vmatpush1.xpose.msra.mxu0 0.0
    %1253 = vmatprep.subr.mxu0 0.0
    %1254 = vmatpush1.xpose.msra.mxu0 0.0
    %1255 = vmatprep.subr.mxu0 0.0
    %1256 = vmatpush1.xpose.msra.mxu0 0.0
    %1257 = vmatprep.subr.mxu0 0.0
    %1258 = vmatpush1.xpose.msra.mxu0 0.0
    %1259 = vmatprep.subr.mxu0 0.0
    %1260 = vmatpush1.xpose.msra.mxu0 0.0
    %1261 = vmatprep.subr.mxu0 0.0
    %1262 = vmatpush1.xpose.msra.mxu0 0.0
    %1263 = vmatprep.subr.mxu0 0.0
    %1264 = vmatpush1.xpose.msra.mxu0 0.0
    %1265 = vmatprep.subr.mxu0 0.0
    %1266 = vmatpush1.xpose.msra.mxu0 0.0
    %1267 = vmatprep.subr.mxu0 0.0
    %1268 = vmatpush1.xpose.msra.mxu0 0.0
    %1269 = vmatprep.subr.mxu0 0.0
    %1270 = vmatpush1.xpose.msra.mxu0 0.0
    %1271 = vmatprep.subr.mxu0 0.0
    %1272 = vmatpush1.xpose.msra.mxu0 0.0
    %1273 = vmatprep.subr.mxu0 0.0
    %1274 = vmatpush1.xpose.msra.mxu0 0.0
    %1275 = vmatprep.subr.mxu0 0.0
    %1276 = vmatpush1.xpose.msra.mxu0 0.0
    %1277 = vmatprep.subr.mxu0 0.0
    %1278 = vmatpush1.xpose.msra.mxu0 0.0
    %1279 = vmatprep.subr.mxu0 0.0
    %1280 = vmatpush1.xpose.msra.mxu0 0.0
    %1281 = vmatprep.subr.mxu0 0.0
    %1282 = vmatpush1.xpose.msra.mxu0 0.0
    %1283 = vmatprep.subr.mxu0 0.0
    %1284 = vmatpush1.xpose.msra.mxu0 0.0
    %1285 = vmatprep.subr.mxu0 0.0
    %1286 = vmatpush1.xpose.msra.mxu0 0.0
    %1287 = vmatprep.subr.mxu0 0.0
    %1288 = vmatpush1.xpose.msra.mxu0 0.0
    %1289 = vmatprep.subr.mxu0 0.0
    %1290 = vmatpush1.xpose.msra.mxu0 0.0
    %1291 = vmatprep.subr.mxu0 0.0
    %1292 = vmatpush1.xpose.msra.mxu0 0.0
    %1293 = vmatprep.subr.mxu0 0.0
    %1294 = vmatpush1.xpose.msra.mxu0 0.0
    %1295 = vmatprep.subr.mxu0 0.0
    %1296 = vmatpush1.xpose.msra.mxu0 0.0
    %1297 = vmatprep.subr.mxu0 0.0
    %1298 = vmatpush1.xpose.msra.mxu0 0.0
    %1299 = vmatprep.subr.mxu0 0.0
    %1300 = vmatpush1.xpose.msra.mxu0 0.0
    %1301 = vmatprep.subr.mxu0 0.0
    %1302 = vmatpush1.xpose.msra.mxu0 0.0
    %1303 = vmatprep.subr.mxu0 0.0
    %1304 = vmatpush1.xpose.msra.mxu0 0.0
    %1305 = vmatprep.mubr.f32.mxu0 0.0
    %1306 = vmatmul.mubr.f32.gmra.mrb[0].mxu0 %v1237
    %v1307 = vpop.f32.mrb[0].mxu0
    %v1308 = vadd.f32 0.0, %v1307
    %v1309 = vpop.f32.mrb[0].mxu0
    %1310 = vdwg.mxu0
    %v1311 = vsel %vm167, %v1230, -inf
    %1312 = vmax.xlane.f32.xlu0 %v1311
    %v1313 = vpop.xlane.xlu0 %1312
    %v1314 = vsel %vm167, %v1308, -inf
    %1315 = vmax.xlane.f32.xlu0 %v1314
    %v1316 = vpop.xlane.xlu0 %1315
    %v1317 = vsub.f32 %v1230, %v1313
    %v1318 = vsub.f32 %v1308, %v1316
    %v1319 = vmul.f32 %v1317, 1.442695
    %v1320 = vpow.pop %v1319
    %v1321 = vmul.f32 %v1318, 1.442695
    %v1322 = vpow.pop %v1321
    %v1323 = vsel %vm167, %v1320, 0.0
    %1324 = vadd.xlane.f32.xlu0 %v1323
    %v1325 = vpop.xlane.xlu0 %1324
    %v1326 = vsel %vm167, %v1322, 0.0
    %1327 = vadd.xlane.f32.xlu0 %v1326
    %v1328 = vpop.xlane.xlu0 %1327
    %v1329 = vrcp.pop %v1325
    %v1330 = vrcp.pop %v1328
    %v1331 = vmul.f32 %v1320, %v1329
    %v1332 = vmul.f32 %v1322, %v1330
    %1333 = vrot.lane.b32.xlu0 %v154, 40
    %v1334 = vpop.permute.xlu0 %1333
    %v1337 = vsel %vm167, %v1331, 0
    %1339 = vmatprep.subr.mxu0 0.0
    %1340 = vmatpush1.msra.mxu0 %v1334
    %1341 = vmatprep.subr.mxu0 0.0
    %1342 = vmatpush1.msra.mxu0 0.0
    %1343 = vmatprep.subr.mxu0 0.0
    %1344 = vmatpush1.msra.mxu0 0.0
    %1345 = vmatprep.subr.mxu0 0.0
    %1346 = vmatpush1.msra.mxu0 0.0
    %1347 = vmatprep.subr.mxu0 0.0
    %1348 = vmatpush1.msra.mxu0 0.0
    %1349 = vmatprep.subr.mxu0 0.0
    %1350 = vmatpush1.msra.mxu0 0.0
    %1351 = vmatprep.subr.mxu0 0.0
    %1352 = vmatpush1.msra.mxu0 0.0
    %1353 = vmatprep.subr.mxu0 0.0
    %1354 = vmatpush1.msra.mxu0 0.0
    %1355 = vmatprep.subr.mxu0 0.0
    %1356 = vmatpush1.msra.mxu0 0.0
    %1357 = vmatprep.subr.mxu0 0.0
    %1358 = vmatpush1.msra.mxu0 0.0
    %1359 = vmatprep.subr.mxu0 0.0
    %1360 = vmatpush1.msra.mxu0 0.0
    %1361 = vmatprep.subr.mxu0 0.0
    %1362 = vmatpush1.msra.mxu0 0.0
    %1363 = vmatprep.subr.mxu0 0.0
    %1364 = vmatpush1.msra.mxu0 0.0
    %1365 = vmatprep.subr.mxu0 0.0
    %1366 = vmatpush1.msra.mxu0 0.0
    %1367 = vmatprep.subr.mxu0 0.0
    %1368 = vmatpush1.msra.mxu0 0.0
    %1369 = vmatprep.subr.mxu0 0.0
    %1370 = vmatpush1.msra.mxu0 0.0
    %1371 = vmatprep.subr.mxu0 0.0
    %1372 = vmatpush1.msra.mxu0 0.0
    %1373 = vmatprep.subr.mxu0 0.0
    %1374 = vmatpush1.msra.mxu0 0.0
    %1375 = vmatprep.subr.mxu0 0.0
    %1376 = vmatpush1.msra.mxu0 0.0
    %1377 = vmatprep.subr.mxu0 0.0
    %1378 = vmatpush1.msra.mxu0 0.0
    %1379 = vmatprep.subr.mxu0 0.0
    %1380 = vmatpush1.msra.mxu0 0.0
    %1381 = vmatprep.subr.mxu0 0.0
    %1382 = vmatpush1.msra.mxu0 0.0
    %1383 = vmatprep.subr.mxu0 0.0
    %1384 = vmatpush1.msra.mxu0 0.0
    %1385 = vmatprep.subr.mxu0 0.0
    %1386 = vmatpush1.msra.mxu0 0.0
    %1387 = vmatprep.subr.mxu0 0.0
    %1388 = vmatpush1.msra.mxu0 0.0
    %1389 = vmatprep.subr.mxu0 0.0
    %1390 = vmatpush1.msra.mxu0 0.0
    %1391 = vmatprep.subr.mxu0 0.0
    %1392 = vmatpush1.msra.mxu0 0.0
    %1393 = vmatprep.subr.mxu0 0.0
    %1394 = vmatpush1.msra.mxu0 0.0
    %1395 = vmatprep.subr.mxu0 0.0
    %1396 = vmatpush1.msra.mxu0 0.0
    %1397 = vmatprep.subr.mxu0 0.0
    %1398 = vmatpush1.msra.mxu0 0.0
    %1399 = vmatprep.subr.mxu0 0.0
    %1400 = vmatpush1.msra.mxu0 0.0
    %1401 = vmatprep.subr.mxu0 0.0
    %1402 = vmatpush1.msra.mxu0 0.0
    %1403 = vmatprep.mubr.f32.mxu0 0.0
    %1404 = vmatmul.mubr.f32.gmra.mrb[0].mxu0 %v1337
    %v1405 = vpop.f32.mrb[0].mxu0
    %v1406 = vadd.f32 0.0, %v1405
    %v1407 = vpop.f32.mrb[0].mxu0
    %1408 = vdwg.mxu0
    %1409 = vrot.lane.b32.xlu0 %v159, 40
    %v1410 = vpop.permute.xlu0 %1409
    %v1413 = vsel %vm167, %v1332, 0
    %1415 = vmatprep.subr.mxu0 0.0
    %1416 = vmatpush1.msra.mxu0 %v1410
    %1417 = vmatprep.subr.mxu0 0.0
    %1418 = vmatpush1.msra.mxu0 0.0
    %1419 = vmatprep.subr.mxu0 0.0
    %1420 = vmatpush1.msra.mxu0 0.0
    %1421 = vmatprep.subr.mxu0 0.0
    %1422 = vmatpush1.msra.mxu0 0.0
    %1423 = vmatprep.subr.mxu0 0.0
    %1424 = vmatpush1.msra.mxu0 0.0
    %1425 = vmatprep.subr.mxu0 0.0
    %1426 = vmatpush1.msra.mxu0 0.0
    %1427 = vmatprep.subr.mxu0 0.0
    %1428 = vmatpush1.msra.mxu0 0.0
    %1429 = vmatprep.subr.mxu0 0.0
    %1430 = vmatpush1.msra.mxu0 0.0
    %1431 = vmatprep.subr.mxu0 0.0
    %1432 = vmatpush1.msra.mxu0 0.0
    %1433 = vmatprep.subr.mxu0 0.0
    %1434 = vmatpush1.msra.mxu0 0.0
    %1435 = vmatprep.subr.mxu0 0.0
    %1436 = vmatpush1.msra.mxu0 0.0
    %1437 = vmatprep.subr.mxu0 0.0
    %1438 = vmatpush1.msra.mxu0 0.0
    %1439 = vmatprep.subr.mxu0 0.0
    %1440 = vmatpush1.msra.mxu0 0.0
    %1441 = vmatprep.subr.mxu0 0.0
    %1442 = vmatpush1.msra.mxu0 0.0
    %1443 = vmatprep.subr.mxu0 0.0
    %1444 = vmatpush1.msra.mxu0 0.0
    %1445 = vmatprep.subr.mxu0 0.0
    %1446 = vmatpush1.msra.mxu0 0.0
    %1447 = vmatprep.subr.mxu0 0.0
    %1448 = vmatpush1.msra.mxu0 0.0
    %1449 = vmatprep.subr.mxu0 0.0
    %1450 = vmatpush1.msra.mxu0 0.0
    %1451 = vmatprep.subr.mxu0 0.0
    %1452 = vmatpush1.msra.mxu0 0.0
    %1453 = vmatprep.subr.mxu0 0.0
    %1454 = vmatpush1.msra.mxu0 0.0
    %1455 = vmatprep.subr.mxu0 0.0
    %1456 = vmatpush1.msra.mxu0 0.0
    %1457 = vmatprep.subr.mxu0 0.0
    %1458 = vmatpush1.msra.mxu0 0.0
    %1459 = vmatprep.subr.mxu0 0.0
    %1460 = vmatpush1.msra.mxu0 0.0
    %1461 = vmatprep.subr.mxu0 0.0
    %1462 = vmatpush1.msra.mxu0 0.0
    %1463 = vmatprep.subr.mxu0 0.0
    %1464 = vmatpush1.msra.mxu0 0.0
    %1465 = vmatprep.subr.mxu0 0.0
    %1466 = vmatpush1.msra.mxu0 0.0
    %1467 = vmatprep.subr.mxu0 0.0
    %1468 = vmatpush1.msra.mxu0 0.0
    %1469 = vmatprep.subr.mxu0 0.0
    %1470 = vmatpush1.msra.mxu0 0.0
    %1471 = vmatprep.subr.mxu0 0.0
    %1472 = vmatpush1.msra.mxu0 0.0
    %1473 = vmatprep.subr.mxu0 0.0
    %1474 = vmatpush1.msra.mxu0 0.0
    %1475 = vmatprep.subr.mxu0 0.0
    %1476 = vmatpush1.msra.mxu0 0.0
    %1477 = vmatprep.subr.mxu0 0.0
    %1478 = vmatpush1.msra.mxu0 0.0
    %1479 = vmatprep.mubr.f32.mxu0 0.0
    %1480 = vmatmul.mubr.f32.gmra.mrb[0].mxu0 %v1413
    %v1481 = vpop.f32.mrb[0].mxu0
    %v1482 = vadd.f32 0.0, %v1481
    %v1483 = vpop.f32.mrb[0].mxu0
    %1484 = vdwg.mxu0
    %1487 = vrot.lane.b32.xlu0 %v746, 8
    %v1488 = vpop.permute.xlu0 %1487
    %1489 = vrot.lane.b32.xlu0 %v822, 8
    %v1490 = vpop.permute.xlu0 %1489
    %1495 = vrot.lane.b32.xlu0 %v1076, 16
    %v1496 = vpop.permute.xlu0 %1495
    %1497 = vrot.lane.b32.xlu0 %v1152, 16
    %v1498 = vpop.permute.xlu0 %1497
    %1503 = vrot.lane.b32.xlu0 %v1406, 24
    %v1504 = vpop.permute.xlu0 %1503
    %1505 = vrot.lane.b32.xlu0 %v1482, 24
    %v1506 = vpop.permute.xlu0 %1505
    %v1509 = vsel %vm167, %v416, %v1488
    %v1510 = vsel %vm167, %v492, %v1490
    %vm1511 = vcmask 130048
    %v1512 = vsel %vm1511, %v1509, %v1496
    %v1513 = vsel %vm1511, %v1510, %v1498
    %vm1514 = vcmask 195584
    %v1515 = vsel %vm1514, %v1512, %v1504
    %v1516 = vsel %vm1514, %v1513, %v1506
    %v1517 = vld [vmem:[%s3] sm:$0xff]
    %v1518 = vld [vmem:[%s3 + $0x8] sm:$0xff]
    %v1519 = vld [vmem:[%s3 + $0x10] sm:$0xff]
    %v1520 = vld [vmem:[%s3 + $0x18] sm:$0xff]
    %v1521 = vld [vmem:[%s4] sm:$0x1]
    %v1523 = vlaneseq
    %v1524 = vshrl.u32 %v1523, 7
    %v1525 = vsub.s32 0, %v1524
    %v1526 = vrot.slane %v1521, %v1525
    %v1529 = vsel %vm80, %v1515, 0
    %v1532 = vsel %vm80, %v1516, 0
    %1534 = vmatprep.subr.mxu0 0.0
    %1535 = vmatpush1.msra.mxu0 %v1517
    %1536 = vmatprep.subr.mxu0 0.0
    %1537 = vmatpush1.msra.mxu0 %v1518
    %1538 = vmatprep.subr.mxu0 0.0
    %1539 = vmatpush1.msra.mxu0 %v1519
    %1540 = vmatprep.subr.mxu0 0.0
    %1541 = vmatpush1.msra.mxu0 %v1520
    %1542 = vmatprep.subr.mxu0 0.0
    %1543 = vmatpush1.msra.mxu0 0.0
    %1544 = vmatprep.subr.mxu0 0.0
    %1545 = vmatpush1.msra.mxu0 0.0
    %1546 = vmatprep.subr.mxu0 0.0
    %1547 = vmatpush1.msra.mxu0 0.0
    %1548 = vmatprep.subr.mxu0 0.0
    %1549 = vmatpush1.msra.mxu0 0.0
    %1550 = vmatprep.subr.mxu0 0.0
    %1551 = vmatpush1.msra.mxu0 0.0
    %1552 = vmatprep.subr.mxu0 0.0
    %1553 = vmatpush1.msra.mxu0 0.0
    %1554 = vmatprep.subr.mxu0 0.0
    %1555 = vmatpush1.msra.mxu0 0.0
    %1556 = vmatprep.subr.mxu0 0.0
    %1557 = vmatpush1.msra.mxu0 0.0
    %1558 = vmatprep.subr.mxu0 0.0
    %1559 = vmatpush1.msra.mxu0 0.0
    %1560 = vmatprep.subr.mxu0 0.0
    %1561 = vmatpush1.msra.mxu0 0.0
    %1562 = vmatprep.subr.mxu0 0.0
    %1563 = vmatpush1.msra.mxu0 0.0
    %1564 = vmatprep.subr.mxu0 0.0
    %1565 = vmatpush1.msra.mxu0 0.0
    %1566 = vmatprep.subr.mxu0 0.0
    %1567 = vmatpush1.msra.mxu0 0.0
    %1568 = vmatprep.subr.mxu0 0.0
    %1569 = vmatpush1.msra.mxu0 0.0
    %1570 = vmatprep.subr.mxu0 0.0
    %1571 = vmatpush1.msra.mxu0 0.0
    %1572 = vmatprep.subr.mxu0 0.0
    %1573 = vmatpush1.msra.mxu0 0.0
    %1574 = vmatprep.subr.mxu0 0.0
    %1575 = vmatpush1.msra.mxu0 0.0
    %1576 = vmatprep.subr.mxu0 0.0
    %1577 = vmatpush1.msra.mxu0 0.0
    %1578 = vmatprep.subr.mxu0 0.0
    %1579 = vmatpush1.msra.mxu0 0.0
    %1580 = vmatprep.subr.mxu0 0.0
    %1581 = vmatpush1.msra.mxu0 0.0
    %1582 = vmatprep.subr.mxu0 0.0
    %1583 = vmatpush1.msra.mxu0 0.0
    %1584 = vmatprep.subr.mxu0 0.0
    %1585 = vmatpush1.msra.mxu0 0.0
    %1586 = vmatprep.subr.mxu0 0.0
    %1587 = vmatpush1.msra.mxu0 0.0
    %1588 = vmatprep.subr.mxu0 0.0
    %1589 = vmatpush1.msra.mxu0 0.0
    %1590 = vmatprep.subr.mxu0 0.0
    %1591 = vmatpush1.msra.mxu0 0.0
    %1592 = vmatprep.subr.mxu0 0.0
    %1593 = vmatpush1.msra.mxu0 0.0
    %1594 = vmatprep.subr.mxu0 0.0
    %1595 = vmatpush1.msra.mxu0 0.0
    %1596 = vmatprep.subr.mxu0 0.0
    %1597 = vmatpush1.msra.mxu0 0.0
    %1598 = vmatprep.mubr.f32.mxu0 0.0
    %1599 = vmatmul.mubr.f32.gmra.mrb[0].mxu0 %v1529
    %v1600 = vpop.f32.mrb[0].mxu0
    %v1601 = vadd.f32 %v1526, %v1600
    %v1602 = vpop.f32.mrb[0].mxu0
    %1603 = vmatprep.mubr.f32.mxu0 0.0
    %1604 = vmatmul.mubr.f32.gmra.mrb[0].mxu0 %v1532
    %v1605 = vpop.f32.mrb[0].mxu0
    %v1606 = vadd.f32 %v1526, %v1605
    %v1607 = vpop.f32.mrb[0].mxu0
    %1608 = vdwg.mxu0
    %v1609 = vadd.f32 %v1601, %v74
    %v1610 = vadd.f32 %v1606, %v75
    %v1611 = vsel %vm80, %v1609, 0.0
    %1612 = vadd.xlane.f32.xlu0 %v1611
    %v1613 = vpop.xlane.xlu0 %1612
    %v1614 = vsel %vm80, %v1610, 0.0
    %1615 = vadd.xlane.f32.xlu0 %v1614
    %v1616 = vpop.xlane.xlu0 %1615
    %v1617 = vrcp.pop 32.0
    %v1618 = vmul.f32 %v1613, %v1617
    %v1619 = vmul.f32 %v1616, %v1617
    %v1620 = vsub.f32 %v1609, %v1618
    %v1621 = vsub.f32 %v1610, %v1619
    %v1622 = vmul.f32 %v1620, %v1620
    %v1623 = vmul.f32 %v1621, %v1621
    %v1624 = vsel %vm80, %v1622, 0.0
    %1625 = vadd.xlane.f32.xlu0 %v1624
    %v1626 = vpop.xlane.xlu0 %1625
    %v1627 = vsel %vm80, %v1623, 0.0
    %1628 = vadd.xlane.f32.xlu0 %v1627
    %v1629 = vpop.xlane.xlu0 %1628
    %v1630 = vmul.f32 %v1626, %v1617
    %v1631 = vmul.f32 %v1629, %v1617
    %v1632 = vadd.f32 %v1630, 1e-05
    %v1633 = vadd.f32 %v1631, 1e-05
    %v1634 = vrsqrt.pop %v1632
    %v1635 = vrsqrt.pop %v1633
    %v1636 = vmul.f32 %v1620, %v1634
    %v1637 = vmul.f32 %v1621, %v1635
    %v1638 = vld [vmem:[%s5] sm:$0x1]
    %v1640 = vlaneseq
    %v1641 = vshrl.u32 %v1640, 7
    %v1642 = vsub.s32 0, %v1641
    %v1643 = vrot.slane %v1638, %v1642
    %v1645 = vmul.f32 %v1636, %v1643
    %v1646 = vmul.f32 %v1637, %v1643
    %v1647 = vld [vmem:[%s6] sm:$0x1]
    %v1649 = vlaneseq
    %v1650 = vshrl.u32 %v1649, 7
    %v1651 = vsub.s32 0, %v1650
    %v1652 = vrot.slane %v1647, %v1651
    %v1654 = vadd.f32 %v1645, %v1652
    %v1655 = vadd.f32 %v1646, %v1652
    %v1656 = vld [vmem:[%s7] sm:$0xff]
    %v1657 = vld [vmem:[%s7 + $0x8] sm:$0xff]
    %v1658 = vld [vmem:[%s7 + $0x10] sm:$0xff]
    %v1659 = vld [vmem:[%s7 + $0x18] sm:$0xff]
    %v1660 = vld [vmem:[%s8] sm:$0x1]
    %v1662 = vlaneseq
    %v1663 = vshrl.u32 %v1662, 7
    %v1664 = vsub.s32 0, %v1663
    %v1665 = vrot.slane %v1660, %v1664
    %v1668 = vsel %vm80, %v1654, 0
    %v1671 = vsel %vm80, %v1655, 0
    %1673 = vmatprep.subr.mxu0 0.0
    %1674 = vmatpush1.msra.mxu0 %v1656
    %1675 = vmatprep.subr.mxu0 0.0
    %1676 = vmatpush1.msra.mxu0 %v1657
    %1677 = vmatprep.subr.mxu0 0.0
    %1678 = vmatpush1.msra.mxu0 %v1658
    %1679 = vmatprep.subr.mxu0 0.0
    %1680 = vmatpush1.msra.mxu0 %v1659
    %1681 = vmatprep.subr.mxu0 0.0
    %1682 = vmatpush1.msra.mxu0 0.0
    %1683 = vmatprep.subr.mxu0 0.0
    %1684 = vmatpush1.msra.mxu0 0.0
    %1685 = vmatprep.subr.mxu0 0.0
    %1686 = vmatpush1.msra.mxu0 0.0
    %1687 = vmatprep.subr.mxu0 0.0
    %1688 = vmatpush1.msra.mxu0 0.0
    %1689 = vmatprep.subr.mxu0 0.0
    %1690 = vmatpush1.msra.mxu0 0.0
    %1691 = vmatprep.subr.mxu0 0.0
    %1692 = vmatpush1.msra.mxu0 0.0
    %1693 = vmatprep.subr.mxu0 0.0
    %1694 = vmatpush1.msra.mxu0 0.0
    %1695 = vmatprep.subr.mxu0 0.0
    %1696 = vmatpush1.msra.mxu0 0.0
    %1697 = vmatprep.subr.mxu0 0.0
    %1698 = vmatpush1.msra.mxu0 0.0
    %1699 = vmatprep.subr.mxu0 0.0
    %1700 = vmatpush1.msra.mxu0 0.0
    %1701 = vmatprep.subr.mxu0 0.0
    %1702 = vmatpush1.msra.mxu0 0.0
    %1703 = vmatprep.subr.mxu0 0.0
    %1704 = vmatpush1.msra.mxu0 0.0
    %1705 = vmatprep.subr.mxu0 0.0
    %1706 = vmatpush1.msra.mxu0 0.0
    %1707 = vmatprep.subr.mxu0 0.0
    %1708 = vmatpush1.msra.mxu0 0.0
    %1709 = vmatprep.subr.mxu0 0.0
    %1710 = vmatpush1.msra.mxu0 0.0
    %1711 = vmatprep.subr.mxu0 0.0
    %1712 = vmatpush1.msra.mxu0 0.0
    %1713 = vmatprep.subr.mxu0 0.0
    %1714 = vmatpush1.msra.mxu0 0.0
    %1715 = vmatprep.subr.mxu0 0.0
    %1716 = vmatpush1.msra.mxu0 0.0
    %1717 = vmatprep.subr.mxu0 0.0
    %1718 = vmatpush1.msra.mxu0 0.0
    %1719 = vmatprep.subr.mxu0 0.0
    %1720 = vmatpush1.msra.mxu0 0.0
    %1721 = vmatprep.subr.mxu0 0.0
    %1722 = vmatpush1.msra.mxu0 0.0
    %1723 = vmatprep.subr.mxu0 0.0
    %1724 = vmatpush1.msra.mxu0 0.0
    %1725 = vmatprep.subr.mxu0 0.0
    %1726 = vmatpush1.msra.mxu0 0.0
    %1727 = vmatprep.subr.mxu0 0.0
    %1728 = vmatpush1.msra.mxu0 0.0
    %1729 = vmatprep.subr.mxu0 0.0
    %1730 = vmatpush1.msra.mxu0 0.0
    %1731 = vmatprep.subr.mxu0 0.0
    %1732 = vmatpush1.msra.mxu0 0.0
    %1733 = vmatprep.subr.mxu0 0.0
    %1734 = vmatpush1.msra.mxu0 0.0
    %1735 = vmatprep.subr.mxu0 0.0
    %1736 = vmatpush1.msra.mxu0 0.0
    %1737 = vmatprep.mubr.f32.mxu0 0.0
    %1738 = vmatmul.mubr.f32.gmra.mrb[0].mxu0 %v1668
    %v1739 = vpop.f32.mrb[0].mxu0
    %v1740 = vadd.f32 %v1665, %v1739
    %v1741 = vpop.f32.mrb[0].mxu0
    %1742 = vmatprep.mubr.f32.mxu0 0.0
    %1743 = vmatmul.mubr.f32.gmra.mrb[0].mxu0 %v1671
    %v1744 = vpop.f32.mrb[0].mxu0
    %v1745 = vadd.f32 %v1665, %v1744
    %v1746 = vpop.f32.mrb[0].mxu0
    %1747 = vdwg.mxu0
    %v1748 = vmax.f32 %v1740, 0.0
    %v1749 = vmax.f32 %v1745, 0.0
    %v1750 = vld [vmem:[%s9] sm:$0xff]
    %v1751 = vld [vmem:[%s9 + $0x8] sm:$0xff]
    %v1752 = vld [vmem:[%s9 + $0x10] sm:$0xff]
    %v1753 = vld [vmem:[%s9 + $0x18] sm:$0xff]
    %v1754 = vld [vmem:[%s9 + $0x20] sm:$0xff]
    %v1755 = vld [vmem:[%s9 + $0x28] sm:$0xff]
    %v1756 = vld [vmem:[%s9 + $0x30] sm:$0xff]
    %v1757 = vld [vmem:[%s9 + $0x38] sm:$0xff]
    %v1758 = vld [vmem:[%s10] sm:$0x1]
    %v1760 = vlaneseq
    %v1761 = vshrl.u32 %v1760, 7
    %v1762 = vsub.s32 0, %v1761
    %v1763 = vrot.slane %v1758, %v1762
    %vm1765 = vcmask 523264
    %v1767 = vsel %vm1765, %v1748, 0
    %v1770 = vsel %vm1765, %v1749, 0
    %1772 = vmatprep.subr.mxu0 0.0
    %1773 = vmatpush1.msra.mxu0 %v1750
    %1774 = vmatprep.subr.mxu0 0.0
    %1775 = vmatpush1.msra.mxu0 %v1751
    %1776 = vmatprep.subr.mxu0 0.0
    %1777 = vmatpush1.msra.mxu0 %v1752
    %1778 = vmatprep.subr.mxu0 0.0
    %1779 = vmatpush1.msra.mxu0 %v1753
    %1780 = vmatprep.subr.mxu0 0.0
    %1781 = vmatpush1.msra.mxu0 %v1754
    %1782 = vmatprep.subr.mxu0 0.0
    %1783 = vmatpush1.msra.mxu0 %v1755
    %1784 = vmatprep.subr.mxu0 0.0
    %1785 = vmatpush1.msra.mxu0 %v1756
    %1786 = vmatprep.subr.mxu0 0.0
    %1787 = vmatpush1.msra.mxu0 %v1757
    %1788 = vmatprep.subr.mxu0 0.0
    %1789 = vmatpush1.msra.mxu0 0.0
    %1790 = vmatprep.subr.mxu0 0.0
    %1791 = vmatpush1.msra.mxu0 0.0
    %1792 = vmatprep.subr.mxu0 0.0
    %1793 = vmatpush1.msra.mxu0 0.0
    %1794 = vmatprep.subr.mxu0 0.0
    %1795 = vmatpush1.msra.mxu0 0.0
    %1796 = vmatprep.subr.mxu0 0.0
    %1797 = vmatpush1.msra.mxu0 0.0
    %1798 = vmatprep.subr.mxu0 0.0
    %1799 = vmatpush1.msra.mxu0 0.0
    %1800 = vmatprep.subr.mxu0 0.0
    %1801 = vmatpush1.msra.mxu0 0.0
    %1802 = vmatprep.subr.mxu0 0.0
    %1803 = vmatpush1.msra.mxu0 0.0
    %1804 = vmatprep.subr.mxu0 0.0
    %1805 = vmatpush1.msra.mxu0 0.0
    %1806 = vmatprep.subr.mxu0 0.0
    %1807 = vmatpush1.msra.mxu0 0.0
    %1808 = vmatprep.subr.mxu0 0.0
    %1809 = vmatpush1.msra.mxu0 0.0
    %1810 = vmatprep.subr.mxu0 0.0
    %1811 = vmatpush1.msra.mxu0 0.0
    %1812 = vmatprep.subr.mxu0 0.0
    %1813 = vmatpush1.msra.mxu0 0.0
    %1814 = vmatprep.subr.mxu0 0.0
    %1815 = vmatpush1.msra.mxu0 0.0
    %1816 = vmatprep.subr.mxu0 0.0
    %1817 = vmatpush1.msra.mxu0 0.0
    %1818 = vmatprep.subr.mxu0 0.0
    %1819 = vmatpush1.msra.mxu0 0.0
    %1820 = vmatprep.subr.mxu0 0.0
    %1821 = vmatpush1.msra.mxu0 0.0
    %1822 = vmatprep.subr.mxu0 0.0
    %1823 = vmatpush1.msra.mxu0 0.0
    %1824 = vmatprep.subr.mxu0 0.0
    %1825 = vmatpush1.msra.mxu0 0.0
    %1826 = vmatprep.subr.mxu0 0.0
    %1827 = vmatpush1.msra.mxu0 0.0
    %1828 = vmatprep.subr.mxu0 0.0
    %1829 = vmatpush1.msra.mxu0 0.0
    %1830 = vmatprep.subr.mxu0 0.0
    %1831 = vmatpush1.msra.mxu0 0.0
    %1832 = vmatprep.subr.mxu0 0.0
    %1833 = vmatpush1.msra.mxu0 0.0
    %1834 = vmatprep.subr.mxu0 0.0
    %1835 = vmatpush1.msra.mxu0 0.0
    %1836 = vmatprep.mubr.f32.mxu0 0.0
    %1837 = vmatmul.mubr.f32.gmra.mrb[0].mxu0 %v1767
    %v1838 = vpop.f32.mrb[0].mxu0
    %v1839 = vadd.f32 %v1763, %v1838
    %v1840 = vpop.f32.mrb[0].mxu0
    %1841 = vmatprep.mubr.f32.mxu0 0.0
    %1842 = vmatmul.mubr.f32.gmra.mrb[0].mxu0 %v1770
    %v1843 = vpop.f32.mrb[0].mxu0
    %v1844 = vadd.f32 %v1763, %v1843
    %v1845 = vpop.f32.mrb[0].mxu0
    %1846 = vdwg.mxu0
    %v1847 = vadd.f32 %v1839, %v1654
    %v1848 = vadd.f32 %v1844, %v1655
    %v1849 = vsel %vm80, %v1847, 0.0
    %1850 = vadd.xlane.f32.xlu0 %v1849
    %v1851 = vpop.xlane.xlu0 %1850
    %v1852 = vsel %vm80, %v1848, 0.0
    %1853 = vadd.xlane.f32.xlu0 %v1852
    %v1854 = vpop.xlane.xlu0 %1853
    %v1855 = vmul.f32 %v1851, %v1617
    %v1856 = vmul.f32 %v1854, %v1617
    %v1857 = vsub.f32 %v1847, %v1855
    %v1858 = vsub.f32 %v1848, %v1856
    %v1859 = vmul.f32 %v1857, %v1857
    %v1860 = vmul.f32 %v1858, %v1858
    %v1861 = vsel %vm80, %v1859, 0.0
    %1862 = vadd.xlane.f32.xlu0 %v1861
    %v1863 = vpop.xlane.xlu0 %1862
    %v1864 = vsel %vm80, %v1860, 0.0
    %1865 = vadd.xlane.f32.xlu0 %v1864
    %v1866 = vpop.xlane.xlu0 %1865
    %v1867 = vmul.f32 %v1863, %v1617
    %v1868 = vmul.f32 %v1866, %v1617
    %v1869 = vadd.f32 %v1867, 1e-05
    %v1870 = vadd.f32 %v1868, 1e-05
    %v1871 = vrsqrt.pop %v1869
    %v1872 = vrsqrt.pop %v1870
    %v1873 = vmul.f32 %v1857, %v1871
    %v1874 = vmul.f32 %v1858, %v1872
    %v1875 = vld [vmem:[%s11] sm:$0x1]
    %v1877 = vlaneseq
    %v1878 = vshrl.u32 %v1877, 7
    %v1879 = vsub.s32 0, %v1878
    %v1880 = vrot.slane %v1875, %v1879
    %v1882 = vmul.f32 %v1873, %v1880
    %v1883 = vmul.f32 %v1874, %v1880
    %v1884 = vld [vmem:[%s12] sm:$0x1]
    %v1886 = vlaneseq
    %v1887 = vshrl.u32 %v1886, 7
    %v1888 = vsub.s32 0, %v1887
    %v1889 = vrot.slane %v1884, %v1888
    %v1891 = vadd.f32 %v1882, %v1889
    %v1892 = vadd.f32 %v1883, %v1889
    %s1893 = scalar_lea.vmem %s2, 32
    %v1894 = vld [vmem:[%s1893] sm:$0xff]
    %v1895 = vld [vmem:[%s1893 + $0x8] sm:$0xff]
    %v1896 = vld [vmem:[%s1893 + $0x10] sm:$0xff]
    %v1897 = vld [vmem:[%s1893 + $0x18] sm:$0xff]
    %v1899 = vsel %vm80, %v1891, 0
    %v1902 = vsel %vm80, %v1892, 0
    %1904 = vmatprep.subr.mxu0 0.0
    %1905 = vmatpush1.msra.mxu0 %v1894
    %1906 = vmatprep.subr.mxu0 0.0
    %1907 = vmatpush1.msra.mxu0 %v1895
    %1908 = vmatprep.subr.mxu0 0.0
    %1909 = vmatpush1.msra.mxu0 %v1896
    %1910 = vmatprep.subr.mxu0 0.0
    %1911 = vmatpush1.msra.mxu0 %v1897
    %1912 = vmatprep.subr.mxu0 0.0
    %1913 = vmatpush1.msra.mxu0 0.0
    %1914 = vmatprep.subr.mxu0 0.0
    %1915 = vmatpush1.msra.mxu0 0.0
    %1916 = vmatprep.subr.mxu0 0.0
    %1917 = vmatpush1.msra.mxu0 0.0
    %1918 = vmatprep.subr.mxu0 0.0
    %1919 = vmatpush1.msra.mxu0 0.0
    %1920 = vmatprep.subr.mxu0 0.0
    %1921 = vmatpush1.msra.mxu0 0.0
    %1922 = vmatprep.subr.mxu0 0.0
    %1923 = vmatpush1.msra.mxu0 0.0
    %1924 = vmatprep.subr.mxu0 0.0
    %1925 = vmatpush1.msra.mxu0 0.0
    %1926 = vmatprep.subr.mxu0 0.0
    %1927 = vmatpush1.msra.mxu0 0.0
    %1928 = vmatprep.subr.mxu0 0.0
    %1929 = vmatpush1.msra.mxu0 0.0
    %1930 = vmatprep.subr.mxu0 0.0
    %1931 = vmatpush1.msra.mxu0 0.0
    %1932 = vmatprep.subr.mxu0 0.0
    %1933 = vmatpush1.msra.mxu0 0.0
    %1934 = vmatprep.subr.mxu0 0.0
    %1935 = vmatpush1.msra.mxu0 0.0
    %1936 = vmatprep.subr.mxu0 0.0
    %1937 = vmatpush1.msra.mxu0 0.0
    %1938 = vmatprep.subr.mxu0 0.0
    %1939 = vmatpush1.msra.mxu0 0.0
    %1940 = vmatprep.subr.mxu0 0.0
    %1941 = vmatpush1.msra.mxu0 0.0
    %1942 = vmatprep.subr.mxu0 0.0
    %1943 = vmatpush1.msra.mxu0 0.0
    %1944 = vmatprep.subr.mxu0 0.0
    %1945 = vmatpush1.msra.mxu0 0.0
    %1946 = vmatprep.subr.mxu0 0.0
    %1947 = vmatpush1.msra.mxu0 0.0
    %1948 = vmatprep.subr.mxu0 0.0
    %1949 = vmatpush1.msra.mxu0 0.0
    %1950 = vmatprep.subr.mxu0 0.0
    %1951 = vmatpush1.msra.mxu0 0.0
    %1952 = vmatprep.subr.mxu0 0.0
    %1953 = vmatpush1.msra.mxu0 0.0
    %1954 = vmatprep.subr.mxu0 0.0
    %1955 = vmatpush1.msra.mxu0 0.0
    %1956 = vmatprep.subr.mxu0 0.0
    %1957 = vmatpush1.msra.mxu0 0.0
    %1958 = vmatprep.subr.mxu0 0.0
    %1959 = vmatpush1.msra.mxu0 0.0
    %1960 = vmatprep.subr.mxu0 0.0
    %1961 = vmatpush1.msra.mxu0 0.0
    %1962 = vmatprep.subr.mxu0 0.0
    %1963 = vmatpush1.msra.mxu0 0.0
    %1964 = vmatprep.subr.mxu0 0.0
    %1965 = vmatpush1.msra.mxu0 0.0
    %1966 = vmatprep.subr.mxu0 0.0
    %1967 = vmatpush1.msra.mxu0 0.0
    %1968 = vmatprep.mubr.f32.mxu0 0.0
    %1969 = vmatmul.mubr.f32.gmra.mrb[0].mxu0 %v1899
    %v1970 = vpop.f32.mrb[0].mxu0
    %v1971 = vadd.f32 0.0, %v1970
    %v1972 = vpop.f32.mrb[0].mxu0
    %1973 = vmatprep.mubr.f32.mxu0 0.0
    %1974 = vmatmul.mubr.f32.gmra.mrb[0].mxu0 %v1902
    %v1975 = vpop.f32.mrb[0].mxu0
    %v1976 = vadd.f32 0.0, %v1975
    %v1977 = vpop.f32.mrb[0].mxu0
    %1978 = vdwg.mxu0
    %v1979 = vmul.f32 %v1971, 0.35355338
    %v1980 = vmul.f32 %v1976, 0.35355338
    %1982 = vrot.lane.b32.xlu0 %v1971, 96
    %v1983 = vpop.permute.xlu0 %1982
    %v1985 = vsel %vm167, %v1979, 0
    %v1987 = vsel %vm167, %v1983, 0
    %1989 = vmatprep.subr.mxu0 0.0
    %1990 = vmatpush1.xpose.msra.mxu0 %v1987
    %1991 = vmatprep.subr.mxu0 0.0
    %1992 = vmatpush1.xpose.msra.mxu0 0.0
    %1993 = vmatprep.subr.mxu0 0.0
    %1994 = vmatpush1.xpose.msra.mxu0 0.0
    %1995 = vmatprep.subr.mxu0 0.0
    %1996 = vmatpush1.xpose.msra.mxu0 0.0
    %1997 = vmatprep.subr.mxu0 0.0
    %1998 = vmatpush1.xpose.msra.mxu0 0.0
    %1999 = vmatprep.subr.mxu0 0.0
    %2000 = vmatpush1.xpose.msra.mxu0 0.0
    %2001 = vmatprep.subr.mxu0 0.0
    %2002 = vmatpush1.xpose.msra.mxu0 0.0
    %2003 = vmatprep.subr.mxu0 0.0
    %2004 = vmatpush1.xpose.msra.mxu0 0.0
    %2005 = vmatprep.subr.mxu0 0.0
    %2006 = vmatpush1.xpose.msra.mxu0 0.0
    %2007 = vmatprep.subr.mxu0 0.0
    %2008 = vmatpush1.xpose.msra.mxu0 0.0
    %2009 = vmatprep.subr.mxu0 0.0
    %2010 = vmatpush1.xpose.msra.mxu0 0.0
    %2011 = vmatprep.subr.mxu0 0.0
    %2012 = vmatpush1.xpose.msra.mxu0 0.0
    %2013 = vmatprep.subr.mxu0 0.0
    %2014 = vmatpush1.xpose.msra.mxu0 0.0
    %2015 = vmatprep.subr.mxu0 0.0
    %2016 = vmatpush1.xpose.msra.mxu0 0.0
    %2017 = vmatprep.subr.mxu0 0.0
    %2018 = vmatpush1.xpose.msra.mxu0 0.0
    %2019 = vmatprep.subr.mxu0 0.0
    %2020 = vmatpush1.xpose.msra.mxu0 0.0
    %2021 = vmatprep.subr.mxu0 0.0
    %2022 = vmatpush1.xpose.msra.mxu0 0.0
    %2023 = vmatprep.subr.mxu0 0.0
    %2024 = vmatpush1.xpose.msra.mxu0 0.0
    %2025 = vmatprep.subr.mxu0 0.0
    %2026 = vmatpush1.xpose.msra.mxu0 0.0
    %2027 = vmatprep.subr.mxu0 0.0
    %2028 = vmatpush1.xpose.msra.mxu0 0.0
    %2029 = vmatprep.subr.mxu0 0.0
    %2030 = vmatpush1.xpose.msra.mxu0 0.0
    %2031 = vmatprep.subr.mxu0 0.0
    %2032 = vmatpush1.xpose.msra.mxu0 0.0
    %2033 = vmatprep.subr.mxu0 0.0
    %2034 = vmatpush1.xpose.msra.mxu0 0.0
    %2035 = vmatprep.subr.mxu0 0.0
    %2036 = vmatpush1.xpose.msra.mxu0 0.0
    %2037 = vmatprep.subr.mxu0 0.0
    %2038 = vmatpush1.xpose.msra.mxu0 0.0
    %2039 = vmatprep.subr.mxu0 0.0
    %2040 = vmatpush1.xpose.msra.mxu0 0.0
    %2041 = vmatprep.subr.mxu0 0.0
    %2042 = vmatpush1.xpose.msra.mxu0 0.0
    %2043 = vmatprep.subr.mxu0 0.0
    %2044 = vmatpush1.xpose.msra.mxu0 0.0
    %2045 = vmatprep.subr.mxu0 0.0
    %2046 = vmatpush1.xpose.msra.mxu0 0.0
    %2047 = vmatprep.subr.mxu0 0.0
    %2048 = vmatpush1.xpose.msra.mxu0 0.0
    %2049 = vmatprep.subr.mxu0 0.0
    %2050 = vmatpush1.xpose.msra.mxu0 0.0
    %2051 = vmatprep.subr.mxu0 0.0
    %2052 = vmatpush1.xpose.msra.mxu0 0.0
    %2053 = vmatprep.mubr.f32.mxu0 0.0
    %2054 = vmatmul.mubr.f32.gmra.mrb[0].mxu0 %v1985
    %v2055 = vpop.f32.mrb[0].mxu0
    %v2056 = vadd.f32 0.0, %v2055
    %v2057 = vpop.f32.mrb[0].mxu0
    %2058 = vdwg.mxu0
    %2060 = vrot.lane.b32.xlu0 %v1976, 96
    %v2061 = vpop.permute.xlu0 %2060
    %v2063 = vsel %vm167, %v1980, 0
    %v2065 = vsel %vm167, %v2061, 0
    %2067 = vmatprep.subr.mxu0 0.0
    %2068 = vmatpush1.xpose.msra.mxu0 %v2065
    %2069 = vmatprep.subr.mxu0 0.0
    %2070 = vmatpush1.xpose.msra.mxu0 0.0
    %2071 = vmatprep.subr.mxu0 0.0
    %2072 = vmatpush1.xpose.msra.mxu0 0.0
    %2073 = vmatprep.subr.mxu0 0.0
    %2074 = vmatpush1.xpose.msra.mxu0 0.0
    %2075 = vmatprep.subr.mxu0 0.0
    %2076 = vmatpush1.xpose.msra.mxu0 0.0
    %2077 = vmatprep.subr.mxu0 0.0
    %2078 = vmatpush1.xpose.msra.mxu0 0.0
    %2079 = vmatprep.subr.mxu0 0.0
    %2080 = vmatpush1.xpose.msra.mxu0 0.0
    %2081 = vmatprep.subr.mxu0 0.0
    %2082 = vmatpush1.xpose.msra.mxu0 0.0
    %2083 = vmatprep.subr.mxu0 0.0
    %2084 = vmatpush1.xpose.msra.mxu0 0.0
    %2085 = vmatprep.subr.mxu0 0.0
    %2086 = vmatpush1.xpose.msra.mxu0 0.0
    %2087 = vmatprep.subr.mxu0 0.0
    %2088 = vmatpush1.xpose.msra.mxu0 0.0
    %2089 = vmatprep.subr.mxu0 0.0
    %2090 = vmatpush1.xpose.msra.mxu0 0.0
    %2091 = vmatprep.subr.mxu0 0.0
    %2092 = vmatpush1.xpose.msra.mxu0 0.0
    %2093 = vmatprep.subr.mxu0 0.0
    %2094 = vmatpush1.xpose.msra.mxu0 0.0
    %2095 = vmatprep.subr.mxu0 0.0
    %2096 = vmatpush1.xpose.msra.mxu0 0.0
    %2097 = vmatprep.subr.mxu0 0.0
    %2098 = vmatpush1.xpose.msra.mxu0 0.0
    %2099 = vmatprep.subr.mxu0 0.0
    %2100 = vmatpush1.xpose.msra.mxu0 0.0
    %2101 = vmatprep.subr.mxu0 0.0
    %2102 = vmatpush1.xpose.msra.mxu0 0.0
    %2103 = vmatprep.subr.mxu0 0.0
    %2104 = vmatpush1.xpose.msra.mxu0 0.0
    %2105 = vmatprep.subr.mxu0 0.0
    %2106 = vmatpush1.xpose.msra.mxu0 0.0
    %2107 = vmatprep.subr.mxu0 0.0
    %2108 = vmatpush1.xpose.msra.mxu0 0.0
    %2109 = vmatprep.subr.mxu0 0.0
    %2110 = vmatpush1.xpose.msra.mxu0 0.0
    %2111 = vmatprep.subr.mxu0 0.0
    %2112 = vmatpush1.xpose.msra.mxu0 0.0
    %2113 = vmatprep.subr.mxu0 0.0
    %2114 = vmatpush1.xpose.msra.mxu0 0.0
    %2115 = vmatprep.subr.mxu0 0.0
    %2116 = vmatpush1.xpose.msra.mxu0 0.0
    %2117 = vmatprep.subr.mxu0 0.0
    %2118 = vmatpush1.xpose.msra.mxu0 0.0
    %2119 = vmatprep.subr.mxu0 0.0
    %2120 = vmatpush1.xpose.msra.mxu0 0.0
    %2121 = vmatprep.subr.mxu0 0.0
    %2122 = vmatpush1.xpose.msra.mxu0 0.0
    %2123 = vmatprep.subr.mxu0 0.0
    %2124 = vmatpush1.xpose.msra.mxu0 0.0
    %2125 = vmatprep.subr.mxu0 0.0
    %2126 = vmatpush1.xpose.msra.mxu0 0.0
    %2127 = vmatprep.subr.mxu0 0.0
    %2128 = vmatpush1.xpose.msra.mxu0 0.0
    %2129 = vmatprep.subr.mxu0 0.0
    %2130 = vmatpush1.xpose.msra.mxu0 0.0
    %2131 = vmatprep.mubr.f32.mxu0 0.0
    %2132 = vmatmul.mubr.f32.gmra.mrb[0].mxu0 %v2063
    %v2133 = vpop.f32.mrb[0].mxu0
    %v2134 = vadd.f32 0.0, %v2133
    %v2135 = vpop.f32.mrb[0].mxu0
    %2136 = vdwg.mxu0
    %v2137 = vsel %vm167, %v2056, -inf
    %2138 = vmax.xlane.f32.xlu0 %v2137
    %v2139 = vpop.xlane.xlu0 %2138
    %v2140 = vsel %vm167, %v2134, -inf
    %2141 = vmax.xlane.f32.xlu0 %v2140
    %v2142 = vpop.xlane.xlu0 %2141
    %v2143 = vsub.f32 %v2056, %v2139
    %v2144 = vsub.f32 %v2134, %v2142
    %v2145 = vmul.f32 %v2143, 1.442695
    %v2146 = vpow.pop %v2145
    %v2147 = vmul.f32 %v2144, 1.442695
    %v2148 = vpow.pop %v2147
    %v2149 = vsel %vm167, %v2146, 0.0
    %2150 = vadd.xlane.f32.xlu0 %v2149
    %v2151 = vpop.xlane.xlu0 %2150
    %v2152 = vsel %vm167, %v2148, 0.0
    %2153 = vadd.xlane.f32.xlu0 %v2152
    %v2154 = vpop.xlane.xlu0 %2153
    %v2155 = vrcp.pop %v2151
    %v2156 = vrcp.pop %v2154
    %v2157 = vmul.f32 %v2146, %v2155
    %v2158 = vmul.f32 %v2148, %v2156
    %2159 = vrot.lane.b32.xlu0 %v1971, 64
    %v2160 = vpop.permute.xlu0 %2159
    %v2163 = vsel %vm167, %v2157, 0
    %2165 = vmatprep.subr.mxu0 0.0
    %2166 = vmatpush1.msra.mxu0 %v2160
    %2167 = vmatprep.subr.mxu0 0.0
    %2168 = vmatpush1.msra.mxu0 0.0
    %2169 = vmatprep.subr.mxu0 0.0
    %2170 = vmatpush1.msra.mxu0 0.0
    %2171 = vmatprep.subr.mxu0 0.0
    %2172 = vmatpush1.msra.mxu0 0.0
    %2173 = vmatprep.subr.mxu0 0.0
    %2174 = vmatpush1.msra.mxu0 0.0
    %2175 = vmatprep.subr.mxu0 0.0
    %2176 = vmatpush1.msra.mxu0 0.0
    %2177 = vmatprep.subr.mxu0 0.0
    %2178 = vmatpush1.msra.mxu0 0.0
    %2179 = vmatprep.subr.mxu0 0.0
    %2180 = vmatpush1.msra.mxu0 0.0
    %2181 = vmatprep.subr.mxu0 0.0
    %2182 = vmatpush1.msra.mxu0 0.0
    %2183 = vmatprep.subr.mxu0 0.0
    %2184 = vmatpush1.msra.mxu0 0.0
    %2185 = vmatprep.subr.mxu0 0.0
    %2186 = vmatpush1.msra.mxu0 0.0
    %2187 = vmatprep.subr.mxu0 0.0
    %2188 = vmatpush1.msra.mxu0 0.0
    %2189 = vmatprep.subr.mxu0 0.0
    %2190 = vmatpush1.msra.mxu0 0.0
    %2191 = vmatprep.subr.mxu0 0.0
    %2192 = vmatpush1.msra.mxu0 0.0
    %2193 = vmatprep.subr.mxu0 0.0
    %2194 = vmatpush1.msra.mxu0 0.0
    %2195 = vmatprep.subr.mxu0 0.0
    %2196 = vmatpush1.msra.mxu0 0.0
    %2197 = vmatprep.subr.mxu0 0.0
    %2198 = vmatpush1.msra.mxu0 0.0
    %2199 = vmatprep.subr.mxu0 0.0
    %2200 = vmatpush1.msra.mxu0 0.0
    %2201 = vmatprep.subr.mxu0 0.0
    %2202 = vmatpush1.msra.mxu0 0.0
    %2203 = vmatprep.subr.mxu0 0.0
    %2204 = vmatpush1.msra.mxu0 0.0
    %2205 = vmatprep.subr.mxu0 0.0
    %2206 = vmatpush1.msra.mxu0 0.0
    %2207 = vmatprep.subr.mxu0 0.0
    %2208 = vmatpush1.msra.mxu0 0.0
    %2209 = vmatprep.subr.mxu0 0.0
    %2210 = vmatpush1.msra.mxu0 0.0
    %2211 = vmatprep.subr.mxu0 0.0
    %2212 = vmatpush1.msra.mxu0 0.0
    %2213 = vmatprep.subr.mxu0 0.0
    %2214 = vmatpush1.msra.mxu0 0.0
    %2215 = vmatprep.subr.mxu0 0.0
    %2216 = vmatpush1.msra.mxu0 0.0
    %2217 = vmatprep.subr.mxu0 0.0
    %2218 = vmatpush1.msra.mxu0 0.0
    %2219 = vmatprep.subr.mxu0 0.0
    %2220 = vmatpush1.msra.mxu0 0.0
    %2221 = vmatprep.subr.mxu0 0.0
    %2222 = vmatpush1.msra.mxu0 0.0
    %2223 = vmatprep.subr.mxu0 0.0
    %2224 = vmatpush1.msra.mxu0 0.0
    %2225 = vmatprep.subr.mxu0 0.0
    %2226 = vmatpush1.msra.mxu0 0.0
    %2227 = vmatprep.subr.mxu0 0.0
    %2228 = vmatpush1.msra.mxu0 0.0
    %2229 = vmatprep.mubr.f32.mxu0 0.0
    %2230 = vmatmul.mubr.f32.gmra.mrb[0].mxu0 %v2163
    %v2231 = vpop.f32.mrb[0].mxu0
    %v2232 = vadd.f32 0.0, %v2231
    %v2233 = vpop.f32.mrb[0].mxu0
    %2234 = vdwg.mxu0
    %2235 = vrot.lane.b32.xlu0 %v1976, 64
    %v2236 = vpop.permute.xlu0 %2235
    %v2239 = vsel %vm167, %v2158, 0
    %2241 = vmatprep.subr.mxu0 0.0
    %2242 = vmatpush1.msra.mxu0 %v2236
    %2243 = vmatprep.subr.mxu0 0.0
    %2244 = vmatpush1.msra.mxu0 0.0
    %2245 = vmatprep.subr.mxu0 0.0
    %2246 = vmatpush1.msra.mxu0 0.0
    %2247 = vmatprep.subr.mxu0 0.0
    %2248 = vmatpush1.msra.mxu0 0.0
    %2249 = vmatprep.subr.mxu0 0.0
    %2250 = vmatpush1.msra.mxu0 0.0
    %2251 = vmatprep.subr.mxu0 0.0
    %2252 = vmatpush1.msra.mxu0 0.0
    %2253 = vmatprep.subr.mxu0 0.0
    %2254 = vmatpush1.msra.mxu0 0.0
    %2255 = vmatprep.subr.mxu0 0.0
    %2256 = vmatpush1.msra.mxu0 0.0
    %2257 = vmatprep.subr.mxu0 0.0
    %2258 = vmatpush1.msra.mxu0 0.0
    %2259 = vmatprep.subr.mxu0 0.0
    %2260 = vmatpush1.msra.mxu0 0.0
    %2261 = vmatprep.subr.mxu0 0.0
    %2262 = vmatpush1.msra.mxu0 0.0
    %2263 = vmatprep.subr.mxu0 0.0
    %2264 = vmatpush1.msra.mxu0 0.0
    %2265 = vmatprep.subr.mxu0 0.0
    %2266 = vmatpush1.msra.mxu0 0.0
    %2267 = vmatprep.subr.mxu0 0.0
    %2268 = vmatpush1.msra.mxu0 0.0
    %2269 = vmatprep.subr.mxu0 0.0
    %2270 = vmatpush1.msra.mxu0 0.0
    %2271 = vmatprep.subr.mxu0 0.0
    %2272 = vmatpush1.msra.mxu0 0.0
    %2273 = vmatprep.subr.mxu0 0.0
    %2274 = vmatpush1.msra.mxu0 0.0
    %2275 = vmatprep.subr.mxu0 0.0
    %2276 = vmatpush1.msra.mxu0 0.0
    %2277 = vmatprep.subr.mxu0 0.0
    %2278 = vmatpush1.msra.mxu0 0.0
    %2279 = vmatprep.subr.mxu0 0.0
    %2280 = vmatpush1.msra.mxu0 0.0
    %2281 = vmatprep.subr.mxu0 0.0
    %2282 = vmatpush1.msra.mxu0 0.0
    %2283 = vmatprep.subr.mxu0 0.0
    %2284 = vmatpush1.msra.mxu0 0.0
    %2285 = vmatprep.subr.mxu0 0.0
    %2286 = vmatpush1.msra.mxu0 0.0
    %2287 = vmatprep.subr.mxu0 0.0
    %2288 = vmatpush1.msra.mxu0 0.0
    %2289 = vmatprep.subr.mxu0 0.0
    %2290 = vmatpush1.msra.mxu0 0.0
    %2291 = vmatprep.subr.mxu0 0.0
    %2292 = vmatpush1.msra.mxu0 0.0
    %2293 = vmatprep.subr.mxu0 0.0
    %2294 = vmatpush1.msra.mxu0 0.0
    %2295 = vmatprep.subr.mxu0 0.0
    %2296 = vmatpush1.msra.mxu0 0.0
    %2297 = vmatprep.subr.mxu0 0.0
    %2298 = vmatpush1.msra.mxu0 0.0
    %2299 = vmatprep.subr.mxu0 0.0
    %2300 = vmatpush1.msra.mxu0 0.0
    %2301 = vmatprep.subr.mxu0 0.0
    %2302 = vmatpush1.msra.mxu0 0.0
    %2303 = vmatprep.subr.mxu0 0.0
    %2304 = vmatpush1.msra.mxu0 0.0
    %2305 = vmatprep.mubr.f32.mxu0 0.0
    %2306 = vmatmul.mubr.f32.gmra.mrb[0].mxu0 %v2239
    %v2307 = vpop.f32.mrb[0].mxu0
    %v2308 = vadd.f32 0.0, %v2307
    %v2309 = vpop.f32.mrb[0].mxu0
    %2310 = vdwg.mxu0
    %2311 = vrot.lane.b32.xlu0 %v1979, 120
    %v2312 = vpop.permute.xlu0 %2311
    %2313 = vrot.lane.b32.xlu0 %v1971, 88
    %v2314 = vpop.permute.xlu0 %2313
    %v2315 = vsel %vm167, %v2312, 0
    %v2317 = vsel %vm167, %v2314, 0
    %2319 = vmatprep.subr.mxu0 0.0
    %2320 = vmatpush1.xpose.msra.mxu0 %v2317
    %2321 = vmatprep.subr.mxu0 0.0
    %2322 = vmatpush1.xpose.msra.mxu0 0.0
    %2323 = vmatprep.subr.mxu0 0.0
    %2324 = vmatpush1.xpose.msra.mxu0 0.0
    %2325 = vmatprep.subr.mxu0 0.0
    %2326 = vmatpush1.xpose.msra.mxu0 0.0
    %2327 = vmatprep.subr.mxu0 0.0
    %2328 = vmatpush1.xpose.msra.mxu0 0.0
    %2329 = vmatprep.subr.mxu0 0.0
    %2330 = vmatpush1.xpose.msra.mxu0 0.0
    %2331 = vmatprep.subr.mxu0 0.0
    %2332 = vmatpush1.xpose.msra.mxu0 0.0
    %2333 = vmatprep.subr.mxu0 0.0
    %2334 = vmatpush1.xpose.msra.mxu0 0.0
    %2335 = vmatprep.subr.mxu0 0.0
    %2336 = vmatpush1.xpose.msra.mxu0 0.0
    %2337 = vmatprep.subr.mxu0 0.0
    %2338 = vmatpush1.xpose.msra.mxu0 0.0
    %2339 = vmatprep.subr.mxu0 0.0
    %2340 = vmatpush1.xpose.msra.mxu0 0.0
    %2341 = vmatprep.subr.mxu0 0.0
    %2342 = vmatpush1.xpose.msra.mxu0 0.0
    %2343 = vmatprep.subr.mxu0 0.0
    %2344 = vmatpush1.xpose.msra.mxu0 0.0
    %2345 = vmatprep.subr.mxu0 0.0
    %2346 = vmatpush1.xpose.msra.mxu0 0.0
    %2347 = vmatprep.subr.mxu0 0.0
    %2348 = vmatpush1.xpose.msra.mxu0 0.0
    %2349 = vmatprep.subr.mxu0 0.0
    %2350 = vmatpush1.xpose.msra.mxu0 0.0
    %2351 = vmatprep.subr.mxu0 0.0
    %2352 = vmatpush1.xpose.msra.mxu0 0.0
    %2353 = vmatprep.subr.mxu0 0.0
    %2354 = vmatpush1.xpose.msra.mxu0 0.0
    %2355 = vmatprep.subr.mxu0 0.0
    %2356 = vmatpush1.xpose.msra.mxu0 0.0
    %2357 = vmatprep.subr.mxu0 0.0
    %2358 = vmatpush1.xpose.msra.mxu0 0.0
    %2359 = vmatprep.subr.mxu0 0.0
    %2360 = vmatpush1.xpose.msra.mxu0 0.0
    %2361 = vmatprep.subr.mxu0 0.0
    %2362 = vmatpush1.xpose.msra.mxu0 0.0
    %2363 = vmatprep.subr.mxu0 0.0
    %2364 = vmatpush1.xpose.msra.mxu0 0.0
    %2365 = vmatprep.subr.mxu0 0.0
    %2366 = vmatpush1.xpose.msra.mxu0 0.0
    %2367 = vmatprep.subr.mxu0 0.0
    %2368 = vmatpush1.xpose.msra.mxu0 0.0
    %2369 = vmatprep.subr.mxu0 0.0
    %2370 = vmatpush1.xpose.msra.mxu0 0.0
    %2371 = vmatprep.subr.mxu0 0.0
    %2372 = vmatpush1.xpose.msra.mxu0 0.0
    %2373 = vmatprep.subr.mxu0 0.0
    %2374 = vmatpush1.xpose.msra.mxu0 0.0
    %2375 = vmatprep.subr.mxu0 0.0
    %2376 = vmatpush1.xpose.msra.mxu0 0.0
    %2377 = vmatprep.subr.mxu0 0.0
    %2378 = vmatpush1.xpose.msra.mxu0 0.0
    %2379 = vmatprep.subr.mxu0 0.0
    %2380 = vmatpush1.xpose.msra.mxu0 0.0
    %2381 = vmatprep.subr.mxu0 0.0
    %2382 = vmatpush1.xpose.msra.mxu0 0.0
    %2383 = vmatprep.mubr.f32.mxu0 0.0
    %2384 = vmatmul.mubr.f32.gmra.mrb[0].mxu0 %v2315
    %v2385 = vpop.f32.mrb[0].mxu0
    %v2386 = vadd.f32 0.0, %v2385
    %v2387 = vpop.f32.mrb[0].mxu0
    %2388 = vdwg.mxu0
    %2389 = vrot.lane.b32.xlu0 %v1980, 120
    %v2390 = vpop.permute.xlu0 %2389
    %2391 = vrot.lane.b32.xlu0 %v1976, 88
    %v2392 = vpop.permute.xlu0 %2391
    %v2393 = vsel %vm167, %v2390, 0
    %v2395 = vsel %vm167, %v2392, 0
    %2397 = vmatprep.subr.mxu0 0.0
    %2398 = vmatpush1.xpose.msra.mxu0 %v2395
    %2399 = vmatprep.subr.mxu0 0.0
    %2400 = vmatpush1.xpose.msra.mxu0 0.0
    %2401 = vmatprep.subr.mxu0 0.0
    %2402 = vmatpush1.xpose.msra.mxu0 0.0
    %2403 = vmatprep.subr.mxu0 0.0
    %2404 = vmatpush1.xpose.msra.mxu0 0.0
    %2405 = vmatprep.subr.mxu0 0.0
    %2406 = vmatpush1.xpose.msra.mxu0 0.0
    %2407 = vmatprep.subr.mxu0 0.0
    %2408 = vmatpush1.xpose.msra.mxu0 0.0
    %2409 = vmatprep.subr.mxu0 0.0
    %2410 = vmatpush1.xpose.msra.mxu0 0.0
    %2411 = vmatprep.subr.mxu0 0.0
    %2412 = vmatpush1.xpose.msra.mxu0 0.0
    %2413 = vmatprep.subr.mxu0 0.0
    %2414 = vmatpush1.xpose.msra.mxu0 0.0
    %2415 = vmatprep.subr.mxu0 0.0
    %2416 = vmatpush1.xpose.msra.mxu0 0.0
    %2417 = vmatprep.subr.mxu0 0.0
    %2418 = vmatpush1.xpose.msra.mxu0 0.0
    %2419 = vmatprep.subr.mxu0 0.0
    %2420 = vmatpush1.xpose.msra.mxu0 0.0
    %2421 = vmatprep.subr.mxu0 0.0
    %2422 = vmatpush1.xpose.msra.mxu0 0.0
    %2423 = vmatprep.subr.mxu0 0.0
    %2424 = vmatpush1.xpose.msra.mxu0 0.0
    %2425 = vmatprep.subr.mxu0 0.0
    %2426 = vmatpush1.xpose.msra.mxu0 0.0
    %2427 = vmatprep.subr.mxu0 0.0
    %2428 = vmatpush1.xpose.msra.mxu0 0.0
    %2429 = vmatprep.subr.mxu0 0.0
    %2430 = vmatpush1.xpose.msra.mxu0 0.0
    %2431 = vmatprep.subr.mxu0 0.0
    %2432 = vmatpush1.xpose.msra.mxu0 0.0
    %2433 = vmatprep.subr.mxu0 0.0
    %2434 = vmatpush1.xpose.msra.mxu0 0.0
    %2435 = vmatprep.subr.mxu0 0.0
    %2436 = vmatpush1.xpose.msra.mxu0 0.0
    %2437 = vmatprep.subr.mxu0 0.0
    %2438 = vmatpush1.xpose.msra.mxu0 0.0
    %2439 = vmatprep.subr.mxu0 0.0
    %2440 = vmatpush1.xpose.msra.mxu0 0.0
    %2441 = vmatprep.subr.mxu0 0.0
    %2442 = vmatpush1.xpose.msra.mxu0 0.0
    %2443 = vmatprep.subr.mxu0 0.0
    %2444 = vmatpush1.xpose.msra.mxu0 0.0
    %2445 = vmatprep.subr.mxu0 0.0
    %2446 = vmatpush1.xpose.msra.mxu0 0.0
    %2447 = vmatprep.subr.mxu0 0.0
    %2448 = vmatpush1.xpose.msra.mxu0 0.0
    %2449 = vmatprep.subr.mxu0 0.0
    %2450 = vmatpush1.xpose.msra.mxu0 0.0
    %2451 = vmatprep.subr.mxu0 0.0
    %2452 = vmatpush1.xpose.msra.mxu0 0.0
    %2453 = vmatprep.subr.mxu0 0.0
    %2454 = vmatpush1.xpose.msra.mxu0 0.0
    %2455 = vmatprep.subr.mxu0 0.0
    %2456 = vmatpush1.xpose.msra.mxu0 0.0
    %2457 = vmatprep.subr.mxu0 0.0
    %2458 = vmatpush1.xpose.msra.mxu0 0.0
    %2459 = vmatprep.subr.mxu0 0.0
    %2460 = vmatpush1.xpose.msra.mxu0 0.0
    %2461 = vmatprep.mubr.f32.mxu0 0.0
    %2462 = vmatmul.mubr.f32.gmra.mrb[0].mxu0 %v2393
    %v2463 = vpop.f32.mrb[0].mxu0
    %v2464 = vadd.f32 0.0, %v2463
    %v2465 = vpop.f32.mrb[0].mxu0
    %2466 = vdwg.mxu0
    %v2467 = vsel %vm167, %v2386, -inf
    %2468 = vmax.xlane.f32.xlu0 %v2467
    %v2469 = vpop.xlane.xlu0 %2468
    %v2470 = vsel %vm167, %v2464, -inf
    %2471 = vmax.xlane.f32.xlu0 %v2470
    %v2472 = vpop.xlane.xlu0 %2471
    %v2473 = vsub.f32 %v2386, %v2469
    %v2474 = vsub.f32 %v2464, %v2472
    %v2475 = vmul.f32 %v2473, 1.442695
    %v2476 = vpow.pop %v2475
    %v2477 = vmul.f32 %v2474, 1.442695
    %v2478 = vpow.pop %v2477
    %v2479 = vsel %vm167, %v2476, 0.0
    %2480 = vadd.xlane.f32.xlu0 %v2479
    %v2481 = vpop.xlane.xlu0 %2480
    %v2482 = vsel %vm167, %v2478, 0.0
    %2483 = vadd.xlane.f32.xlu0 %v2482
    %v2484 = vpop.xlane.xlu0 %2483
    %v2485 = vrcp.pop %v2481
    %v2486 = vrcp.pop %v2484
    %v2487 = vmul.f32 %v2476, %v2485
    %v2488 = vmul.f32 %v2478, %v2486
    %2489 = vrot.lane.b32.xlu0 %v1971, 56
    %v2490 = vpop.permute.xlu0 %2489
    %v2493 = vsel %vm167, %v2487, 0
    %2495 = vmatprep.subr.mxu0 0.0
    %2496 = vmatpush1.msra.mxu0 %v2490
    %2497 = vmatprep.subr.mxu0 0.0
    %2498 = vmatpush1.msra.mxu0 0.0
    %2499 = vmatprep.subr.mxu0 0.0
    %2500 = vmatpush1.msra.mxu0 0.0
    %2501 = vmatprep.subr.mxu0 0.0
    %2502 = vmatpush1.msra.mxu0 0.0
    %2503 = vmatprep.subr.mxu0 0.0
    %2504 = vmatpush1.msra.mxu0 0.0
    %2505 = vmatprep.subr.mxu0 0.0
    %2506 = vmatpush1.msra.mxu0 0.0
    %2507 = vmatprep.subr.mxu0 0.0
    %2508 = vmatpush1.msra.mxu0 0.0
    %2509 = vmatprep.subr.mxu0 0.0
    %2510 = vmatpush1.msra.mxu0 0.0
    %2511 = vmatprep.subr.mxu0 0.0
    %2512 = vmatpush1.msra.mxu0 0.0
    %2513 = vmatprep.subr.mxu0 0.0
    %2514 = vmatpush1.msra.mxu0 0.0
    %2515 = vmatprep.subr.mxu0 0.0
    %2516 = vmatpush1.msra.mxu0 0.0
    %2517 = vmatprep.subr.mxu0 0.0
    %2518 = vmatpush1.msra.mxu0 0.0
    %2519 = vmatprep.subr.mxu0 0.0
    %2520 = vmatpush1.msra.mxu0 0.0
    %2521 = vmatprep.subr.mxu0 0.0
    %2522 = vmatpush1.msra.mxu0 0.0
    %2523 = vmatprep.subr.mxu0 0.0
    %2524 = vmatpush1.msra.mxu0 0.0
    %2525 = vmatprep.subr.mxu0 0.0
    %2526 = vmatpush1.msra.mxu0 0.0
    %2527 = vmatprep.subr.mxu0 0.0
    %2528 = vmatpush1.msra.mxu0 0.0
    %2529 = vmatprep.subr.mxu0 0.0
    %2530 = vmatpush1.msra.mxu0 0.0
    %2531 = vmatprep.subr.mxu0 0.0
    %2532 = vmatpush1.msra.mxu0 0.0
    %2533 = vmatprep.subr.mxu0 0.0
    %2534 = vmatpush1.msra.mxu0 0.0
    %2535 = vmatprep.subr.mxu0 0.0
    %2536 = vmatpush1.msra.mxu0 0.0
    %2537 = vmatprep.subr.mxu0 0.0
    %2538 = vmatpush1.msra.mxu0 0.0
    %2539 = vmatprep.subr.mxu0 0.0
    %2540 = vmatpush1.msra.mxu0 0.0
    %2541 = vmatprep.subr.mxu0 0.0
    %2542 = vmatpush1.msra.mxu0 0.0
    %2543 = vmatprep.subr.mxu0 0.0
    %2544 = vmatpush1.msra.mxu0 0.0
    %2545 = vmatprep.subr.mxu0 0.0
    %2546 = vmatpush1.msra.mxu0 0.0
    %2547 = vmatprep.subr.mxu0 0.0
    %2548 = vmatpush1.msra.mxu0 0.0
    %2549 = vmatprep.subr.mxu0 0.0
    %2550 = vmatpush1.msra.mxu0 0.0
    %2551 = vmatprep.subr.mxu0 0.0
    %2552 = vmatpush1.msra.mxu0 0.0
    %2553 = vmatprep.subr.mxu0 0.0
    %2554 = vmatpush1.msra.mxu0 0.0
    %2555 = vmatprep.subr.mxu0 0.0
    %2556 = vmatpush1.msra.mxu0 0.0
    %2557 = vmatprep.subr.mxu0 0.0
    %2558 = vmatpush1.msra.mxu0 0.0
    %2559 = vmatprep.mubr.f32.mxu0 0.0
    %2560 = vmatmul.mubr.f32.gmra.mrb[0].mxu0 %v2493
    %v2561 = vpop.f32.mrb[0].mxu0
    %v2562 = vadd.f32 0.0, %v2561
    %v2563 = vpop.f32.mrb[0].mxu0
    %2564 = vdwg.mxu0
    %2565 = vrot.lane.b32.xlu0 %v1976, 56
    %v2566 = vpop.permute.xlu0 %2565
    %v2569 = vsel %vm167, %v2488, 0
    %2571 = vmatprep.subr.mxu0 0.0
    %2572 = vmatpush1.msra.mxu0 %v2566
    %2573 = vmatprep.subr.mxu0 0.0
    %2574 = vmatpush1.msra.mxu0 0.0
    %2575 = vmatprep.subr.mxu0 0.0
    %2576 = vmatpush1.msra.mxu0 0.0
    %2577 = vmatprep.subr.mxu0 0.0
    %2578 = vmatpush1.msra.mxu0 0.0
    %2579 = vmatprep.subr.mxu0 0.0
    %2580 = vmatpush1.msra.mxu0 0.0
    %2581 = vmatprep.subr.mxu0 0.0
    %2582 = vmatpush1.msra.mxu0 0.0
    %2583 = vmatprep.subr.mxu0 0.0
    %2584 = vmatpush1.msra.mxu0 0.0
    %2585 = vmatprep.subr.mxu0 0.0
    %2586 = vmatpush1.msra.mxu0 0.0
    %2587 = vmatprep.subr.mxu0 0.0
    %2588 = vmatpush1.msra.mxu0 0.0
    %2589 = vmatprep.subr.mxu0 0.0
    %2590 = vmatpush1.msra.mxu0 0.0
    %2591 = vmatprep.subr.mxu0 0.0
    %2592 = vmatpush1.msra.mxu0 0.0
    %2593 = vmatprep.subr.mxu0 0.0
    %2594 = vmatpush1.msra.mxu0 0.0
    %2595 = vmatprep.subr.mxu0 0.0
    %2596 = vmatpush1.msra.mxu0 0.0
    %2597 = vmatprep.subr.mxu0 0.0
    %2598 = vmatpush1.msra.mxu0 0.0
    %2599 = vmatprep.subr.mxu0 0.0
    %2600 = vmatpush1.msra.mxu0 0.0
    %2601 = vmatprep.subr.mxu0 0.0
    %2602 = vmatpush1.msra.mxu0 0.0
    %2603 = vmatprep.subr.mxu0 0.0
    %2604 = vmatpush1.msra.mxu0 0.0
    %2605 = vmatprep.subr.mxu0 0.0
    %2606 = vmatpush1.msra.mxu0 0.0
    %2607 = vmatprep.subr.mxu0 0.0
    %2608 = vmatpush1.msra.mxu0 0.0
    %2609 = vmatprep.subr.mxu0 0.0
    %2610 = vmatpush1.msra.mxu0 0.0
    %2611 = vmatprep.subr.mxu0 0.0
    %2612 = vmatpush1.msra.mxu0 0.0
    %2613 = vmatprep.subr.mxu0 0.0
    %2614 = vmatpush1.msra.mxu0 0.0
    %2615 = vmatprep.subr.mxu0 0.0
    %2616 = vmatpush1.msra.mxu0 0.0
    %2617 = vmatprep.subr.mxu0 0.0
    %2618 = vmatpush1.msra.mxu0 0.0
    %2619 = vmatprep.subr.mxu0 0.0
    %2620 = vmatpush1.msra.mxu0 0.0
    %2621 = vmatprep.subr.mxu0 0.0
    %2622 = vmatpush1.msra.mxu0 0.0
    %2623 = vmatprep.subr.mxu0 0.0
    %2624 = vmatpush1.msra.mxu0 0.0
    %2625 = vmatprep.subr.mxu0 0.0
    %2626 = vmatpush1.msra.mxu0 0.0
    %2627 = vmatprep.subr.mxu0 0.0
    %2628 = vmatpush1.msra.mxu0 0.0
    %2629 = vmatprep.subr.mxu0 0.0
    %2630 = vmatpush1.msra.mxu0 0.0
    %2631 = vmatprep.subr.mxu0 0.0
    %2632 = vmatpush1.msra.mxu0 0.0
    %2633 = vmatprep.subr.mxu0 0.0
    %2634 = vmatpush1.msra.mxu0 0.0
    %2635 = vmatprep.mubr.f32.mxu0 0.0
    %2636 = vmatmul.mubr.f32.gmra.mrb[0].mxu0 %v2569
    %v2637 = vpop.f32.mrb[0].mxu0
    %v2638 = vadd.f32 0.0, %v2637
    %v2639 = vpop.f32.mrb[0].mxu0
    %2640 = vdwg.mxu0
    %2641 = vrot.lane.b32.xlu0 %v1979, 112
    %v2642 = vpop.permute.xlu0 %2641
    %2643 = vrot.lane.b32.xlu0 %v1971, 80
    %v2644 = vpop.permute.xlu0 %2643
    %v2645 = vsel %vm167, %v2642, 0
    %v2647 = vsel %vm167, %v2644, 0
    %2649 = vmatprep.subr.mxu0 0.0
    %2650 = vmatpush1.xpose.msra.mxu0 %v2647
    %2651 = vmatprep.subr.mxu0 0.0
    %2652 = vmatpush1.xpose.msra.mxu0 0.0
    %2653 = vmatprep.subr.mxu0 0.0
    %2654 = vmatpush1.xpose.msra.mxu0 0.0
    %2655 = vmatprep.subr.mxu0 0.0
    %2656 = vmatpush1.xpose.msra.mxu0 0.0
    %2657 = vmatprep.subr.mxu0 0.0
    %2658 = vmatpush1.xpose.msra.mxu0 0.0
    %2659 = vmatprep.subr.mxu0 0.0
    %2660 = vmatpush1.xpose.msra.mxu0 0.0
    %2661 = vmatprep.subr.mxu0 0.0
    %2662 = vmatpush1.xpose.msra.mxu0 0.0
    %2663 = vmatprep.subr.mxu0 0.0
    %2664 = vmatpush1.xpose.msra.mxu0 0.0
    %2665 = vmatprep.subr.mxu0 0.0
    %2666 = vmatpush1.xpose.msra.mxu0 0.0
    %2667 = vmatprep.subr.mxu0 0.0
    %2668 = vmatpush1.xpose.msra.mxu0 0.0
    %2669 = vmatprep.subr.mxu0 0.0
    %2670 = vmatpush1.xpose.msra.mxu0 0.0
    %2671 = vmatprep.subr.mxu0 0.0
    %2672 = vmatpush1.xpose.msra.mxu0 0.0
    %2673 = vmatprep.subr.mxu0 0.0
    %2674 = vmatpush1.xpose.msra.mxu0 0.0
    %2675 = vmatprep.subr.mxu0 0.0
    %2676 = vmatpush1.xpose.msra.mxu0 0.0
    %2677 = vmatprep.subr.mxu0 0.0
    %2678 = vmatpush1.xpose.msra.mxu0 0.0
    %2679 = vmatprep.subr.mxu0 0.0
    %2680 = vmatpush1.xpose.msra.mxu0 0.0
    %2681 = vmatprep.subr.mxu0 0.0
    %2682 = vmatpush1.xpose.msra.mxu0 0.0
    %2683 = vmatprep.subr.mxu0 0.0
    %2684 = vmatpush1.xpose.msra.mxu0 0.0
    %2685 = vmatprep.subr.mxu0 0.0
    %2686 = vmatpush1.xpose.msra.mxu0 0.0
    %2687 = vmatprep.subr.mxu0 0.0
    %2688 = vmatpush1.xpose.msra.mxu0 0.0
    %2689 = vmatprep.subr.mxu0 0.0
    %2690 = vmatpush1.xpose.msra.mxu0 0.0
    %2691 = vmatprep.subr.mxu0 0.0
    %2692 = vmatpush1.xpose.msra.mxu0 0.0
    %2693 = vmatprep.subr.mxu0 0.0
    %2694 = vmatpush1.xpose.msra.mxu0 0.0
    %2695 = vmatprep.subr.mxu0 0.0
    %2696 = vmatpush1.xpose.msra.mxu0 0.0
    %2697 = vmatprep.subr.mxu0 0.0
    %2698 = vmatpush1.xpose.msra.mxu0 0.0
    %2699 = vmatprep.subr.mxu0 0.0
    %2700 = vmatpush1.xpose.msra.mxu0 0.0
    %2701 = vmatprep.subr.mxu0 0.0
    %2702 = vmatpush1.xpose.msra.mxu0 0.0
    %2703 = vmatprep.subr.mxu0 0.0
    %2704 = vmatpush1.xpose.msra.mxu0 0.0
    %2705 = vmatprep.subr.mxu0 0.0
    %2706 = vmatpush1.xpose.msra.mxu0 0.0
    %2707 = vmatprep.subr.mxu0 0.0
    %2708 = vmatpush1.xpose.msra.mxu0 0.0
    %2709 = vmatprep.subr.mxu0 0.0
    %2710 = vmatpush1.xpose.msra.mxu0 0.0
    %2711 = vmatprep.subr.mxu0 0.0
    %2712 = vmatpush1.xpose.msra.mxu0 0.0
    %2713 = vmatprep.mubr.f32.mxu0 0.0
    %2714 = vmatmul.mubr.f32.gmra.mrb[0].mxu0 %v2645
    %v2715 = vpop.f32.mrb[0].mxu0
    %v2716 = vadd.f32 0.0, %v2715
    %v2717 = vpop.f32.mrb[0].mxu0
    %2718 = vdwg.mxu0
    %2719 = vrot.lane.b32.xlu0 %v1980, 112
    %v2720 = vpop.permute.xlu0 %2719
    %2721 = vrot.lane.b32.xlu0 %v1976, 80
    %v2722 = vpop.permute.xlu0 %2721
    %v2723 = vsel %vm167, %v2720, 0
    %v2725 = vsel %vm167, %v2722, 0
    %2727 = vmatprep.subr.mxu0 0.0
    %2728 = vmatpush1.xpose.msra.mxu0 %v2725
    %2729 = vmatprep.subr.mxu0 0.0
    %2730 = vmatpush1.xpose.msra.mxu0 0.0
    %2731 = vmatprep.subr.mxu0 0.0
    %2732 = vmatpush1.xpose.msra.mxu0 0.0
    %2733 = vmatprep.subr.mxu0 0.0
    %2734 = vmatpush1.xpose.msra.mxu0 0.0
    %2735 = vmatprep.subr.mxu0 0.0
    %2736 = vmatpush1.xpose.msra.mxu0 0.0
    %2737 = vmatprep.subr.mxu0 0.0
    %2738 = vmatpush1.xpose.msra.mxu0 0.0
    %2739 = vmatprep.subr.mxu0 0.0
    %2740 = vmatpush1.xpose.msra.mxu0 0.0
    %2741 = vmatprep.subr.mxu0 0.0
    %2742 = vmatpush1.xpose.msra.mxu0 0.0
    %2743 = vmatprep.subr.mxu0 0.0
    %2744 = vmatpush1.xpose.msra.mxu0 0.0
    %2745 = vmatprep.subr.mxu0 0.0
    %2746 = vmatpush1.xpose.msra.mxu0 0.0
    %2747 = vmatprep.subr.mxu0 0.0
    %2748 = vmatpush1.xpose.msra.mxu0 0.0
    %2749 = vmatprep.subr.mxu0 0.0
    %2750 = vmatpush1.xpose.msra.mxu0 0.0
    %2751 = vmatprep.subr.mxu0 0.0
    %2752 = vmatpush1.xpose.msra.mxu0 0.0
    %2753 = vmatprep.subr.mxu0 0.0
    %2754 = vmatpush1.xpose.msra.mxu0 0.0
    %2755 = vmatprep.subr.mxu0 0.0
    %2756 = vmatpush1.xpose.msra.mxu0 0.0
    %2757 = vmatprep.subr.mxu0 0.0
    %2758 = vmatpush1.xpose.msra.mxu0 0.0
    %2759 = vmatprep.subr.mxu0 0.0
    %2760 = vmatpush1.xpose.msra.mxu0 0.0
    %2761 = vmatprep.subr.mxu0 0.0
    %2762 = vmatpush1.xpose.msra.mxu0 0.0
    %2763 = vmatprep.subr.mxu0 0.0
    %2764 = vmatpush1.xpose.msra.mxu0 0.0
    %2765 = vmatprep.subr.mxu0 0.0
    %2766 = vmatpush1.xpose.msra.mxu0 0.0
    %2767 = vmatprep.subr.mxu0 0.0
    %2768 = vmatpush1.xpose.msra.mxu0 0.0
    %2769 = vmatprep.subr.mxu0 0.0
    %2770 = vmatpush1.xpose.msra.mxu0 0.0
    %2771 = vmatprep.subr.mxu0 0.0
    %2772 = vmatpush1.xpose.msra.mxu0 0.0
    %2773 = vmatprep.subr.mxu0 0.0
    %2774 = vmatpush1.xpose.msra.mxu0 0.0
    %2775 = vmatprep.subr.mxu0 0.0
    %2776 = vmatpush1.xpose.msra.mxu0 0.0
    %2777 = vmatprep.subr.mxu0 0.0
    %2778 = vmatpush1.xpose.msra.mxu0 0.0
    %2779 = vmatprep.subr.mxu0 0.0
    %2780 = vmatpush1.xpose.msra.mxu0 0.0
    %2781 = vmatprep.subr.mxu0 0.0
    %2782 = vmatpush1.xpose.msra.mxu0 0.0
    %2783 = vmatprep.subr.mxu0 0.0
    %2784 = vmatpush1.xpose.msra.mxu0 0.0
    %2785 = vmatprep.subr.mxu0 0.0
    %2786 = vmatpush1.xpose.msra.mxu0 0.0
    %2787 = vmatprep.subr.mxu0 0.0
    %2788 = vmatpush1.xpose.msra.mxu0 0.0
    %2789 = vmatprep.subr.mxu0 0.0
    %2790 = vmatpush1.xpose.msra.mxu0 0.0
    %2791 = vmatprep.mubr.f32.mxu0 0.0
    %2792 = vmatmul.mubr.f32.gmra.mrb[0].mxu0 %v2723
    %v2793 = vpop.f32.mrb[0].mxu0
    %v2794 = vadd.f32 0.0, %v2793
    %v2795 = vpop.f32.mrb[0].mxu0
    %2796 = vdwg.mxu0
    %v2797 = vsel %vm167, %v2716, -inf
    %2798 = vmax.xlane.f32.xlu0 %v2797
    %v2799 = vpop.xlane.xlu0 %2798
    %v2800 = vsel %vm167, %v2794, -inf
    %2801 = vmax.xlane.f32.xlu0 %v2800
    %v2802 = vpop.xlane.xlu0 %2801
    %v2803 = vsub.f32 %v2716, %v2799
    %v2804 = vsub.f32 %v2794, %v2802
    %v2805 = vmul.f32 %v2803, 1.442695
    %v2806 = vpow.pop %v2805
    %v2807 = vmul.f32 %v2804, 1.442695
    %v2808 = vpow.pop %v2807
    %v2809 = vsel %vm167, %v2806, 0.0
    %2810 = vadd.xlane.f32.xlu0 %v2809
    %v2811 = vpop.xlane.xlu0 %2810
    %v2812 = vsel %vm167, %v2808, 0.0
    %2813 = vadd.xlane.f32.xlu0 %v2812
    %v2814 = vpop.xlane.xlu0 %2813
    %v2815 = vrcp.pop %v2811
    %v2816 = vrcp.pop %v2814
    %v2817 = vmul.f32 %v2806, %v2815
    %v2818 = vmul.f32 %v2808, %v2816
    %2819 = vrot.lane.b32.xlu0 %v1971, 48
    %v2820 = vpop.permute.xlu0 %2819
    %v2823 = vsel %vm167, %v2817, 0
    %2825 = vmatprep.subr.mxu0 0.0
    %2826 = vmatpush1.msra.mxu0 %v2820
    %2827 = vmatprep.subr.mxu0 0.0
    %2828 = vmatpush1.msra.mxu0 0.0
    %2829 = vmatprep.subr.mxu0 0.0
    %2830 = vmatpush1.msra.mxu0 0.0
    %2831 = vmatprep.subr.mxu0 0.0
    %2832 = vmatpush1.msra.mxu0 0.0
    %2833 = vmatprep.subr.mxu0 0.0
    %2834 = vmatpush1.msra.mxu0 0.0
    %2835 = vmatprep.subr.mxu0 0.0
    %2836 = vmatpush1.msra.mxu0 0.0
    %2837 = vmatprep.subr.mxu0 0.0
    %2838 = vmatpush1.msra.mxu0 0.0
    %2839 = vmatprep.subr.mxu0 0.0
    %2840 = vmatpush1.msra.mxu0 0.0
    %2841 = vmatprep.subr.mxu0 0.0
    %2842 = vmatpush1.msra.mxu0 0.0
    %2843 = vmatprep.subr.mxu0 0.0
    %2844 = vmatpush1.msra.mxu0 0.0
    %2845 = vmatprep.subr.mxu0 0.0
    %2846 = vmatpush1.msra.mxu0 0.0
    %2847 = vmatprep.subr.mxu0 0.0
    %2848 = vmatpush1.msra.mxu0 0.0
    %2849 = vmatprep.subr.mxu0 0.0
    %2850 = vmatpush1.msra.mxu0 0.0
    %2851 = vmatprep.subr.mxu0 0.0
    %2852 = vmatpush1.msra.mxu0 0.0
    %2853 = vmatprep.subr.mxu0 0.0
    %2854 = vmatpush1.msra.mxu0 0.0
    %2855 = vmatprep.subr.mxu0 0.0
    %2856 = vmatpush1.msra.mxu0 0.0
    %2857 = vmatprep.subr.mxu0 0.0
    %2858 = vmatpush1.msra.mxu0 0.0
    %2859 = vmatprep.subr.mxu0 0.0
    %2860 = vmatpush1.msra.mxu0 0.0
    %2861 = vmatprep.subr.mxu0 0.0
    %2862 = vmatpush1.msra.mxu0 0.0
    %2863 = vmatprep.subr.mxu0 0.0
    %2864 = vmatpush1.msra.mxu0 0.0
    %2865 = vmatprep.subr.mxu0 0.0
    %2866 = vmatpush1.msra.mxu0 0.0
    %2867 = vmatprep.subr.mxu0 0.0
    %2868 = vmatpush1.msra.mxu0 0.0
    %2869 = vmatprep.subr.mxu0 0.0
    %2870 = vmatpush1.msra.mxu0 0.0
    %2871 = vmatprep.subr.mxu0 0.0
    %2872 = vmatpush1.msra.mxu0 0.0
    %2873 = vmatprep.subr.mxu0 0.0
    %2874 = vmatpush1.msra.mxu0 0.0
    %2875 = vmatprep.subr.mxu0 0.0
    %2876 = vmatpush1.msra.mxu0 0.0
    %2877 = vmatprep.subr.mxu0 0.0
    %2878 = vmatpush1.msra.mxu0 0.0
    %2879 = vmatprep.subr.mxu0 0.0
    %2880 = vmatpush1.msra.mxu0 0.0
    %2881 = vmatprep.subr.mxu0 0.0
    %2882 = vmatpush1.msra.mxu0 0.0
    %2883 = vmatprep.subr.mxu0 0.0
    %2884 = vmatpush1.msra.mxu0 0.0
    %2885 = vmatprep.subr.mxu0 0.0
    %2886 = vmatpush1.msra.mxu0 0.0
    %2887 = vmatprep.subr.mxu0 0.0
    %2888 = vmatpush1.msra.mxu0 0.0
    %2889 = vmatprep.mubr.f32.mxu0 0.0
    %2890 = vmatmul.mubr.f32.gmra.mrb[0].mxu0 %v2823
    %v2891 = vpop.f32.mrb[0].mxu0
    %v2892 = vadd.f32 0.0, %v2891
    %v2893 = vpop.f32.mrb[0].mxu0
    %2894 = vdwg.mxu0
    %2895 = vrot.lane.b32.xlu0 %v1976, 48
    %v2896 = vpop.permute.xlu0 %2895
    %v2899 = vsel %vm167, %v2818, 0
    %2901 = vmatprep.subr.mxu0 0.0
    %2902 = vmatpush1.msra.mxu0 %v2896
    %2903 = vmatprep.subr.mxu0 0.0
    %2904 = vmatpush1.msra.mxu0 0.0
    %2905 = vmatprep.subr.mxu0 0.0
    %2906 = vmatpush1.msra.mxu0 0.0
    %2907 = vmatprep.subr.mxu0 0.0
    %2908 = vmatpush1.msra.mxu0 0.0
    %2909 = vmatprep.subr.mxu0 0.0
    %2910 = vmatpush1.msra.mxu0 0.0
    %2911 = vmatprep.subr.mxu0 0.0
    %2912 = vmatpush1.msra.mxu0 0.0
    %2913 = vmatprep.subr.mxu0 0.0
    %2914 = vmatpush1.msra.mxu0 0.0
    %2915 = vmatprep.subr.mxu0 0.0
    %2916 = vmatpush1.msra.mxu0 0.0
    %2917 = vmatprep.subr.mxu0 0.0
    %2918 = vmatpush1.msra.mxu0 0.0
    %2919 = vmatprep.subr.mxu0 0.0
    %2920 = vmatpush1.msra.mxu0 0.0
    %2921 = vmatprep.subr.mxu0 0.0
    %2922 = vmatpush1.msra.mxu0 0.0
    %2923 = vmatprep.subr.mxu0 0.0
    %2924 = vmatpush1.msra.mxu0 0.0
    %2925 = vmatprep.subr.mxu0 0.0
    %2926 = vmatpush1.msra.mxu0 0.0
    %2927 = vmatprep.subr.mxu0 0.0
    %2928 = vmatpush1.msra.mxu0 0.0
    %2929 = vmatprep.subr.mxu0 0.0
    %2930 = vmatpush1.msra.mxu0 0.0
    %2931 = vmatprep.subr.mxu0 0.0
    %2932 = vmatpush1.msra.mxu0 0.0
    %2933 = vmatprep.subr.mxu0 0.0
    %2934 = vmatpush1.msra.mxu0 0.0
    %2935 = vmatprep.subr.mxu0 0.0
    %2936 = vmatpush1.msra.mxu0 0.0
    %2937 = vmatprep.subr.mxu0 0.0
    %2938 = vmatpush1.msra.mxu0 0.0
    %2939 = vmatprep.subr.mxu0 0.0
    %2940 = vmatpush1.msra.mxu0 0.0
    %2941 = vmatprep.subr.mxu0 0.0
    %2942 = vmatpush1.msra.mxu0 0.0
    %2943 = vmatprep.subr.mxu0 0.0
    %2944 = vmatpush1.msra.mxu0 0.0
    %2945 = vmatprep.subr.mxu0 0.0
    %2946 = vmatpush1.msra.mxu0 0.0
    %2947 = vmatprep.subr.mxu0 0.0
    %2948 = vmatpush1.msra.mxu0 0.0
    %2949 = vmatprep.subr.mxu0 0.0
    %2950 = vmatpush1.msra.mxu0 0.0
    %2951 = vmatprep.subr.mxu0 0.0
    %2952 = vmatpush1.msra.mxu0 0.0
    %2953 = vmatprep.subr.mxu0 0.0
    %2954 = vmatpush1.msra.mxu0 0.0
    %2955 = vmatprep.subr.mxu0 0.0
    %2956 = vmatpush1.msra.mxu0 0.0
    %2957 = vmatprep.subr.mxu0 0.0
    %2958 = vmatpush1.msra.mxu0 0.0
    %2959 = vmatprep.subr.mxu0 0.0
    %2960 = vmatpush1.msra.mxu0 0.0
    %2961 = vmatprep.subr.mxu0 0.0
    %2962 = vmatpush1.msra.mxu0 0.0
    %2963 = vmatprep.subr.mxu0 0.0
    %2964 = vmatpush1.msra.mxu0 0.0
    %2965 = vmatprep.mubr.f32.mxu0 0.0
    %2966 = vmatmul.mubr.f32.gmra.mrb[0].mxu0 %v2899
    %v2967 = vpop.f32.mrb[0].mxu0
    %v2968 = vadd.f32 0.0, %v2967
    %v2969 = vpop.f32.mrb[0].mxu0
    %2970 = vdwg.mxu0
    %2971 = vrot.lane.b32.xlu0 %v1979, 104
    %v2972 = vpop.permute.xlu0 %2971
    %2973 = vrot.lane.b32.xlu0 %v1971, 72
    %v2974 = vpop.permute.xlu0 %2973
    %v2975 = vsel %vm167, %v2972, 0
    %v2977 = vsel %vm167, %v2974, 0
    %2979 = vmatprep.subr.mxu0 0.0
    %2980 = vmatpush1.xpose.msra.mxu0 %v2977
    %2981 = vmatprep.subr.mxu0 0.0
    %2982 = vmatpush1.xpose.msra.mxu0 0.0
    %2983 = vmatprep.subr.mxu0 0.0
    %2984 = vmatpush1.xpose.msra.mxu0 0.0
    %2985 = vmatprep.subr.mxu0 0.0
    %2986 = vmatpush1.xpose.msra.mxu0 0.0
    %2987 = vmatprep.subr.mxu0 0.0
    %2988 = vmatpush1.xpose.msra.mxu0 0.0
    %2989 = vmatprep.subr.mxu0 0.0
    %2990 = vmatpush1.xpose.msra.mxu0 0.0
    %2991 = vmatprep.subr.mxu0 0.0
    %2992 = vmatpush1.xpose.msra.mxu0 0.0
    %2993 = vmatprep.subr.mxu0 0.0
    %2994 = vmatpush1.xpose.msra.mxu0 0.0
    %2995 = vmatprep.subr.mxu0 0.0
    %2996 = vmatpush1.xpose.msra.mxu0 0.0
    %2997 = vmatprep.subr.mxu0 0.0
    %2998 = vmatpush1.xpose.msra.mxu0 0.0
    %2999 = vmatprep.subr.mxu0 0.0
    %3000 = vmatpush1.xpose.msra.mxu0 0.0
    %3001 = vmatprep.subr.mxu0 0.0
    %3002 = vmatpush1.xpose.msra.mxu0 0.0
    %3003 = vmatprep.subr.mxu0 0.0
    %3004 = vmatpush1.xpose.msra.mxu0 0.0
    %3005 = vmatprep.subr.mxu0 0.0
    %3006 = vmatpush1.xpose.msra.mxu0 0.0
    %3007 = vmatprep.subr.mxu0 0.0
    %3008 = vmatpush1.xpose.msra.mxu0 0.0
    %3009 = vmatprep.subr.mxu0 0.0
    %3010 = vmatpush1.xpose.msra.mxu0 0.0
    %3011 = vmatprep.subr.mxu0 0.0
    %3012 = vmatpush1.xpose.msra.mxu0 0.0
    %3013 = vmatprep.subr.mxu0 0.0
    %3014 = vmatpush1.xpose.msra.mxu0 0.0
    %3015 = vmatprep.subr.mxu0 0.0
    %3016 = vmatpush1.xpose.msra.mxu0 0.0
    %3017 = vmatprep.subr.mxu0 0.0
    %3018 = vmatpush1.xpose.msra.mxu0 0.0
    %3019 = vmatprep.subr.mxu0 0.0
    %3020 = vmatpush1.xpose.msra.mxu0 0.0
    %3021 = vmatprep.subr.mxu0 0.0
    %3022 = vmatpush1.xpose.msra.mxu0 0.0
    %3023 = vmatprep.subr.mxu0 0.0
    %3024 = vmatpush1.xpose.msra.mxu0 0.0
    %3025 = vmatprep.subr.mxu0 0.0
    %3026 = vmatpush1.xpose.msra.mxu0 0.0
    %3027 = vmatprep.subr.mxu0 0.0
    %3028 = vmatpush1.xpose.msra.mxu0 0.0
    %3029 = vmatprep.subr.mxu0 0.0
    %3030 = vmatpush1.xpose.msra.mxu0 0.0
    %3031 = vmatprep.subr.mxu0 0.0
    %3032 = vmatpush1.xpose.msra.mxu0 0.0
    %3033 = vmatprep.subr.mxu0 0.0
    %3034 = vmatpush1.xpose.msra.mxu0 0.0
    %3035 = vmatprep.subr.mxu0 0.0
    %3036 = vmatpush1.xpose.msra.mxu0 0.0
    %3037 = vmatprep.subr.mxu0 0.0
    %3038 = vmatpush1.xpose.msra.mxu0 0.0
    %3039 = vmatprep.subr.mxu0 0.0
    %3040 = vmatpush1.xpose.msra.mxu0 0.0
    %3041 = vmatprep.subr.mxu0 0.0
    %3042 = vmatpush1.xpose.msra.mxu0 0.0
    %3043 = vmatprep.mubr.f32.mxu0 0.0
    %3044 = vmatmul.mubr.f32.gmra.mrb[0].mxu0 %v2975
    %v3045 = vpop.f32.mrb[0].mxu0
    %v3046 = vadd.f32 0.0, %v3045
    %v3047 = vpop.f32.mrb[0].mxu0
    %3048 = vdwg.mxu0
    %3049 = vrot.lane.b32.xlu0 %v1980, 104
    %v3050 = vpop.permute.xlu0 %3049
    %3051 = vrot.lane.b32.xlu0 %v1976, 72
    %v3052 = vpop.permute.xlu0 %3051
    %v3053 = vsel %vm167, %v3050, 0
    %v3055 = vsel %vm167, %v3052, 0
    %3057 = vmatprep.subr.mxu0 0.0
    %3058 = vmatpush1.xpose.msra.mxu0 %v3055
    %3059 = vmatprep.subr.mxu0 0.0
    %3060 = vmatpush1.xpose.msra.mxu0 0.0
    %3061 = vmatprep.subr.mxu0 0.0
    %3062 = vmatpush1.xpose.msra.mxu0 0.0
    %3063 = vmatprep.subr.mxu0 0.0
    %3064 = vmatpush1.xpose.msra.mxu0 0.0
    %3065 = vmatprep.subr.mxu0 0.0
    %3066 = vmatpush1.xpose.msra.mxu0 0.0
    %3067 = vmatprep.subr.mxu0 0.0
    %3068 = vmatpush1.xpose.msra.mxu0 0.0
    %3069 = vmatprep.subr.mxu0 0.0
    %3070 = vmatpush1.xpose.msra.mxu0 0.0
    %3071 = vmatprep.subr.mxu0 0.0
    %3072 = vmatpush1.xpose.msra.mxu0 0.0
    %3073 = vmatprep.subr.mxu0 0.0
    %3074 = vmatpush1.xpose.msra.mxu0 0.0
    %3075 = vmatprep.subr.mxu0 0.0
    %3076 = vmatpush1.xpose.msra.mxu0 0.0
    %3077 = vmatprep.subr.mxu0 0.0
    %3078 = vmatpush1.xpose.msra.mxu0 0.0
    %3079 = vmatprep.subr.mxu0 0.0
    %3080 = vmatpush1.xpose.msra.mxu0 0.0
    %3081 = vmatprep.subr.mxu0 0.0
    %3082 = vmatpush1.xpose.msra.mxu0 0.0
    %3083 = vmatprep.subr.mxu0 0.0
    %3084 = vmatpush1.xpose.msra.mxu0 0.0
    %3085 = vmatprep.subr.mxu0 0.0
    %3086 = vmatpush1.xpose.msra.mxu0 0.0
    %3087 = vmatprep.subr.mxu0 0.0
    %3088 = vmatpush1.xpose.msra.mxu0 0.0
    %3089 = vmatprep.subr.mxu0 0.0
    %3090 = vmatpush1.xpose.msra.mxu0 0.0
    %3091 = vmatprep.subr.mxu0 0.0
    %3092 = vmatpush1.xpose.msra.mxu0 0.0
    %3093 = vmatprep.subr.mxu0 0.0
    %3094 = vmatpush1.xpose.msra.mxu0 0.0
    %3095 = vmatprep.subr.mxu0 0.0
    %3096 = vmatpush1.xpose.msra.mxu0 0.0
    %3097 = vmatprep.subr.mxu0 0.0
    %3098 = vmatpush1.xpose.msra.mxu0 0.0
    %3099 = vmatprep.subr.mxu0 0.0
    %3100 = vmatpush1.xpose.msra.mxu0 0.0
    %3101 = vmatprep.subr.mxu0 0.0
    %3102 = vmatpush1.xpose.msra.mxu0 0.0
    %3103 = vmatprep.subr.mxu0 0.0
    %3104 = vmatpush1.xpose.msra.mxu0 0.0
    %3105 = vmatprep.subr.mxu0 0.0
    %3106 = vmatpush1.xpose.msra.mxu0 0.0
    %3107 = vmatprep.subr.mxu0 0.0
    %3108 = vmatpush1.xpose.msra.mxu0 0.0
    %3109 = vmatprep.subr.mxu0 0.0
    %3110 = vmatpush1.xpose.msra.mxu0 0.0
    %3111 = vmatprep.subr.mxu0 0.0
    %3112 = vmatpush1.xpose.msra.mxu0 0.0
    %3113 = vmatprep.subr.mxu0 0.0
    %3114 = vmatpush1.xpose.msra.mxu0 0.0
    %3115 = vmatprep.subr.mxu0 0.0
    %3116 = vmatpush1.xpose.msra.mxu0 0.0
    %3117 = vmatprep.subr.mxu0 0.0
    %3118 = vmatpush1.xpose.msra.mxu0 0.0
    %3119 = vmatprep.subr.mxu0 0.0
    %3120 = vmatpush1.xpose.msra.mxu0 0.0
    %3121 = vmatprep.mubr.f32.mxu0 0.0
    %3122 = vmatmul.mubr.f32.gmra.mrb[0].mxu0 %v3053
    %v3123 = vpop.f32.mrb[0].mxu0
    %v3124 = vadd.f32 0.0, %v3123
    %v3125 = vpop.f32.mrb[0].mxu0
    %3126 = vdwg.mxu0
    %v3127 = vsel %vm167, %v3046, -inf
    %3128 = vmax.xlane.f32.xlu0 %v3127
    %v3129 = vpop.xlane.xlu0 %3128
    %v3130 = vsel %vm167, %v3124, -inf
    %3131 = vmax.xlane.f32.xlu0 %v3130
    %v3132 = vpop.xlane.xlu0 %3131
    %v3133 = vsub.f32 %v3046, %v3129
    %v3134 = vsub.f32 %v3124, %v3132
    %v3135 = vmul.f32 %v3133, 1.442695
    %v3136 = vpow.pop %v3135
    %v3137 = vmul.f32 %v3134, 1.442695
    %v3138 = vpow.pop %v3137
    %v3139 = vsel %vm167, %v3136, 0.0
    %3140 = vadd.xlane.f32.xlu0 %v3139
    %v3141 = vpop.xlane.xlu0 %3140
    %v3142 = vsel %vm167, %v3138, 0.0
    %3143 = vadd.xlane.f32.xlu0 %v3142
    %v3144 = vpop.xlane.xlu0 %3143
    %v3145 = vrcp.pop %v3141
    %v3146 = vrcp.pop %v3144
    %v3147 = vmul.f32 %v3136, %v3145
    %v3148 = vmul.f32 %v3138, %v3146
    %3149 = vrot.lane.b32.xlu0 %v1971, 40
    %v3150 = vpop.permute.xlu0 %3149
    %v3153 = vsel %vm167, %v3147, 0
    %3155 = vmatprep.subr.mxu0 0.0
    %3156 = vmatpush1.msra.mxu0 %v3150
    %3157 = vmatprep.subr.mxu0 0.0
    %3158 = vmatpush1.msra.mxu0 0.0
    %3159 = vmatprep.subr.mxu0 0.0
    %3160 = vmatpush1.msra.mxu0 0.0
    %3161 = vmatprep.subr.mxu0 0.0
    %3162 = vmatpush1.msra.mxu0 0.0
    %3163 = vmatprep.subr.mxu0 0.0
    %3164 = vmatpush1.msra.mxu0 0.0
    %3165 = vmatprep.subr.mxu0 0.0
    %3166 = vmatpush1.msra.mxu0 0.0
    %3167 = vmatprep.subr.mxu0 0.0
    %3168 = vmatpush1.msra.mxu0 0.0
    %3169 = vmatprep.subr.mxu0 0.0
    %3170 = vmatpush1.msra.mxu0 0.0
    %3171 = vmatprep.subr.mxu0 0.0
    %3172 = vmatpush1.msra.mxu0 0.0
    %3173 = vmatprep.subr.mxu0 0.0
    %3174 = vmatpush1.msra.mxu0 0.0
    %3175 = vmatprep.subr.mxu0 0.0
    %3176 = vmatpush1.msra.mxu0 0.0
    %3177 = vmatprep.subr.mxu0 0.0
    %3178 = vmatpush1.msra.mxu0 0.0
    %3179 = vmatprep.subr.mxu0 0.0
    %3180 = vmatpush1.msra.mxu0 0.0
    %3181 = vmatprep.subr.mxu0 0.0
    %3182 = vmatpush1.msra.mxu0 0.0
    %3183 = vmatprep.subr.mxu0 0.0
    %3184 = vmatpush1.msra.mxu0 0.0
    %3185 = vmatprep.subr.mxu0 0.0
    %3186 = vmatpush1.msra.mxu0 0.0
    %3187 = vmatprep.subr.mxu0 0.0
    %3188 = vmatpush1.msra.mxu0 0.0
    %3189 = vmatprep.subr.mxu0 0.0
    %3190 = vmatpush1.msra.mxu0 0.0
    %3191 = vmatprep.subr.mxu0 0.0
    %3192 = vmatpush1.msra.mxu0 0.0
    %3193 = vmatprep.subr.mxu0 0.0
    %3194 = vmatpush1.msra.mxu0 0.0
    %3195 = vmatprep.subr.mxu0 0.0
    %3196 = vmatpush1.msra.mxu0 0.0
    %3197 = vmatprep.subr.mxu0 0.0
    %3198 = vmatpush1.msra.mxu0 0.0
    %3199 = vmatprep.subr.mxu0 0.0
    %3200 = vmatpush1.msra.mxu0 0.0
    %3201 = vmatprep.subr.mxu0 0.0
    %3202 = vmatpush1.msra.mxu0 0.0
    %3203 = vmatprep.subr.mxu0 0.0
    %3204 = vmatpush1.msra.mxu0 0.0
    %3205 = vmatprep.subr.mxu0 0.0
    %3206 = vmatpush1.msra.mxu0 0.0
    %3207 = vmatprep.subr.mxu0 0.0
    %3208 = vmatpush1.msra.mxu0 0.0
    %3209 = vmatprep.subr.mxu0 0.0
    %3210 = vmatpush1.msra.mxu0 0.0
    %3211 = vmatprep.subr.mxu0 0.0
    %3212 = vmatpush1.msra.mxu0 0.0
    %3213 = vmatprep.subr.mxu0 0.0
    %3214 = vmatpush1.msra.mxu0 0.0
    %3215 = vmatprep.subr.mxu0 0.0
    %3216 = vmatpush1.msra.mxu0 0.0
    %3217 = vmatprep.subr.mxu0 0.0
    %3218 = vmatpush1.msra.mxu0 0.0
    %3219 = vmatprep.mubr.f32.mxu0 0.0
    %3220 = vmatmul.mubr.f32.gmra.mrb[0].mxu0 %v3153
    %v3221 = vpop.f32.mrb[0].mxu0
    %v3222 = vadd.f32 0.0, %v3221
    %v3223 = vpop.f32.mrb[0].mxu0
    %3224 = vdwg.mxu0
    %3225 = vrot.lane.b32.xlu0 %v1976, 40
    %v3226 = vpop.permute.xlu0 %3225
    %v3229 = vsel %vm167, %v3148, 0
    %3231 = vmatprep.subr.mxu0 0.0
    %3232 = vmatpush1.msra.mxu0 %v3226
    %3233 = vmatprep.subr.mxu0 0.0
    %3234 = vmatpush1.msra.mxu0 0.0
    %3235 = vmatprep.subr.mxu0 0.0
    %3236 = vmatpush1.msra.mxu0 0.0
    %3237 = vmatprep.subr.mxu0 0.0
    %3238 = vmatpush1.msra.mxu0 0.0
    %3239 = vmatprep.subr.mxu0 0.0
    %3240 = vmatpush1.msra.mxu0 0.0
    %3241 = vmatprep.subr.mxu0 0.0
    %3242 = vmatpush1.msra.mxu0 0.0
    %3243 = vmatprep.subr.mxu0 0.0
    %3244 = vmatpush1.msra.mxu0 0.0
    %3245 = vmatprep.subr.mxu0 0.0
    %3246 = vmatpush1.msra.mxu0 0.0
    %3247 = vmatprep.subr.mxu0 0.0
    %3248 = vmatpush1.msra.mxu0 0.0
    %3249 = vmatprep.subr.mxu0 0.0
    %3250 = vmatpush1.msra.mxu0 0.0
    %3251 = vmatprep.subr.mxu0 0.0
    %3252 = vmatpush1.msra.mxu0 0.0
    %3253 = vmatprep.subr.mxu0 0.0
    %3254 = vmatpush1.msra.mxu0 0.0
    %3255 = vmatprep.subr.mxu0 0.0
    %3256 = vmatpush1.msra.mxu0 0.0
    %3257 = vmatprep.subr.mxu0 0.0
    %3258 = vmatpush1.msra.mxu0 0.0
    %3259 = vmatprep.subr.mxu0 0.0
    %3260 = vmatpush1.msra.mxu0 0.0
    %3261 = vmatprep.subr.mxu0 0.0
    %3262 = vmatpush1.msra.mxu0 0.0
    %3263 = vmatprep.subr.mxu0 0.0
    %3264 = vmatpush1.msra.mxu0 0.0
    %3265 = vmatprep.subr.mxu0 0.0
    %3266 = vmatpush1.msra.mxu0 0.0
    %3267 = vmatprep.subr.mxu0 0.0
    %3268 = vmatpush1.msra.mxu0 0.0
    %3269 = vmatprep.subr.mxu0 0.0
    %3270 = vmatpush1.msra.mxu0 0.0
    %3271 = vmatprep.subr.mxu0 0.0
    %3272 = vmatpush1.msra.mxu0 0.0
    %3273 = vmatprep.subr.mxu0 0.0
    %3274 = vmatpush1.msra.mxu0 0.0
    %3275 = vmatprep.subr.mxu0 0.0
    %3276 = vmatpush1.msra.mxu0 0.0
    %3277 = vmatprep.subr.mxu0 0.0
    %3278 = vmatpush1.msra.mxu0 0.0
    %3279 = vmatprep.subr.mxu0 0.0
    %3280 = vmatpush1.msra.mxu0 0.0
    %3281 = vmatprep.subr.mxu0 0.0
    %3282 = vmatpush1.msra.mxu0 0.0
    %3283 = vmatprep.subr.mxu0 0.0
    %3284 = vmatpush1.msra.mxu0 0.0
    %3285 = vmatprep.subr.mxu0 0.0
    %3286 = vmatpush1.msra.mxu0 0.0
    %3287 = vmatprep.subr.mxu0 0.0
    %3288 = vmatpush1.msra.mxu0 0.0
    %3289 = vmatprep.subr.mxu0 0.0
    %3290 = vmatpush1.msra.mxu0 0.0
    %3291 = vmatprep.subr.mxu0 0.0
    %3292 = vmatpush1.msra.mxu0 0.0
    %3293 = vmatprep.subr.mxu0 0.0
    %3294 = vmatpush1.msra.mxu0 0.0
    %3295 = vmatprep.mubr.f32.mxu0 0.0
    %3296 = vmatmul.mubr.f32.gmra.mrb[0].mxu0 %v3229
    %v3297 = vpop.f32.mrb[0].mxu0
    %v3298 = vadd.f32 0.0, %v3297
    %v3299 = vpop.f32.mrb[0].mxu0
    %3300 = vdwg.mxu0
    %3303 = vrot.lane.b32.xlu0 %v2562, 8
    %v3304 = vpop.permute.xlu0 %3303
    %3305 = vrot.lane.b32.xlu0 %v2638, 8
    %v3306 = vpop.permute.xlu0 %3305
    %3311 = vrot.lane.b32.xlu0 %v2892, 16
    %v3312 = vpop.permute.xlu0 %3311
    %3313 = vrot.lane.b32.xlu0 %v2968, 16
    %v3314 = vpop.permute.xlu0 %3313
    %3319 = vrot.lane.b32.xlu0 %v3222, 24
    %v3320 = vpop.permute.xlu0 %3319
    %3321 = vrot.lane.b32.xlu0 %v3298, 24
    %v3322 = vpop.permute.xlu0 %3321
    %v3325 = vsel %vm167, %v2232, %v3304
    %v3326 = vsel %vm167, %v2308, %v3306
    %v3327 = vsel %vm1511, %v3325, %v3312
    %v3328 = vsel %vm1511, %v3326, %v3314
    %v3329 = vsel %vm1514, %v3327, %v3320
    %v3330 = vsel %vm1514, %v3328, %v3322
    %s3331 = scalar_lea.vmem %s3, 32
    %v3332 = vld [vmem:[%s3331] sm:$0xff]
    %v3333 = vld [vmem:[%s3331 + $0x8] sm:$0xff]
    %v3334 = vld [vmem:[%s3331 + $0x10] sm:$0xff]
    %v3335 = vld [vmem:[%s3331 + $0x18] sm:$0xff]
    %s3336 = scalar_lea.vmem %s4, 1
    %v3337 = vld [vmem:[%s3336] sm:$0x1]
    %v3339 = vlaneseq
    %v3340 = vshrl.u32 %v3339, 7
    %v3341 = vsub.s32 0, %v3340
    %v3342 = vrot.slane %v3337, %v3341
    %v3345 = vsel %vm80, %v3329, 0
    %v3348 = vsel %vm80, %v3330, 0
    %3350 = vmatprep.subr.mxu0 0.0
    %3351 = vmatpush1.msra.mxu0 %v3332
    %3352 = vmatprep.subr.mxu0 0.0
    %3353 = vmatpush1.msra.mxu0 %v3333
    %3354 = vmatprep.subr.mxu0 0.0
    %3355 = vmatpush1.msra.mxu0 %v3334
    %3356 = vmatprep.subr.mxu0 0.0
    %3357 = vmatpush1.msra.mxu0 %v3335
    %3358 = vmatprep.subr.mxu0 0.0
    %3359 = vmatpush1.msra.mxu0 0.0
    %3360 = vmatprep.subr.mxu0 0.0
    %3361 = vmatpush1.msra.mxu0 0.0
    %3362 = vmatprep.subr.mxu0 0.0
    %3363 = vmatpush1.msra.mxu0 0.0
    %3364 = vmatprep.subr.mxu0 0.0
    %3365 = vmatpush1.msra.mxu0 0.0
    %3366 = vmatprep.subr.mxu0 0.0
    %3367 = vmatpush1.msra.mxu0 0.0
    %3368 = vmatprep.subr.mxu0 0.0
    %3369 = vmatpush1.msra.mxu0 0.0
    %3370 = vmatprep.subr.mxu0 0.0
    %3371 = vmatpush1.msra.mxu0 0.0
    %3372 = vmatprep.subr.mxu0 0.0
    %3373 = vmatpush1.msra.mxu0 0.0
    %3374 = vmatprep.subr.mxu0 0.0
    %3375 = vmatpush1.msra.mxu0 0.0
    %3376 = vmatprep.subr.mxu0 0.0
    %3377 = vmatpush1.msra.mxu0 0.0
    %3378 = vmatprep.subr.mxu0 0.0
    %3379 = vmatpush1.msra.mxu0 0.0
    %3380 = vmatprep.subr.mxu0 0.0
    %3381 = vmatpush1.msra.mxu0 0.0
    %3382 = vmatprep.subr.mxu0 0.0
    %3383 = vmatpush1.msra.mxu0 0.0
    %3384 = vmatprep.subr.mxu0 0.0
    %3385 = vmatpush1.msra.mxu0 0.0
    %3386 = vmatprep.subr.mxu0 0.0
    %3387 = vmatpush1.msra.mxu0 0.0
    %3388 = vmatprep.subr.mxu0 0.0
    %3389 = vmatpush1.msra.mxu0 0.0
    %3390 = vmatprep.subr.mxu0 0.0
    %3391 = vmatpush1.msra.mxu0 0.0
    %3392 = vmatprep.subr.mxu0 0.0
    %3393 = vmatpush1.msra.mxu0 0.0
    %3394 = vmatprep.subr.mxu0 0.0
    %3395 = vmatpush1.msra.mxu0 0.0
    %3396 = vmatprep.subr.mxu0 0.0
    %3397 = vmatpush1.msra.mxu0 0.0
    %3398 = vmatprep.subr.mxu0 0.0
    %3399 = vmatpush1.msra.mxu0 0.0
    %3400 = vmatprep.subr.mxu0 0.0
    %3401 = vmatpush1.msra.mxu0 0.0
    %3402 = vmatprep.subr.mxu0 0.0
    %3403 = vmatpush1.msra.mxu0 0.0
    %3404 = vmatprep.subr.mxu0 0.0
    %3405 = vmatpush1.msra.mxu0 0.0
    %3406 = vmatprep.subr.mxu0 0.0
    %3407 = vmatpush1.msra.mxu0 0.0
    %3408 = vmatprep.subr.mxu0 0.0
    %3409 = vmatpush1.msra.mxu0 0.0
    %3410 = vmatprep.subr.mxu0 0.0
    %3411 = vmatpush1.msra.mxu0 0.0
    %3412 = vmatprep.subr.mxu0 0.0
    %3413 = vmatpush1.msra.mxu0 0.0
    %3414 = vmatprep.mubr.f32.mxu0 0.0
    %3415 = vmatmul.mubr.f32.gmra.mrb[0].mxu0 %v3345
    %v3416 = vpop.f32.mrb[0].mxu0
    %v3417 = vadd.f32 %v3342, %v3416
    %v3418 = vpop.f32.mrb[0].mxu0
    %3419 = vmatprep.mubr.f32.mxu0 0.0
    %3420 = vmatmul.mubr.f32.gmra.mrb[0].mxu0 %v3348
    %v3421 = vpop.f32.mrb[0].mxu0
    %v3422 = vadd.f32 %v3342, %v3421
    %v3423 = vpop.f32.mrb[0].mxu0
    %3424 = vdwg.mxu0
    %v3425 = vadd.f32 %v3417, %v1891
    %v3426 = vadd.f32 %v3422, %v1892
    %v3427 = vsel %vm80, %v3425, 0.0
    %3428 = vadd.xlane.f32.xlu0 %v3427
    %v3429 = vpop.xlane.xlu0 %3428
    %v3430 = vsel %vm80, %v3426, 0.0
    %3431 = vadd.xlane.f32.xlu0 %v3430
    %v3432 = vpop.xlane.xlu0 %3431
    %v3433 = vmul.f32 %v3429, %v1617
    %v3434 = vmul.f32 %v3432, %v1617
    %v3435 = vsub.f32 %v3425, %v3433
    %v3436 = vsub.f32 %v3426, %v3434
    %v3437 = vmul.f32 %v3435, %v3435
    %v3438 = vmul.f32 %v3436, %v3436
    %v3439 = vsel %vm80, %v3437, 0.0
    %3440 = vadd.xlane.f32.xlu0 %v3439
    %v3441 = vpop.xlane.xlu0 %3440
    %v3442 = vsel %vm80, %v3438, 0.0
    %3443 = vadd.xlane.f32.xlu0 %v3442
    %v3444 = vpop.xlane.xlu0 %3443
    %v3445 = vmul.f32 %v3441, %v1617
    %v3446 = vmul.f32 %v3444, %v1617
    %v3447 = vadd.f32 %v3445, 1e-05
    %v3448 = vadd.f32 %v3446, 1e-05
    %v3449 = vrsqrt.pop %v3447
    %v3450 = vrsqrt.pop %v3448
    %v3451 = vmul.f32 %v3435, %v3449
    %v3452 = vmul.f32 %v3436, %v3450
    %s3453 = scalar_lea.vmem %s5, 1
    %v3454 = vld [vmem:[%s3453] sm:$0x1]
    %v3456 = vlaneseq
    %v3457 = vshrl.u32 %v3456, 7
    %v3458 = vsub.s32 0, %v3457
    %v3459 = vrot.slane %v3454, %v3458
    %v3461 = vmul.f32 %v3451, %v3459
    %v3462 = vmul.f32 %v3452, %v3459
    %s3463 = scalar_lea.vmem %s6, 1
    %v3464 = vld [vmem:[%s3463] sm:$0x1]
    %v3466 = vlaneseq
    %v3467 = vshrl.u32 %v3466, 7
    %v3468 = vsub.s32 0, %v3467
    %v3469 = vrot.slane %v3464, %v3468
    %v3471 = vadd.f32 %v3461, %v3469
    %v3472 = vadd.f32 %v3462, %v3469
    %s3473 = scalar_lea.vmem %s7, 32
    %v3474 = vld [vmem:[%s3473] sm:$0xff]
    %v3475 = vld [vmem:[%s3473 + $0x8] sm:$0xff]
    %v3476 = vld [vmem:[%s3473 + $0x10] sm:$0xff]
    %v3477 = vld [vmem:[%s3473 + $0x18] sm:$0xff]
    %s3478 = scalar_lea.vmem %s8, 1
    %v3479 = vld [vmem:[%s3478] sm:$0x1]
    %v3481 = vlaneseq
    %v3482 = vshrl.u32 %v3481, 7
    %v3483 = vsub.s32 0, %v3482
    %v3484 = vrot.slane %v3479, %v3483
    %v3487 = vsel %vm80, %v3471, 0
    %v3490 = vsel %vm80, %v3472, 0
    %3492 = vmatprep.subr.mxu0 0.0
    %3493 = vmatpush1.msra.mxu0 %v3474
    %3494 = vmatprep.subr.mxu0 0.0
    %3495 = vmatpush1.msra.mxu0 %v3475
    %3496 = vmatprep.subr.mxu0 0.0
    %3497 = vmatpush1.msra.mxu0 %v3476
    %3498 = vmatprep.subr.mxu0 0.0
    %3499 = vmatpush1.msra.mxu0 %v3477
    %3500 = vmatprep.subr.mxu0 0.0
    %3501 = vmatpush1.msra.mxu0 0.0
    %3502 = vmatprep.subr.mxu0 0.0
    %3503 = vmatpush1.msra.mxu0 0.0
    %3504 = vmatprep.subr.mxu0 0.0
    %3505 = vmatpush1.msra.mxu0 0.0
    %3506 = vmatprep.subr.mxu0 0.0
    %3507 = vmatpush1.msra.mxu0 0.0
    %3508 = vmatprep.subr.mxu0 0.0
    %3509 = vmatpush1.msra.mxu0 0.0
    %3510 = vmatprep.subr.mxu0 0.0
    %3511 = vmatpush1.msra.mxu0 0.0
    %3512 = vmatprep.subr.mxu0 0.0
    %3513 = vmatpush1.msra.mxu0 0.0
    %3514 = vmatprep.subr.mxu0 0.0
    %3515 = vmatpush1.msra.mxu0 0.0
    %3516 = vmatprep.subr.mxu0 0.0
    %3517 = vmatpush1.msra.mxu0 0.0
    %3518 = vmatprep.subr.mxu0 0.0
    %3519 = vmatpush1.msra.mxu0 0.0
    %3520 = vmatprep.subr.mxu0 0.0
    %3521 = vmatpush1.msra.mxu0 0.0
    %3522 = vmatprep.subr.mxu0 0.0
    %3523 = vmatpush1.msra.mxu0 0.0
    %3524 = vmatprep.subr.mxu0 0.0
    %3525 = vmatpush1.msra.mxu0 0.0
    %3526 = vmatprep.subr.mxu0 0.0
    %3527 = vmatpush1.msra.mxu0 0.0
    %3528 = vmatprep.subr.mxu0 0.0
    %3529 = vmatpush1.msra.mxu0 0.0
    %3530 = vmatprep.subr.mxu0 0.0
    %3531 = vmatpush1.msra.mxu0 0.0
    %3532 = vmatprep.subr.mxu0 0.0
    %3533 = vmatpush1.msra.mxu0 0.0
    %3534 = vmatprep.subr.mxu0 0.0
    %3535 = vmatpush1.msra.mxu0 0.0
    %3536 = vmatprep.subr.mxu0 0.0
    %3537 = vmatpush1.msra.mxu0 0.0
    %3538 = vmatprep.subr.mxu0 0.0
    %3539 = vmatpush1.msra.mxu0 0.0
    %3540 = vmatprep.subr.mxu0 0.0
    %3541 = vmatpush1.msra.mxu0 0.0
    %3542 = vmatprep.subr.mxu0 0.0
    %3543 = vmatpush1.msra.mxu0 0.0
    %3544 = vmatprep.subr.mxu0 0.0
    %3545 = vmatpush1.msra.mxu0 0.0
    %3546 = vmatprep.subr.mxu0 0.0
    %3547 = vmatpush1.msra.mxu0 0.0
    %3548 = vmatprep.subr.mxu0 0.0
    %3549 = vmatpush1.msra.mxu0 0.0
    %3550 = vmatprep.subr.mxu0 0.0
    %3551 = vmatpush1.msra.mxu0 0.0
    %3552 = vmatprep.subr.mxu0 0.0
    %3553 = vmatpush1.msra.mxu0 0.0
    %3554 = vmatprep.subr.mxu0 0.0
    %3555 = vmatpush1.msra.mxu0 0.0
    %3556 = vmatprep.mubr.f32.mxu0 0.0
    %3557 = vmatmul.mubr.f32.gmra.mrb[0].mxu0 %v3487
    %v3558 = vpop.f32.mrb[0].mxu0
    %v3559 = vadd.f32 %v3484, %v3558
    %v3560 = vpop.f32.mrb[0].mxu0
    %3561 = vmatprep.mubr.f32.mxu0 0.0
    %3562 = vmatmul.mubr.f32.gmra.mrb[0].mxu0 %v3490
    %v3563 = vpop.f32.mrb[0].mxu0
    %v3564 = vadd.f32 %v3484, %v3563
    %v3565 = vpop.f32.mrb[0].mxu0
    %3566 = vdwg.mxu0
    %v3567 = vmax.f32 %v3559, 0.0
    %v3568 = vmax.f32 %v3564, 0.0
    %s3569 = scalar_lea.vmem %s9, 64
    %v3570 = vld [vmem:[%s3569] sm:$0xff]
    %v3571 = vld [vmem:[%s3569 + $0x8] sm:$0xff]
    %v3572 = vld [vmem:[%s3569 + $0x10] sm:$0xff]
    %v3573 = vld [vmem:[%s3569 + $0x18] sm:$0xff]
    %v3574 = vld [vmem:[%s3569 + $0x20] sm:$0xff]
    %v3575 = vld [vmem:[%s3569 + $0x28] sm:$0xff]
    %v3576 = vld [vmem:[%s3569 + $0x30] sm:$0xff]
    %v3577 = vld [vmem:[%s3569 + $0x38] sm:$0xff]
    %s3578 = scalar_lea.vmem %s10, 1
    %v3579 = vld [vmem:[%s3578] sm:$0x1]
    %v3581 = vlaneseq
    %v3582 = vshrl.u32 %v3581, 7
    %v3583 = vsub.s32 0, %v3582
    %v3584 = vrot.slane %v3579, %v3583
    %v3587 = vsel %vm1765, %v3567, 0
    %v3590 = vsel %vm1765, %v3568, 0
    %3592 = vmatprep.subr.mxu0 0.0
    %3593 = vmatpush1.msra.mxu0 %v3570
    %3594 = vmatprep.subr.mxu0 0.0
    %3595 = vmatpush1.msra.mxu0 %v3571
    %3596 = vmatprep.subr.mxu0 0.0
    %3597 = vmatpush1.msra.mxu0 %v3572
    %3598 = vmatprep.subr.mxu0 0.0
    %3599 = vmatpush1.msra.mxu0 %v3573
    %3600 = vmatprep.subr.mxu0 0.0
    %3601 = vmatpush1.msra.mxu0 %v3574
    %3602 = vmatprep.subr.mxu0 0.0
    %3603 = vmatpush1.msra.mxu0 %v3575
    %3604 = vmatprep.subr.mxu0 0.0
    %3605 = vmatpush1.msra.mxu0 %v3576
    %3606 = vmatprep.subr.mxu0 0.0
    %3607 = vmatpush1.msra.mxu0 %v3577
    %3608 = vmatprep.subr.mxu0 0.0
    %3609 = vmatpush1.msra.mxu0 0.0
    %3610 = vmatprep.subr.mxu0 0.0
    %3611 = vmatpush1.msra.mxu0 0.0
    %3612 = vmatprep.subr.mxu0 0.0
    %3613 = vmatpush1.msra.mxu0 0.0
    %3614 = vmatprep.subr.mxu0 0.0
    %3615 = vmatpush1.msra.mxu0 0.0
    %3616 = vmatprep.subr.mxu0 0.0
    %3617 = vmatpush1.msra.mxu0 0.0
    %3618 = vmatprep.subr.mxu0 0.0
    %3619 = vmatpush1.msra.mxu0 0.0
    %3620 = vmatprep.subr.mxu0 0.0
    %3621 = vmatpush1.msra.mxu0 0.0
    %3622 = vmatprep.subr.mxu0 0.0
    %3623 = vmatpush1.msra.mxu0 0.0
    %3624 = vmatprep.subr.mxu0 0.0
    %3625 = vmatpush1.msra.mxu0 0.0
    %3626 = vmatprep.subr.mxu0 0.0
    %3627 = vmatpush1.msra.mxu0 0.0
    %3628 = vmatprep.subr.mxu0 0.0
    %3629 = vmatpush1.msra.mxu0 0.0
    %3630 = vmatprep.subr.mxu0 0.0
    %3631 = vmatpush1.msra.mxu0 0.0
    %3632 = vmatprep.subr.mxu0 0.0
    %3633 = vmatpush1.msra.mxu0 0.0
    %3634 = vmatprep.subr.mxu0 0.0
    %3635 = vmatpush1.msra.mxu0 0.0
    %3636 = vmatprep.subr.mxu0 0.0
    %3637 = vmatpush1.msra.mxu0 0.0
    %3638 = vmatprep.subr.mxu0 0.0
    %3639 = vmatpush1.msra.mxu0 0.0
    %3640 = vmatprep.subr.mxu0 0.0
    %3641 = vmatpush1.msra.mxu0 0.0
    %3642 = vmatprep.subr.mxu0 0.0
    %3643 = vmatpush1.msra.mxu0 0.0
    %3644 = vmatprep.subr.mxu0 0.0
    %3645 = vmatpush1.msra.mxu0 0.0
    %3646 = vmatprep.subr.mxu0 0.0
    %3647 = vmatpush1.msra.mxu0 0.0
    %3648 = vmatprep.subr.mxu0 0.0
    %3649 = vmatpush1.msra.mxu0 0.0
    %3650 = vmatprep.subr.mxu0 0.0
    %3651 = vmatpush1.msra.mxu0 0.0
    %3652 = vmatprep.subr.mxu0 0.0
    %3653 = vmatpush1.msra.mxu0 0.0
    %3654 = vmatprep.subr.mxu0 0.0
    %3655 = vmatpush1.msra.mxu0 0.0
    %3656 = vmatprep.mubr.f32.mxu0 0.0
    %3657 = vmatmul.mubr.f32.gmra.mrb[0].mxu0 %v3587
    %v3658 = vpop.f32.mrb[0].mxu0
    %v3659 = vadd.f32 %v3584, %v3658
    %v3660 = vpop.f32.mrb[0].mxu0
    %3661 = vmatprep.mubr.f32.mxu0 0.0
    %3662 = vmatmul.mubr.f32.gmra.mrb[0].mxu0 %v3590
    %v3663 = vpop.f32.mrb[0].mxu0
    %v3664 = vadd.f32 %v3584, %v3663
    %v3665 = vpop.f32.mrb[0].mxu0
    %3666 = vdwg.mxu0
    %v3667 = vadd.f32 %v3659, %v3471
    %v3668 = vadd.f32 %v3664, %v3472
    %v3669 = vsel %vm80, %v3667, 0.0
    %3670 = vadd.xlane.f32.xlu0 %v3669
    %v3671 = vpop.xlane.xlu0 %3670
    %v3672 = vsel %vm80, %v3668, 0.0
    %3673 = vadd.xlane.f32.xlu0 %v3672
    %v3674 = vpop.xlane.xlu0 %3673
    %v3675 = vmul.f32 %v3671, %v1617
    %v3676 = vmul.f32 %v3674, %v1617
    %v3677 = vsub.f32 %v3667, %v3675
    %v3678 = vsub.f32 %v3668, %v3676
    %v3679 = vmul.f32 %v3677, %v3677
    %v3680 = vmul.f32 %v3678, %v3678
    %v3681 = vsel %vm80, %v3679, 0.0
    %3682 = vadd.xlane.f32.xlu0 %v3681
    %v3683 = vpop.xlane.xlu0 %3682
    %v3684 = vsel %vm80, %v3680, 0.0
    %3685 = vadd.xlane.f32.xlu0 %v3684
    %v3686 = vpop.xlane.xlu0 %3685
    %v3687 = vmul.f32 %v3683, %v1617
    %v3688 = vmul.f32 %v3686, %v1617
    %v3689 = vadd.f32 %v3687, 1e-05
    %v3690 = vadd.f32 %v3688, 1e-05
    %v3691 = vrsqrt.pop %v3689
    %v3692 = vrsqrt.pop %v3690
    %v3693 = vmul.f32 %v3677, %v3691
    %v3694 = vmul.f32 %v3678, %v3692
    %s3695 = scalar_lea.vmem %s11, 1
    %v3696 = vld [vmem:[%s3695] sm:$0x1]
    %v3698 = vlaneseq
    %v3699 = vshrl.u32 %v3698, 7
    %v3700 = vsub.s32 0, %v3699
    %v3701 = vrot.slane %v3696, %v3700
    %v3703 = vmul.f32 %v3693, %v3701
    %v3704 = vmul.f32 %v3694, %v3701
    %s3705 = scalar_lea.vmem %s12, 1
    %v3706 = vld [vmem:[%s3705] sm:$0x1]
    %v3708 = vlaneseq
    %v3709 = vshrl.u32 %v3708, 7
    %v3710 = vsub.s32 0, %v3709
    %v3711 = vrot.slane %v3706, %v3710
    %v3713 = vadd.f32 %v3703, %v3711
    %v3714 = vadd.f32 %v3704, %v3711
    %3715 = vst.msk [vmem:[#allocation7] sm:$0xff] %vm80, %v3713
    %3716 = vst.msk [vmem:[#allocation7 + $0x8] sm:$0xff] %vm80, %v3714
    // Predicated region
    $region62: #{tpu_custom_call.1} parent=1 // pred_check
      _
    $region63: #{tpu_custom_call.1} parent=1 // pred_check_branch
      %3718 = sbr.rel (0) target = $region65
    $region64: #{tpu_custom_call.1} parent=1 // pred_region
      %s3720 = ssub.s32 256, 256
      %3721 = vsyncadd [#allocation4], %s3720
      %s3722 = sshll.u32 [#allocation7], 4
      %s3723 = int_to_ptr.vmem [resolvable:$true] %s3722
      %3728 = dma.vmem_to_hbm [thread:$0]  %s3723, 256, %s13, [#allocation4], 128, 128, 8
    $region65: #{tpu_custom_call.1} parent=1 // pred_fallthru
      _
    // Predicated region
    $region66: #{tpu_custom_call.1} parent=1 // pred_check
      _
    $region67: #{tpu_custom_call.1} parent=1 // pred_check_branch
      %3730 = sbr.rel (0) target = $region69
    $region68: #{tpu_custom_call.1} parent=1 // pred_region
      %3731 = dma.done [#allocation4], 256
    $region69: #{tpu_custom_call.1} parent=1 // pred_fallthru
      _
    %3732 = vsyncpa [#allocation3], 1
    %3733 = vsyncpa [#allocation6], 1
    %3734 = vsyncpa [#allocation4], 1

</llo_original>
